<compile_context>
chip_gen: v7x
topology: tpu7x:2x2x1
jax: 0.10.0
libtpu: 0.0.40
codegen_flags: <defaults>
</compile_context>

<pallas_src>
import functools

import jax
import jax.numpy as jnp
from jax import lax
from jax.experimental import pallas as pl
from jax.experimental.pallas import tpu as pltpu


_G = 128                      # pooling windows packed per VMEM row (lane-dense)
_PACKED_HW_MAX = 256          # keeps the bf16 selector <= ~8 MiB
_SPLIT_BYTES = 8 << 20        # only split / even-up grids when work is real


def _round_up(a: int, b: int) -> int:
    return ((a + b - 1) // b) * b


def _round_down(a: int, b: int) -> int:
    return (a // b) * b


def _vmem_capacity_bytes() -> int:
    """Best-effort physical VMEM size; conservative (v7x-sized) fallback."""
    try:
        info = pltpu.get_tpu_info()
        cap = int(getattr(info, "vmem_capacity_bytes", 0) or 0)
        if cap > 0:
            return cap
    except Exception:
        pass
    return 64 << 20


# ---------------------------------------------------------------------------
# Packed MXU path (small, lane-misaligned H*W - e.g. GoogLeNet's 7x7 = 49).
# ---------------------------------------------------------------------------
def _gap_packed_kernel(x_ref, s_ref, o_ref, *, inv_hw):
    # x_ref: (block_rows, G*hw) - each row packs G pooling windows, lane dense.
    # s_ref: (G*hw, G) block-diagonal 0/1 selector, resident across the grid.
    # o_ref: (block_rows, G) per-window means, lane dense (no relayout needed).
    x = x_ref[...]
    s = s_ref[...]
    if x.dtype == jnp.float32:
        # Split f32 into hi+lo bf16 so the MXU runs cheap bf16 passes while the
        # f32 accumulator keeps ~f32 accuracy (selector entries are exact).
        hi = x.astype(jnp.bfloat16)
        lo = (x - hi.astype(jnp.float32)).astype(jnp.bfloat16)
        acc = jnp.dot(hi, s, preferred_element_type=jnp.float32)
        acc = acc + jnp.dot(lo, s, preferred_element_type=jnp.float32)
    else:
        acc = jnp.dot(x, s, preferred_element_type=jnp.float32)
    o_ref[...] = (acc * inv_hw).astype(o_ref.dtype)


def _packed_block_rows(R, K, itemsize, sel_bytes, budget, total_bytes):
    # VMEM bytes per packed row: double-buffered input block plus the bf16
    # hi/lo temporaries used by the f32 MXU split.
    per_row = K * (2 * itemsize + (8 if itemsize == 4 else 2))
    avail = max(budget - 2 * sel_bytes, 4 << 20)
    cap = min(2048, max(8, _round_down(avail // per_row, 8)))
    if R <= cap:
        if total_bytes >= _SPLIT_BYTES and R >= 16:
            return _round_up(pl.cdiv(R, 2), 8)      # 2 steps -> both v7x cores
        return R                                    # full dim: always legal
    br = cap
    nb = pl.cdiv(R, br)
    if nb % 2 == 1 and total_bytes >= _SPLIT_BYTES:
        br2 = _round_up(pl.cdiv(R, nb + 1), 8)      # prefer an even step count
        if 8 <= br2 <= cap and pl.cdiv(R, br2) % 2 == 0:
            br = br2
    return br


def _packed_pool(x2d, rows, hw, block_rows, budget, limit_ceiling):
    itemsize = jnp.dtype(x2d.dtype).itemsize
    rows_p = _round_up(rows, _G)
    if rows_p < 8 * _G:
        rows_p = 8 * _G                    # keep the matmul M-dim >= 8
    if rows_p != rows:
        # Zero-pad the (small) row tail; pad rows mean to 0 and are sliced off.
        x2d = jnp.pad(x2d, ((0, rows_p - rows), (0, 0)))
    R = rows_p // _G
    K = _G * hw
    xp = x2d.reshape(R, K)                 # pure view when no pad was needed

    # Block-diagonal selector: column g is 1 over lanes [g*hw, (g+1)*hw).
    win = jnp.arange(K, dtype=jnp.int32) // hw
    sel = (win[:, None] == jnp.arange(_G, dtype=jnp.int32)[None, :]).astype(
        jnp.bfloat16)
    sel_bytes = K * _G * 2

    if block_rows is None:
        block_rows = _packed_block_rows(R, K, itemsize, sel_bytes, budget,
                                        rows_p * hw * itemsize)
    # Ragged last block: out-of-range packed rows read unspecified data, but
    # every output row depends only on its own input row and the garbage rows
    # are sliced off in the wrapper.
    num_blocks = pl.cdiv(R, block_rows)

    block_in = block_rows * K * itemsize
    temps = block_rows * K * (8 if itemsize == 4 else 0)
    need = (2 * block_in + 2 * sel_bytes + temps
            + 2 * block_rows * _G * 4 + (2 << 20))
    vmem_limit = int(min(max(need, 16 << 20), limit_ceiling))

    out2d = pl.pallas_call(
        functools.partial(_gap_packed_kernel, inv_hw=1.0 / float(hw)),
        out_shape=jax.ShapeDtypeStruct((num_blocks * block_rows, _G),
                                       x2d.dtype),
        grid_spec=pltpu.PrefetchScalarGridSpec(
            num_scalar_prefetch=0,
            grid=(num_blocks,),
            in_specs=[
                pl.BlockSpec((block_rows, K), lambda i: (i, 0)),
                pl.BlockSpec((K, _G), lambda i: (0, 0)),   # resident selector
            ],
            out_specs=pl.BlockSpec((block_rows, _G), lambda i: (i, 0)),
        ),
        compiler_params=pltpu.CompilerParams(
            dimension_semantics=("parallel",),
            vmem_limit_bytes=vmem_limit,
        ),
    )(xp, sel)
    return out2d.reshape(num_blocks * block_rows * _G)


# ---------------------------------------------------------------------------
# Direct path (H*W a multiple of 128, or too large for a resident selector).
# ---------------------------------------------------------------------------
def _gap_direct_kernel(x_ref, o_ref, *, inv_hw, chunk, num_chunks):
    # x_ref: (row_tile, hw) rows; o_ref: (1, 1, row_tile) lane-dense means.
    # Reduce in row chunks so intermediates / relayouts stay small (bounded
    # live ranges -> no vreg spills).
    def body(c, carry):
        off = pl.multiple_of(c * chunk, chunk)
        xs = x_ref[pl.ds(off, chunk), :].astype(jnp.float32)
        m = jnp.sum(xs, axis=-1) * inv_hw                     # (chunk,)
        o_ref[:, :, pl.ds(off, chunk)] = m.astype(o_ref.dtype)[None, None, :]
        return carry

    lax.fori_loop(0, num_chunks, body, 0)


def _direct_row_tile(rows, hw, itemsize, budget, total_bytes):
    lanes = _round_up(hw, 128)
    per_row = 2 * lanes * itemsize                    # double-buffered input
    cap = _round_down(budget // per_row, 128)
    if cap < 128:                                     # pathologically huge hw
        cap = max(8, _round_down(budget // per_row, 8))
    cap = min(cap, 8192)
    if rows <= cap:
        if total_bytes >= _SPLIT_BYTES and rows >= 256:
            return _round_up(pl.cdiv(rows, 2), 128)   # keep both v7x cores busy
        return rows
    rt = cap
    nb = pl.cdiv(rows, rt)
    if nb % 2 == 1 and total_bytes >= _SPLIT_BYTES:
        rt2 = _round_up(pl.cdiv(rows, nb + 1), 128)
        if 128 <= rt2 <= cap and pl.cdiv(rows, rt2) % 2 == 0:
            rt = rt2
    return rt


def _direct_pool(x2d, rows, hw, row_tile, budget, limit_ceiling):
    itemsize = jnp.dtype(x2d.dtype).itemsize
    if row_tile is None:
        row_tile = _direct_row_tile(rows, hw, itemsize, budget,
                                    rows * hw * itemsize)
    num_blocks = pl.cdiv(rows, row_tile)

    if row_tile % 256 == 0:
        chunk = 256
    elif row_tile % 128 == 0:
        chunk = 128
    else:
        chunk = row_tile                               # tiny full-array case

    block_in = row_tile * _round_up(hw, 128) * itemsize
    need = 2 * block_in + 2 * 8 * _round_up(row_tile, 128) * itemsize + (4 << 20)
    vmem_limit = int(min(max(need, 16 << 20), limit_ceiling))

    out3d = pl.pallas_call(
        functools.partial(_gap_direct_kernel, inv_hw=1.0 / float(hw),
                          chunk=chunk, num_chunks=row_tile // chunk),
        out_shape=jax.ShapeDtypeStruct((num_blocks, 1, row_tile), x2d.dtype),
        grid_spec=pltpu.PrefetchScalarGridSpec(
            num_scalar_prefetch=0,
            grid=(num_blocks,),
            in_specs=[pl.BlockSpec((row_tile, hw), lambda i: (i, 0))],
            out_specs=pl.BlockSpec((1, 1, row_tile), lambda i: (i, 0, 0)),
        ),
        compiler_params=pltpu.CompilerParams(
            dimension_semantics=("parallel",),
            vmem_limit_bytes=vmem_limit,
        ),
    )(x2d)
    return out3d.reshape(num_blocks * row_tile)


# ---------------------------------------------------------------------------
# Public wrapper (= GlobalAvgPool2d.forward).
# ---------------------------------------------------------------------------
def global_avg_pool2d(x, *, block_rows=None, row_tile=None):
    """Equivalent of F.avg_pool2d(x, kernel_size=x.shape[2:]) for NCHW input."""
    N, C, H, W = x.shape
    rows, hw = N * C, H * W
    out_dtype = x.dtype
    if x.dtype not in (jnp.float32, jnp.bfloat16):
        x = x.astype(jnp.float32)              # compute exotic dtypes in f32
    itemsize = jnp.dtype(x.dtype).itemsize
    total_bytes = rows * hw * itemsize

    capacity = _vmem_capacity_bytes()
    budget = (capacity * 3) // 8               # 48 MiB on v5e/v6e, 24 MiB on v7x
    limit_ceiling = (capacity * 3) // 4        # vmem_limit clamp (48 MiB on v7x)

    x2d = x.reshape(rows, hw)                  # pure view, no HBM copy

    # Packed MXU path whenever H*W is lane-misaligned and the selector fits.
    # Skip it (to avoid the row-pad HBM copy) for large inputs whose row count
    # is not a multiple of 128 - GoogLeNet's N*1024 rows always are.
    # TODO(synk): such large misaligned-row inputs could keep the packed path
    # by handling the row tail in a second tiny call instead of falling back.
    use_packed = (hw % 128 != 0 and hw <= _PACKED_HW_MAX
                  and (rows % _G == 0 or total_bytes <= _SPLIT_BYTES))

    if use_packed:
        flat = _packed_pool(x2d, rows, hw, block_rows, budget, limit_ceiling)
    else:
        flat = _direct_pool(x2d, rows, hw, row_tile, budget, limit_ceiling)

    return flat[:rows].reshape(N, C, 1, 1).astype(out_dtype)


if __name__ == "__main__":
    key = jax.random.PRNGKey(0)
    k1, k2, k3, k4, k5 = jax.random.split(key, 5)

    def check(x, out, atol, rtol):
        ref = jnp.mean(x.astype(jnp.float32), axis=(2, 3), keepdims=True)
        assert out.shape == ref.shape, (out.shape, ref.shape)
        err = float(jnp.max(jnp.abs(out.astype(jnp.float32) - ref)))
        assert jnp.allclose(out.astype(jnp.float32), ref, atol=atol,
                            rtol=rtol), err

    # 1) GoogLeNet's actual global pool (7x7 spatial) -> packed MXU path.
    x1 = jax.random.normal(k1, (2, 4, 7, 7), jnp.float32)
    o1 = jax.block_until_ready(global_avg_pool2d(x1))
    check(x1, o1, 1e-5, 1e-5)

    # 2) Lane-aligned spatial size (16x16) -> direct chunked-reduction path.
    x2 = jax.random.normal(k2, (2, 4, 16, 16), jnp.float32)
    o2 = jax.block_until_ready(global_avg_pool2d(x2))
    check(x2, o2, 1e-5, 1e-5)

    # 3) Odd everything (5x5 spatial, 3 channels) -> packed path with row pad.
    x3 = jax.random.normal(k3, (1, 3, 5, 5), jnp.float32)
    o3 = jax.block_until_ready(global_avg_pool2d(x3))
    check(x3, o3, 1e-5, 1e-5)

    # 4) Multi-step grid, ragged last block, resident selector across steps.
    x4 = jax.random.normal(k4, (9, 128, 7, 7), jnp.float32)
    o4 = jax.block_until_ready(global_avg_pool2d(x4, block_rows=8))
    check(x4, o4, 1e-5, 1e-5)

    # 5) bf16 input exercises the single-pass bf16 MXU branch.
    x5 = jax.random.normal(k5, (2, 128, 7, 7), jnp.float32).astype(jnp.bfloat16)
    o5 = jax.block_until_ready(global_avg_pool2d(x5))
    check(x5, o5, 2e-2, 2e-2)

    print("KERNEL_OK")
</pallas_src>

<mosaic_0001>
module attributes {stable_mosaic.version = 11 : i64} {
  func.func @_gap_packed_kernel(%arg0: i32, %arg1: memref<8x6272xf32, #tpu.memory_space<vmem>>, %arg2: memref<6272x128xbf16, #tpu.memory_space<vmem>>, %arg3: memref<8x128xf32, #tpu.memory_space<vmem>>) attributes {dimension_semantics = [#tpu.dimension_semantics<parallel>], iteration_bounds = array<i64: 1>, scalar_prefetch = 0 : i64, scratch_operands = 0 : i64, tpu.core_type = #tpu.core_type<tc>, window_params = [{transform_indices = @transform_0, window_bounds = array<i64: 8, 6272>}, {pipeline_mode = #tpu.pipeline_mode<synchronous>, transform_indices = @transform_1, window_bounds = array<i64: 6272, 128>}, {transform_indices = @transform_2, window_bounds = array<i64: 8, 128>}]} {
    %c0 = arith.constant 0 : index
    %c0_0 = arith.constant 0 : index
    %0 = vector.load %arg1[%c0, %c0_0] : memref<8x6272xf32, #tpu.memory_space<vmem>>, vector<8x6272xf32>
    %c0_1 = arith.constant 0 : index
    %c0_2 = arith.constant 0 : index
    %1 = vector.load %arg2[%c0_1, %c0_2] : memref<6272x128xbf16, #tpu.memory_space<vmem>>, vector<6272x128xbf16>
    %2 = arith.truncf %0 : vector<8x6272xf32> to vector<8x6272xbf16>
    %3 = arith.extf %2 : vector<8x6272xbf16> to vector<8x6272xf32>
    %4 = arith.subf %0, %3 : vector<8x6272xf32>
    %5 = arith.truncf %4 : vector<8x6272xf32> to vector<8x6272xbf16>
    %cst = arith.constant dense<0.000000e+00> : vector<8x128xf32>
    %6 = tpu.matmul %2, %1, %cst {dimension_numbers = #tpu.dot_dimension_numbers<[1], [0], [0], [1], [0, 0, 1, 1], [], []>} : vector<8x6272xbf16>, vector<6272x128xbf16>, vector<8x128xf32> -> vector<8x128xf32>
    %cst_3 = arith.constant dense<0.000000e+00> : vector<8x128xf32>
    %7 = tpu.matmul %5, %1, %cst_3 {dimension_numbers = #tpu.dot_dimension_numbers<[1], [0], [0], [1], [0, 0, 1, 1], [], []>} : vector<8x6272xbf16>, vector<6272x128xbf16>, vector<8x128xf32> -> vector<8x128xf32>
    %8 = arith.addf %6, %7 : vector<8x128xf32>
    %cst_4 = arith.constant 0.0204081628 : f32
    %9 = vector.broadcast %cst_4 : f32 to vector<8x128xf32>
    %10 = arith.mulf %8, %9 : vector<8x128xf32>
    %c0_5 = arith.constant 0 : index
    %c0_6 = arith.constant 0 : index
    %11 = vector.load %arg3[%c0_5, %c0_6] : memref<8x128xf32, #tpu.memory_space<vmem>>, vector<8x128xf32>
    tpu.vector_store %arg3[%c0_5, %c0_6], %10 {strides = array<i32>} : memref<8x128xf32, #tpu.memory_space<vmem>>, vector<8x128xf32>,
    return
  }
  func.func @transform_0(%arg0: i32) -> (i32, i32) {
    %c0_i32 = arith.constant 0 : i32
    %c0_i32_0 = arith.constant 0 : i32
    return %arg0, %c0_i32 : i32, i32
  }
  func.func @transform_1(%arg0: i32) -> (i32, i32) {
    %c0_i32 = arith.constant 0 : i32
    %c0_i32_0 = arith.constant 0 : i32
    %c0_i32_1 = arith.constant 0 : i32
    return %c0_i32, %c0_i32_0 : i32, i32
  }
  func.func @transform_2(%arg0: i32) -> (i32, i32) {
    %c0_i32 = arith.constant 0 : i32
    %c0_i32_0 = arith.constant 0 : i32
    return %arg0, %c0_i32 : i32, i32
  }
}

</mosaic_0001>

<llo_original>
// kernel: tpu_custom_call.1
$region0: #{tpu_custom_call.1}
  #allocation0 [shape = 'u32[]', space=smem, size = 0x4, offset = 0x4, fixed_abs, tag = 'smem constant byte address 0x4 - core index']
  #allocation1 [shape = 'u32[144,128]{1,0:T(1,128)}', space=vmem, size = 0x12000, scoped, tag = 'internal scratch']
  %s0 = inlined_call_operand.hbm [shape: f32[8,6272], index: 0, kind: input, shape index: {}]
  %s1 = inlined_call_operand.hbm [shape: bf16[6272,128], index: 1, kind: input, shape index: {}]
  %s2 = inlined_call_operand.hbm [shape: f32[8,128], index: 2, kind: output, shape index: {}]
  %s3 = sld [smem:[#allocation0]]
  $region26: #{tpu_custom_call.1} parent=0
    _
  %s5 = ssub.s32 1, %s3
  %s6 = scalar_select 0, %s5, %s3
  $region1: #{tpu_custom_call.1} parent=0
    #allocation2 [shape = 'u8[200704]{0}', space=vmem, size = 0x31000, scoped, tag = 'input window, operand 0, single buffered']
    #allocation3 [shape = 's32[1]{0}', space=sflag, size = 0x4, scoped, tag = 'scoped memory for tpu_custom_call.1']
    #allocation4 [shape = 's32[1]{0}', space=sflag, size = 0x4, scoped, tag = 'scoped memory for tpu_custom_call.1']
    #allocation5 [shape = 'u8[1605632]{0}', space=vmem, size = 0x188000, scoped, tag = 'input window, operand 1, single buffered']
    #allocation6 [shape = 's32[1]{0}', space=sflag, size = 0x4, scoped, tag = 'scoped memory for tpu_custom_call.1']
    #allocation7 [shape = 'u8[4096]{0}', space=vmem, size = 0x1000, scoped, tag = 'output window, operand 0, single buffered']
    %7 = vsyncpa [#allocation3], 0
    %8 = vsyncpa [#allocation6], 0
    %9 = vsyncpa [#allocation4], 0
    // Predicated region
    $region2: #{tpu_custom_call.1} parent=1 // pred_check
      _
    $region3: #{tpu_custom_call.1} parent=1 // pred_check_branch
      %11 = sbr.rel (0) target = $region5
    $region4: #{tpu_custom_call.1} parent=1 // pred_region
      %s13 = ssub.s32 6272, 6272
      %14 = vsyncadd [#allocation3], %s13
      %s16 = sshll.u32 [#allocation2], 4
      %s17 = int_to_ptr.vmem [resolvable:$true] %s16
      %19 = dma.hbm_to_vmem [thread:$0]  %s0, 6272, %s17, [#allocation3]
    $region5: #{tpu_custom_call.1} parent=1 // pred_fallthru
      _
    // Predicated region
    $region6: #{tpu_custom_call.1} parent=1 // pred_check
      _
    $region7: #{tpu_custom_call.1} parent=1 // pred_check_branch
      %21 = sbr.rel (0) target = $region9
    $region8: #{tpu_custom_call.1} parent=1 // pred_region
      %s23 = ssub.s32 50176, 50176
      %24 = vsyncadd [#allocation6], %s23
      %s25 = sshll.u32 [#allocation5], 4
      %s26 = int_to_ptr.vmem [resolvable:$true] %s25
      %31 = dma.hbm_to_vmem [thread:$0]  %s1, 50176, %s26, [#allocation6], 64, 64, 4
    $region9: #{tpu_custom_call.1} parent=1 // pred_fallthru
      _
    // Predicated region
    $region10: #{tpu_custom_call.1} parent=1 // pred_check
      _
    $region11: #{tpu_custom_call.1} parent=1 // pred_check_branch
      %33 = sbr.rel (0) target = $region13
    $region12: #{tpu_custom_call.1} parent=1 // pred_region
      %34 = dma.done [#allocation3], 6272
    $region13: #{tpu_custom_call.1} parent=1 // pred_fallthru
      _
    // Predicated region
    $region14: #{tpu_custom_call.1} parent=1 // pred_check
      _
    $region15: #{tpu_custom_call.1} parent=1 // pred_check_branch
      %36 = sbr.rel (0) target = $region17
    $region16: #{tpu_custom_call.1} parent=1 // pred_region
      %37 = dma.done [#allocation6], 50176
    $region17: #{tpu_custom_call.1} parent=1 // pred_fallthru
      _
    %v39 = vld [vmem:[#allocation2] sm:$0xff]
    %v40 = vld [vmem:[#allocation2 + $0x8] sm:$0xff]
    %v41 = vld [vmem:[#allocation2 + $0x10] sm:$0xff]
    %v42 = vld [vmem:[#allocation2 + $0x18] sm:$0xff]
    %v43 = vld [vmem:[#allocation2 + $0x20] sm:$0xff]
    %v44 = vld [vmem:[#allocation2 + $0x28] sm:$0xff]
    %v45 = vld [vmem:[#allocation2 + $0x30] sm:$0xff]
    %v46 = vld [vmem:[#allocation2 + $0x38] sm:$0xff]
    %v47 = vld [vmem:[#allocation2 + $0x40] sm:$0xff]
    %v48 = vld [vmem:[#allocation2 + $0x48] sm:$0xff]
    %v49 = vld [vmem:[#allocation2 + $0x50] sm:$0xff]
    %v50 = vld [vmem:[#allocation2 + $0x58] sm:$0xff]
    %v51 = vld [vmem:[#allocation2 + $0x60] sm:$0xff]
    %v52 = vld [vmem:[#allocation2 + $0x68] sm:$0xff]
    %v53 = vld [vmem:[#allocation2 + $0x70] sm:$0xff]
    %v54 = vld [vmem:[#allocation2 + $0x78] sm:$0xff]
    %v55 = vld [vmem:[#allocation2 + $0x80] sm:$0xff]
    %v56 = vld [vmem:[#allocation2 + $0x88] sm:$0xff]
    %v57 = vld [vmem:[#allocation2 + $0x90] sm:$0xff]
    %v58 = vld [vmem:[#allocation2 + $0x98] sm:$0xff]
    %v59 = vld [vmem:[#allocation2 + $0xa0] sm:$0xff]
    %v60 = vld [vmem:[#allocation2 + $0xa8] sm:$0xff]
    %v61 = vld [vmem:[#allocation2 + $0xb0] sm:$0xff]
    %v62 = vld [vmem:[#allocation2 + $0xb8] sm:$0xff]
    %v63 = vld [vmem:[#allocation2 + $0xc0] sm:$0xff]
    %v64 = vld [vmem:[#allocation2 + $0xc8] sm:$0xff]
    %v65 = vld [vmem:[#allocation2 + $0xd0] sm:$0xff]
    %v66 = vld [vmem:[#allocation2 + $0xd8] sm:$0xff]
    %v67 = vld [vmem:[#allocation2 + $0xe0] sm:$0xff]
    %v68 = vld [vmem:[#allocation2 + $0xe8] sm:$0xff]
    %v69 = vld [vmem:[#allocation2 + $0xf0] sm:$0xff]
    %v70 = vld [vmem:[#allocation2 + $0xf8] sm:$0xff]
    %v71 = vld [vmem:[#allocation2 + $0x100] sm:$0xff]
    %v72 = vld [vmem:[#allocation2 + $0x108] sm:$0xff]
    %v73 = vld [vmem:[#allocation2 + $0x110] sm:$0xff]
    %v74 = vld [vmem:[#allocation2 + $0x118] sm:$0xff]
    %v75 = vld [vmem:[#allocation2 + $0x120] sm:$0xff]
    %v76 = vld [vmem:[#allocation2 + $0x128] sm:$0xff]
    %v77 = vld [vmem:[#allocation2 + $0x130] sm:$0xff]
    %v78 = vld [vmem:[#allocation2 + $0x138] sm:$0xff]
    %v79 = vld [vmem:[#allocation2 + $0x140] sm:$0xff]
    %v80 = vld [vmem:[#allocation2 + $0x148] sm:$0xff]
    %v81 = vld [vmem:[#allocation2 + $0x150] sm:$0xff]
    %v82 = vld [vmem:[#allocation2 + $0x158] sm:$0xff]
    %v83 = vld [vmem:[#allocation2 + $0x160] sm:$0xff]
    %v84 = vld [vmem:[#allocation2 + $0x168] sm:$0xff]
    %v85 = vld [vmem:[#allocation2 + $0x170] sm:$0xff]
    %v86 = vld [vmem:[#allocation2 + $0x178] sm:$0xff]
    %v87 = vld [vmem:[#allocation2 + $0x180] sm:$0xff]
    %v88 = vld [vmem:[#allocation5] sm:$0xf]
    %v89 = vld [vmem:[#allocation5 + $0x4] sm:$0xf]
    %v90 = vld [vmem:[#allocation5 + $0x8] sm:$0xf]
    %v91 = vld [vmem:[#allocation5 + $0xc] sm:$0xf]
    %v92 = vld [vmem:[#allocation5 + $0x10] sm:$0xf]
    %v93 = vld [vmem:[#allocation5 + $0x14] sm:$0xf]
    %v94 = vld [vmem:[#allocation5 + $0x18] sm:$0xf]
    %v95 = vld [vmem:[#allocation5 + $0x1c] sm:$0xf]
    %v96 = vld [vmem:[#allocation5 + $0x20] sm:$0xf]
    %v97 = vld [vmem:[#allocation5 + $0x24] sm:$0xf]
    %v98 = vld [vmem:[#allocation5 + $0x28] sm:$0xf]
    %v99 = vld [vmem:[#allocation5 + $0x2c] sm:$0xf]
    %v100 = vld [vmem:[#allocation5 + $0x30] sm:$0xf]
    %v101 = vld [vmem:[#allocation5 + $0x34] sm:$0xf]
    %v102 = vld [vmem:[#allocation5 + $0x38] sm:$0xf]
    %v103 = vld [vmem:[#allocation5 + $0x3c] sm:$0xf]
    %v104 = vld [vmem:[#allocation5 + $0x40] sm:$0xf]
    %v105 = vld [vmem:[#allocation5 + $0x44] sm:$0xf]
    %v106 = vld [vmem:[#allocation5 + $0x48] sm:$0xf]
    %v107 = vld [vmem:[#allocation5 + $0x4c] sm:$0xf]
    %v108 = vld [vmem:[#allocation5 + $0x50] sm:$0xf]
    %v109 = vld [vmem:[#allocation5 + $0x54] sm:$0xf]
    %v110 = vld [vmem:[#allocation5 + $0x58] sm:$0xf]
    %v111 = vld [vmem:[#allocation5 + $0x5c] sm:$0xf]
    %v112 = vld [vmem:[#allocation5 + $0x60] sm:$0xf]
    %v113 = vld [vmem:[#allocation5 + $0x64] sm:$0xf]
    %v114 = vld [vmem:[#allocation5 + $0x68] sm:$0xf]
    %v115 = vld [vmem:[#allocation5 + $0x6c] sm:$0xf]
    %v116 = vld [vmem:[#allocation5 + $0x70] sm:$0xf]
    %v117 = vld [vmem:[#allocation5 + $0x74] sm:$0xf]
    %v118 = vld [vmem:[#allocation5 + $0x78] sm:$0xf]
    %v119 = vld [vmem:[#allocation5 + $0x7c] sm:$0xf]
    %v120 = vld [vmem:[#allocation5 + $0x80] sm:$0xf]
    %v121 = vld [vmem:[#allocation5 + $0x84] sm:$0xf]
    %v122 = vld [vmem:[#allocation5 + $0x88] sm:$0xf]
    %v123 = vld [vmem:[#allocation5 + $0x8c] sm:$0xf]
    %v124 = vld [vmem:[#allocation5 + $0x90] sm:$0xf]
    %v125 = vld [vmem:[#allocation5 + $0x94] sm:$0xf]
    %v126 = vld [vmem:[#allocation5 + $0x98] sm:$0xf]
    %v127 = vld [vmem:[#allocation5 + $0x9c] sm:$0xf]
    %v128 = vld [vmem:[#allocation5 + $0xa0] sm:$0xf]
    %v129 = vld [vmem:[#allocation5 + $0xa4] sm:$0xf]
    %v130 = vld [vmem:[#allocation5 + $0xa8] sm:$0xf]
    %v131 = vld [vmem:[#allocation5 + $0xac] sm:$0xf]
    %v132 = vld [vmem:[#allocation5 + $0xb0] sm:$0xf]
    %v133 = vld [vmem:[#allocation5 + $0xb4] sm:$0xf]
    %v134 = vld [vmem:[#allocation5 + $0xb8] sm:$0xf]
    %v135 = vld [vmem:[#allocation5 + $0xbc] sm:$0xf]
    %v136 = vld [vmem:[#allocation5 + $0xc0] sm:$0xf]
    %v137 = vld [vmem:[#allocation5 + $0xc4] sm:$0xf]
    %v138 = vld [vmem:[#allocation5 + $0xc8] sm:$0xf]
    %v139 = vld [vmem:[#allocation5 + $0xcc] sm:$0xf]
    %v140 = vld [vmem:[#allocation5 + $0xd0] sm:$0xf]
    %v141 = vld [vmem:[#allocation5 + $0xd4] sm:$0xf]
    %v142 = vld [vmem:[#allocation5 + $0xd8] sm:$0xf]
    %v143 = vld [vmem:[#allocation5 + $0xdc] sm:$0xf]
    %v144 = vld [vmem:[#allocation5 + $0xe0] sm:$0xf]
    %v145 = vld [vmem:[#allocation5 + $0xe4] sm:$0xf]
    %v146 = vld [vmem:[#allocation5 + $0xe8] sm:$0xf]
    %v147 = vld [vmem:[#allocation5 + $0xec] sm:$0xf]
    %v148 = vld [vmem:[#allocation5 + $0xf0] sm:$0xf]
    %v149 = vld [vmem:[#allocation5 + $0xf4] sm:$0xf]
    %v150 = vld [vmem:[#allocation5 + $0xf8] sm:$0xf]
    %v151 = vld [vmem:[#allocation5 + $0xfc] sm:$0xf]
    %v152 = vld [vmem:[#allocation5 + $0x100] sm:$0xf]
    %v153 = vld [vmem:[#allocation5 + $0x104] sm:$0xf]
    %v154 = vld [vmem:[#allocation5 + $0x108] sm:$0xf]
    %v155 = vld [vmem:[#allocation5 + $0x10c] sm:$0xf]
    %v156 = vld [vmem:[#allocation5 + $0x110] sm:$0xf]
    %v157 = vld [vmem:[#allocation5 + $0x114] sm:$0xf]
    %v158 = vld [vmem:[#allocation5 + $0x118] sm:$0xf]
    %v159 = vld [vmem:[#allocation5 + $0x11c] sm:$0xf]
    %v160 = vld [vmem:[#allocation5 + $0x120] sm:$0xf]
    %v161 = vld [vmem:[#allocation5 + $0x124] sm:$0xf]
    %v162 = vld [vmem:[#allocation5 + $0x128] sm:$0xf]
    %v163 = vld [vmem:[#allocation5 + $0x12c] sm:$0xf]
    %v164 = vld [vmem:[#allocation5 + $0x130] sm:$0xf]
    %v165 = vld [vmem:[#allocation5 + $0x134] sm:$0xf]
    %v166 = vld [vmem:[#allocation5 + $0x138] sm:$0xf]
    %v167 = vld [vmem:[#allocation5 + $0x13c] sm:$0xf]
    %v168 = vld [vmem:[#allocation5 + $0x140] sm:$0xf]
    %v169 = vld [vmem:[#allocation5 + $0x144] sm:$0xf]
    %v170 = vld [vmem:[#allocation5 + $0x148] sm:$0xf]
    %v171 = vld [vmem:[#allocation5 + $0x14c] sm:$0xf]
    %v172 = vld [vmem:[#allocation5 + $0x150] sm:$0xf]
    %v173 = vld [vmem:[#allocation5 + $0x154] sm:$0xf]
    %v174 = vld [vmem:[#allocation5 + $0x158] sm:$0xf]
    %v175 = vld [vmem:[#allocation5 + $0x15c] sm:$0xf]
    %v176 = vld [vmem:[#allocation5 + $0x160] sm:$0xf]
    %v177 = vld [vmem:[#allocation5 + $0x164] sm:$0xf]
    %v178 = vld [vmem:[#allocation5 + $0x168] sm:$0xf]
    %v179 = vld [vmem:[#allocation5 + $0x16c] sm:$0xf]
    %v180 = vld [vmem:[#allocation5 + $0x170] sm:$0xf]
    %v181 = vld [vmem:[#allocation5 + $0x174] sm:$0xf]
    %v182 = vld [vmem:[#allocation5 + $0x178] sm:$0xf]
    %v183 = vld [vmem:[#allocation5 + $0x17c] sm:$0xf]
    %v184 = vld [vmem:[#allocation5 + $0x180] sm:$0xf]
    %v185 = vld [vmem:[#allocation5 + $0x184] sm:$0xf]
    %v186 = vld [vmem:[#allocation5 + $0x188] sm:$0xf]
    %v187 = vld [vmem:[#allocation5 + $0x18c] sm:$0xf]
    %v188 = vld [vmem:[#allocation5 + $0x190] sm:$0xf]
    %v189 = vld [vmem:[#allocation5 + $0x194] sm:$0xf]
    %v190 = vld [vmem:[#allocation5 + $0x198] sm:$0xf]
    %v191 = vld [vmem:[#allocation5 + $0x19c] sm:$0xf]
    %v192 = vld [vmem:[#allocation5 + $0x1a0] sm:$0xf]
    %v193 = vld [vmem:[#allocation5 + $0x1a4] sm:$0xf]
    %v194 = vld [vmem:[#allocation5 + $0x1a8] sm:$0xf]
    %v195 = vld [vmem:[#allocation5 + $0x1ac] sm:$0xf]
    %v196 = vld [vmem:[#allocation5 + $0x1b0] sm:$0xf]
    %v197 = vld [vmem:[#allocation5 + $0x1b4] sm:$0xf]
    %v198 = vld [vmem:[#allocation5 + $0x1b8] sm:$0xf]
    %v199 = vld [vmem:[#allocation5 + $0x1bc] sm:$0xf]
    %v200 = vld [vmem:[#allocation5 + $0x1c0] sm:$0xf]
    %v201 = vld [vmem:[#allocation5 + $0x1c4] sm:$0xf]
    %v202 = vld [vmem:[#allocation5 + $0x1c8] sm:$0xf]
    %v203 = vld [vmem:[#allocation5 + $0x1cc] sm:$0xf]
    %v204 = vld [vmem:[#allocation5 + $0x1d0] sm:$0xf]
    %v205 = vld [vmem:[#allocation5 + $0x1d4] sm:$0xf]
    %v206 = vld [vmem:[#allocation5 + $0x1d8] sm:$0xf]
    %v207 = vld [vmem:[#allocation5 + $0x1dc] sm:$0xf]
    %v208 = vld [vmem:[#allocation5 + $0x1e0] sm:$0xf]
    %v209 = vld [vmem:[#allocation5 + $0x1e4] sm:$0xf]
    %v210 = vld [vmem:[#allocation5 + $0x1e8] sm:$0xf]
    %v211 = vld [vmem:[#allocation5 + $0x1ec] sm:$0xf]
    %v212 = vld [vmem:[#allocation5 + $0x1f0] sm:$0xf]
    %v213 = vld [vmem:[#allocation5 + $0x1f4] sm:$0xf]
    %v214 = vld [vmem:[#allocation5 + $0x1f8] sm:$0xf]
    %v215 = vld [vmem:[#allocation5 + $0x1fc] sm:$0xf]
    %v216 = vld [vmem:[#allocation5 + $0x200] sm:$0xf]
    %v217 = vld [vmem:[#allocation5 + $0x204] sm:$0xf]
    %v218 = vld [vmem:[#allocation5 + $0x208] sm:$0xf]
    %v219 = vld [vmem:[#allocation5 + $0x20c] sm:$0xf]
    %v220 = vld [vmem:[#allocation5 + $0x210] sm:$0xf]
    %v221 = vld [vmem:[#allocation5 + $0x214] sm:$0xf]
    %v222 = vld [vmem:[#allocation5 + $0x218] sm:$0xf]
    %v223 = vld [vmem:[#allocation5 + $0x21c] sm:$0xf]
    %v224 = vld [vmem:[#allocation5 + $0x220] sm:$0xf]
    %v225 = vld [vmem:[#allocation5 + $0x224] sm:$0xf]
    %v226 = vld [vmem:[#allocation5 + $0x228] sm:$0xf]
    %v227 = vld [vmem:[#allocation5 + $0x22c] sm:$0xf]
    %v228 = vld [vmem:[#allocation5 + $0x230] sm:$0xf]
    %v229 = vld [vmem:[#allocation5 + $0x234] sm:$0xf]
    %v230 = vld [vmem:[#allocation5 + $0x238] sm:$0xf]
    %v231 = vld [vmem:[#allocation5 + $0x23c] sm:$0xf]
    %v232 = vld [vmem:[#allocation5 + $0x240] sm:$0xf]
    %v233 = vld [vmem:[#allocation5 + $0x244] sm:$0xf]
    %v234 = vld [vmem:[#allocation5 + $0x248] sm:$0xf]
    %v235 = vld [vmem:[#allocation5 + $0x24c] sm:$0xf]
    %v236 = vld [vmem:[#allocation5 + $0x250] sm:$0xf]
    %v237 = vld [vmem:[#allocation5 + $0x254] sm:$0xf]
    %v238 = vld [vmem:[#allocation5 + $0x258] sm:$0xf]
    %v239 = vld [vmem:[#allocation5 + $0x25c] sm:$0xf]
    %v240 = vld [vmem:[#allocation5 + $0x260] sm:$0xf]
    %v241 = vld [vmem:[#allocation5 + $0x264] sm:$0xf]
    %v242 = vld [vmem:[#allocation5 + $0x268] sm:$0xf]
    %v243 = vld [vmem:[#allocation5 + $0x26c] sm:$0xf]
    %v244 = vld [vmem:[#allocation5 + $0x270] sm:$0xf]
    %v245 = vld [vmem:[#allocation5 + $0x274] sm:$0xf]
    %v246 = vld [vmem:[#allocation5 + $0x278] sm:$0xf]
    %v247 = vld [vmem:[#allocation5 + $0x27c] sm:$0xf]
    %v248 = vld [vmem:[#allocation5 + $0x280] sm:$0xf]
    %v249 = vld [vmem:[#allocation5 + $0x284] sm:$0xf]
    %v250 = vld [vmem:[#allocation5 + $0x288] sm:$0xf]
    %v251 = vld [vmem:[#allocation5 + $0x28c] sm:$0xf]
    %v252 = vld [vmem:[#allocation5 + $0x290] sm:$0xf]
    %v253 = vld [vmem:[#allocation5 + $0x294] sm:$0xf]
    %v254 = vld [vmem:[#allocation5 + $0x298] sm:$0xf]
    %v255 = vld [vmem:[#allocation5 + $0x29c] sm:$0xf]
    %v256 = vld [vmem:[#allocation5 + $0x2a0] sm:$0xf]
    %v257 = vld [vmem:[#allocation5 + $0x2a4] sm:$0xf]
    %v258 = vld [vmem:[#allocation5 + $0x2a8] sm:$0xf]
    %v259 = vld [vmem:[#allocation5 + $0x2ac] sm:$0xf]
    %v260 = vld [vmem:[#allocation5 + $0x2b0] sm:$0xf]
    %v261 = vld [vmem:[#allocation5 + $0x2b4] sm:$0xf]
    %v262 = vld [vmem:[#allocation5 + $0x2b8] sm:$0xf]
    %v263 = vld [vmem:[#allocation5 + $0x2bc] sm:$0xf]
    %v264 = vld [vmem:[#allocation5 + $0x2c0] sm:$0xf]
    %v265 = vld [vmem:[#allocation5 + $0x2c4] sm:$0xf]
    %v266 = vld [vmem:[#allocation5 + $0x2c8] sm:$0xf]
    %v267 = vld [vmem:[#allocation5 + $0x2cc] sm:$0xf]
    %v268 = vld [vmem:[#allocation5 + $0x2d0] sm:$0xf]
    %v269 = vld [vmem:[#allocation5 + $0x2d4] sm:$0xf]
    %v270 = vld [vmem:[#allocation5 + $0x2d8] sm:$0xf]
    %v271 = vld [vmem:[#allocation5 + $0x2dc] sm:$0xf]
    %v272 = vld [vmem:[#allocation5 + $0x2e0] sm:$0xf]
    %v273 = vld [vmem:[#allocation5 + $0x2e4] sm:$0xf]
    %v274 = vld [vmem:[#allocation5 + $0x2e8] sm:$0xf]
    %v275 = vld [vmem:[#allocation5 + $0x2ec] sm:$0xf]
    %v276 = vld [vmem:[#allocation5 + $0x2f0] sm:$0xf]
    %v277 = vld [vmem:[#allocation5 + $0x2f4] sm:$0xf]
    %v278 = vld [vmem:[#allocation5 + $0x2f8] sm:$0xf]
    %v279 = vld [vmem:[#allocation5 + $0x2fc] sm:$0xf]
    %v280 = vld [vmem:[#allocation5 + $0x300] sm:$0xf]
    %v281 = vld [vmem:[#allocation5 + $0x304] sm:$0xf]
    %v282 = vld [vmem:[#allocation5 + $0x308] sm:$0xf]
    %v283 = vld [vmem:[#allocation5 + $0x30c] sm:$0xf]
    %v284 = vld [vmem:[#allocation5 + $0x310] sm:$0xf]
    %v285 = vld [vmem:[#allocation5 + $0x314] sm:$0xf]
    %v286 = vld [vmem:[#allocation5 + $0x318] sm:$0xf]
    %v287 = vld [vmem:[#allocation5 + $0x31c] sm:$0xf]
    %v288 = vld [vmem:[#allocation5 + $0x320] sm:$0xf]
    %v289 = vld [vmem:[#allocation5 + $0x324] sm:$0xf]
    %v290 = vld [vmem:[#allocation5 + $0x328] sm:$0xf]
    %v291 = vld [vmem:[#allocation5 + $0x32c] sm:$0xf]
    %v292 = vld [vmem:[#allocation5 + $0x330] sm:$0xf]
    %v293 = vld [vmem:[#allocation5 + $0x334] sm:$0xf]
    %v294 = vld [vmem:[#allocation5 + $0x338] sm:$0xf]
    %v295 = vld [vmem:[#allocation5 + $0x33c] sm:$0xf]
    %v296 = vld [vmem:[#allocation5 + $0x340] sm:$0xf]
    %v297 = vld [vmem:[#allocation5 + $0x344] sm:$0xf]
    %v298 = vld [vmem:[#allocation5 + $0x348] sm:$0xf]
    %v299 = vld [vmem:[#allocation5 + $0x34c] sm:$0xf]
    %v300 = vld [vmem:[#allocation5 + $0x350] sm:$0xf]
    %v301 = vld [vmem:[#allocation5 + $0x354] sm:$0xf]
    %v302 = vld [vmem:[#allocation5 + $0x358] sm:$0xf]
    %v303 = vld [vmem:[#allocation5 + $0x35c] sm:$0xf]
    %v304 = vld [vmem:[#allocation5 + $0x360] sm:$0xf]
    %v305 = vld [vmem:[#allocation5 + $0x364] sm:$0xf]
    %v306 = vld [vmem:[#allocation5 + $0x368] sm:$0xf]
    %v307 = vld [vmem:[#allocation5 + $0x36c] sm:$0xf]
    %v308 = vld [vmem:[#allocation5 + $0x370] sm:$0xf]
    %v309 = vld [vmem:[#allocation5 + $0x374] sm:$0xf]
    %v310 = vld [vmem:[#allocation5 + $0x378] sm:$0xf]
    %v311 = vld [vmem:[#allocation5 + $0x37c] sm:$0xf]
    %v312 = vld [vmem:[#allocation5 + $0x380] sm:$0xf]
    %v313 = vld [vmem:[#allocation5 + $0x384] sm:$0xf]
    %v314 = vld [vmem:[#allocation5 + $0x388] sm:$0xf]
    %v315 = vld [vmem:[#allocation5 + $0x38c] sm:$0xf]
    %v316 = vld [vmem:[#allocation5 + $0x390] sm:$0xf]
    %v317 = vld [vmem:[#allocation5 + $0x394] sm:$0xf]
    %v318 = vld [vmem:[#allocation5 + $0x398] sm:$0xf]
    %v319 = vld [vmem:[#allocation5 + $0x39c] sm:$0xf]
    %v320 = vld [vmem:[#allocation5 + $0x3a0] sm:$0xf]
    %v321 = vld [vmem:[#allocation5 + $0x3a4] sm:$0xf]
    %v322 = vld [vmem:[#allocation5 + $0x3a8] sm:$0xf]
    %v323 = vld [vmem:[#allocation5 + $0x3ac] sm:$0xf]
    %v324 = vld [vmem:[#allocation5 + $0x3b0] sm:$0xf]
    %v325 = vld [vmem:[#allocation5 + $0x3b4] sm:$0xf]
    %v326 = vld [vmem:[#allocation5 + $0x3b8] sm:$0xf]
    %v327 = vld [vmem:[#allocation5 + $0x3bc] sm:$0xf]
    %v328 = vld [vmem:[#allocation5 + $0x3c0] sm:$0xf]
    %v329 = vld [vmem:[#allocation5 + $0x3c4] sm:$0xf]
    %v330 = vld [vmem:[#allocation5 + $0x3c8] sm:$0xf]
    %v331 = vld [vmem:[#allocation5 + $0x3cc] sm:$0xf]
    %v332 = vld [vmem:[#allocation5 + $0x3d0] sm:$0xf]
    %v333 = vld [vmem:[#allocation5 + $0x3d4] sm:$0xf]
    %v334 = vld [vmem:[#allocation5 + $0x3d8] sm:$0xf]
    %v335 = vld [vmem:[#allocation5 + $0x3dc] sm:$0xf]
    %v336 = vld [vmem:[#allocation5 + $0x3e0] sm:$0xf]
    %v337 = vld [vmem:[#allocation5 + $0x3e4] sm:$0xf]
    %v338 = vld [vmem:[#allocation5 + $0x3e8] sm:$0xf]
    %v339 = vld [vmem:[#allocation5 + $0x3ec] sm:$0xf]
    %v340 = vld [vmem:[#allocation5 + $0x3f0] sm:$0xf]
    %v341 = vld [vmem:[#allocation5 + $0x3f4] sm:$0xf]
    %v342 = vld [vmem:[#allocation5 + $0x3f8] sm:$0xf]
    %v343 = vld [vmem:[#allocation5 + $0x3fc] sm:$0xf]
    %v344 = vld [vmem:[#allocation5 + $0x400] sm:$0xf]
    %v345 = vld [vmem:[#allocation5 + $0x404] sm:$0xf]
    %v346 = vld [vmem:[#allocation5 + $0x408] sm:$0xf]
    %v347 = vld [vmem:[#allocation5 + $0x40c] sm:$0xf]
    %v348 = vld [vmem:[#allocation5 + $0x410] sm:$0xf]
    %v349 = vld [vmem:[#allocation5 + $0x414] sm:$0xf]
    %v350 = vld [vmem:[#allocation5 + $0x418] sm:$0xf]
    %v351 = vld [vmem:[#allocation5 + $0x41c] sm:$0xf]
    %v352 = vld [vmem:[#allocation5 + $0x420] sm:$0xf]
    %v353 = vld [vmem:[#allocation5 + $0x424] sm:$0xf]
    %v354 = vld [vmem:[#allocation5 + $0x428] sm:$0xf]
    %v355 = vld [vmem:[#allocation5 + $0x42c] sm:$0xf]
    %v356 = vld [vmem:[#allocation5 + $0x430] sm:$0xf]
    %v357 = vld [vmem:[#allocation5 + $0x434] sm:$0xf]
    %v358 = vld [vmem:[#allocation5 + $0x438] sm:$0xf]
    %v359 = vld [vmem:[#allocation5 + $0x43c] sm:$0xf]
    %v360 = vld [vmem:[#allocation5 + $0x440] sm:$0xf]
    %v361 = vld [vmem:[#allocation5 + $0x444] sm:$0xf]
    %v362 = vld [vmem:[#allocation5 + $0x448] sm:$0xf]
    %v363 = vld [vmem:[#allocation5 + $0x44c] sm:$0xf]
    %v364 = vld [vmem:[#allocation5 + $0x450] sm:$0xf]
    %v365 = vld [vmem:[#allocation5 + $0x454] sm:$0xf]
    %v366 = vld [vmem:[#allocation5 + $0x458] sm:$0xf]
    %v367 = vld [vmem:[#allocation5 + $0x45c] sm:$0xf]
    %v368 = vld [vmem:[#allocation5 + $0x460] sm:$0xf]
    %v369 = vld [vmem:[#allocation5 + $0x464] sm:$0xf]
    %v370 = vld [vmem:[#allocation5 + $0x468] sm:$0xf]
    %v371 = vld [vmem:[#allocation5 + $0x46c] sm:$0xf]
    %v372 = vld [vmem:[#allocation5 + $0x470] sm:$0xf]
    %v373 = vld [vmem:[#allocation5 + $0x474] sm:$0xf]
    %v374 = vld [vmem:[#allocation5 + $0x478] sm:$0xf]
    %v375 = vld [vmem:[#allocation5 + $0x47c] sm:$0xf]
    %v376 = vld [vmem:[#allocation5 + $0x480] sm:$0xf]
    %v377 = vld [vmem:[#allocation5 + $0x484] sm:$0xf]
    %v378 = vld [vmem:[#allocation5 + $0x488] sm:$0xf]
    %v379 = vld [vmem:[#allocation5 + $0x48c] sm:$0xf]
    %v380 = vld [vmem:[#allocation5 + $0x490] sm:$0xf]
    %v381 = vld [vmem:[#allocation5 + $0x494] sm:$0xf]
    %v382 = vld [vmem:[#allocation5 + $0x498] sm:$0xf]
    %v383 = vld [vmem:[#allocation5 + $0x49c] sm:$0xf]
    %v384 = vld [vmem:[#allocation5 + $0x4a0] sm:$0xf]
    %v385 = vld [vmem:[#allocation5 + $0x4a4] sm:$0xf]
    %v386 = vld [vmem:[#allocation5 + $0x4a8] sm:$0xf]
    %v387 = vld [vmem:[#allocation5 + $0x4ac] sm:$0xf]
    %v388 = vld [vmem:[#allocation5 + $0x4b0] sm:$0xf]
    %v389 = vld [vmem:[#allocation5 + $0x4b4] sm:$0xf]
    %v390 = vld [vmem:[#allocation5 + $0x4b8] sm:$0xf]
    %v391 = vld [vmem:[#allocation5 + $0x4bc] sm:$0xf]
    %v392 = vld [vmem:[#allocation5 + $0x4c0] sm:$0xf]
    %v393 = vld [vmem:[#allocation5 + $0x4c4] sm:$0xf]
    %v394 = vld [vmem:[#allocation5 + $0x4c8] sm:$0xf]
    %v395 = vld [vmem:[#allocation5 + $0x4cc] sm:$0xf]
    %v396 = vld [vmem:[#allocation5 + $0x4d0] sm:$0xf]
    %v397 = vld [vmem:[#allocation5 + $0x4d4] sm:$0xf]
    %v398 = vld [vmem:[#allocation5 + $0x4d8] sm:$0xf]
    %v399 = vld [vmem:[#allocation5 + $0x4dc] sm:$0xf]
    %v400 = vld [vmem:[#allocation5 + $0x4e0] sm:$0xf]
    %v401 = vld [vmem:[#allocation5 + $0x4e4] sm:$0xf]
    %v402 = vld [vmem:[#allocation5 + $0x4e8] sm:$0xf]
    %v403 = vld [vmem:[#allocation5 + $0x4ec] sm:$0xf]
    %v404 = vld [vmem:[#allocation5 + $0x4f0] sm:$0xf]
    %v405 = vld [vmem:[#allocation5 + $0x4f4] sm:$0xf]
    %v406 = vld [vmem:[#allocation5 + $0x4f8] sm:$0xf]
    %v407 = vld [vmem:[#allocation5 + $0x4fc] sm:$0xf]
    %v408 = vld [vmem:[#allocation5 + $0x500] sm:$0xf]
    %v409 = vld [vmem:[#allocation5 + $0x504] sm:$0xf]
    %v410 = vld [vmem:[#allocation5 + $0x508] sm:$0xf]
    %v411 = vld [vmem:[#allocation5 + $0x50c] sm:$0xf]
    %v412 = vld [vmem:[#allocation5 + $0x510] sm:$0xf]
    %v413 = vld [vmem:[#allocation5 + $0x514] sm:$0xf]
    %v414 = vld [vmem:[#allocation5 + $0x518] sm:$0xf]
    %v415 = vld [vmem:[#allocation5 + $0x51c] sm:$0xf]
    %v416 = vld [vmem:[#allocation5 + $0x520] sm:$0xf]
    %v417 = vld [vmem:[#allocation5 + $0x524] sm:$0xf]
    %v418 = vld [vmem:[#allocation5 + $0x528] sm:$0xf]
    %v419 = vld [vmem:[#allocation5 + $0x52c] sm:$0xf]
    %v420 = vld [vmem:[#allocation5 + $0x530] sm:$0xf]
    %v421 = vld [vmem:[#allocation5 + $0x534] sm:$0xf]
    %v422 = vld [vmem:[#allocation5 + $0x538] sm:$0xf]
    %v423 = vld [vmem:[#allocation5 + $0x53c] sm:$0xf]
    %v424 = vld [vmem:[#allocation5 + $0x540] sm:$0xf]
    %v425 = vld [vmem:[#allocation5 + $0x544] sm:$0xf]
    %v426 = vld [vmem:[#allocation5 + $0x548] sm:$0xf]
    %v427 = vld [vmem:[#allocation5 + $0x54c] sm:$0xf]
    %v428 = vld [vmem:[#allocation5 + $0x550] sm:$0xf]
    %v429 = vld [vmem:[#allocation5 + $0x554] sm:$0xf]
    %v430 = vld [vmem:[#allocation5 + $0x558] sm:$0xf]
    %v431 = vld [vmem:[#allocation5 + $0x55c] sm:$0xf]
    %v432 = vld [vmem:[#allocation5 + $0x560] sm:$0xf]
    %v433 = vld [vmem:[#allocation5 + $0x564] sm:$0xf]
    %v434 = vld [vmem:[#allocation5 + $0x568] sm:$0xf]
    %v435 = vld [vmem:[#allocation5 + $0x56c] sm:$0xf]
    %v436 = vld [vmem:[#allocation5 + $0x570] sm:$0xf]
    %v437 = vld [vmem:[#allocation5 + $0x574] sm:$0xf]
    %v438 = vld [vmem:[#allocation5 + $0x578] sm:$0xf]
    %v439 = vld [vmem:[#allocation5 + $0x57c] sm:$0xf]
    %v440 = vld [vmem:[#allocation5 + $0x580] sm:$0xf]
    %v441 = vld [vmem:[#allocation5 + $0x584] sm:$0xf]
    %v442 = vld [vmem:[#allocation5 + $0x588] sm:$0xf]
    %v443 = vld [vmem:[#allocation5 + $0x58c] sm:$0xf]
    %v444 = vld [vmem:[#allocation5 + $0x590] sm:$0xf]
    %v445 = vld [vmem:[#allocation5 + $0x594] sm:$0xf]
    %v446 = vld [vmem:[#allocation5 + $0x598] sm:$0xf]
    %v447 = vld [vmem:[#allocation5 + $0x59c] sm:$0xf]
    %v448 = vld [vmem:[#allocation5 + $0x5a0] sm:$0xf]
    %v449 = vld [vmem:[#allocation5 + $0x5a4] sm:$0xf]
    %v450 = vld [vmem:[#allocation5 + $0x5a8] sm:$0xf]
    %v451 = vld [vmem:[#allocation5 + $0x5ac] sm:$0xf]
    %v452 = vld [vmem:[#allocation5 + $0x5b0] sm:$0xf]
    %v453 = vld [vmem:[#allocation5 + $0x5b4] sm:$0xf]
    %v454 = vld [vmem:[#allocation5 + $0x5b8] sm:$0xf]
    %v455 = vld [vmem:[#allocation5 + $0x5bc] sm:$0xf]
    %v456 = vld [vmem:[#allocation5 + $0x5c0] sm:$0xf]
    %v457 = vld [vmem:[#allocation5 + $0x5c4] sm:$0xf]
    %v458 = vld [vmem:[#allocation5 + $0x5c8] sm:$0xf]
    %v459 = vld [vmem:[#allocation5 + $0x5cc] sm:$0xf]
    %v460 = vld [vmem:[#allocation5 + $0x5d0] sm:$0xf]
    %v461 = vld [vmem:[#allocation5 + $0x5d4] sm:$0xf]
    %v462 = vld [vmem:[#allocation5 + $0x5d8] sm:$0xf]
    %v463 = vld [vmem:[#allocation5 + $0x5dc] sm:$0xf]
    %v464 = vld [vmem:[#allocation5 + $0x5e0] sm:$0xf]
    %v465 = vld [vmem:[#allocation5 + $0x5e4] sm:$0xf]
    %v466 = vld [vmem:[#allocation5 + $0x5e8] sm:$0xf]
    %v467 = vld [vmem:[#allocation5 + $0x5ec] sm:$0xf]
    %v468 = vld [vmem:[#allocation5 + $0x5f0] sm:$0xf]
    %v469 = vld [vmem:[#allocation5 + $0x5f4] sm:$0xf]
    %v470 = vld [vmem:[#allocation5 + $0x5f8] sm:$0xf]
    %v471 = vld [vmem:[#allocation5 + $0x5fc] sm:$0xf]
    %v472 = vld [vmem:[#allocation5 + $0x600] sm:$0xf]
    %v473 = vld [vmem:[#allocation5 + $0x604] sm:$0xf]
    %v474 = vld [vmem:[#allocation5 + $0x608] sm:$0xf]
    %v475 = vld [vmem:[#allocation5 + $0x60c] sm:$0xf]
    %v476 = vld [vmem:[#allocation5 + $0x610] sm:$0xf]
    %v477 = vld [vmem:[#allocation5 + $0x614] sm:$0xf]
    %v478 = vld [vmem:[#allocation5 + $0x618] sm:$0xf]
    %v479 = vld [vmem:[#allocation5 + $0x61c] sm:$0xf]
    %v480 = vld [vmem:[#allocation5 + $0x620] sm:$0xf]
    %v481 = vld [vmem:[#allocation5 + $0x624] sm:$0xf]
    %v482 = vld [vmem:[#allocation5 + $0x628] sm:$0xf]
    %v483 = vld [vmem:[#allocation5 + $0x62c] sm:$0xf]
    %v484 = vld [vmem:[#allocation5 + $0x630] sm:$0xf]
    %v485 = vld [vmem:[#allocation5 + $0x634] sm:$0xf]
    %v486 = vld [vmem:[#allocation5 + $0x638] sm:$0xf]
    %v487 = vld [vmem:[#allocation5 + $0x63c] sm:$0xf]
    %v488 = vld [vmem:[#allocation5 + $0x640] sm:$0xf]
    %v489 = vld [vmem:[#allocation5 + $0x644] sm:$0xf]
    %v490 = vld [vmem:[#allocation5 + $0x648] sm:$0xf]
    %v491 = vld [vmem:[#allocation5 + $0x64c] sm:$0xf]
    %v492 = vld [vmem:[#allocation5 + $0x650] sm:$0xf]
    %v493 = vld [vmem:[#allocation5 + $0x654] sm:$0xf]
    %v494 = vld [vmem:[#allocation5 + $0x658] sm:$0xf]
    %v495 = vld [vmem:[#allocation5 + $0x65c] sm:$0xf]
    %v496 = vld [vmem:[#allocation5 + $0x660] sm:$0xf]
    %v497 = vld [vmem:[#allocation5 + $0x664] sm:$0xf]
    %v498 = vld [vmem:[#allocation5 + $0x668] sm:$0xf]
    %v499 = vld [vmem:[#allocation5 + $0x66c] sm:$0xf]
    %v500 = vld [vmem:[#allocation5 + $0x670] sm:$0xf]
    %v501 = vld [vmem:[#allocation5 + $0x674] sm:$0xf]
    %v502 = vld [vmem:[#allocation5 + $0x678] sm:$0xf]
    %v503 = vld [vmem:[#allocation5 + $0x67c] sm:$0xf]
    %v504 = vld [vmem:[#allocation5 + $0x680] sm:$0xf]
    %v505 = vld [vmem:[#allocation5 + $0x684] sm:$0xf]
    %v506 = vld [vmem:[#allocation5 + $0x688] sm:$0xf]
    %v507 = vld [vmem:[#allocation5 + $0x68c] sm:$0xf]
    %v508 = vld [vmem:[#allocation5 + $0x690] sm:$0xf]
    %v509 = vld [vmem:[#allocation5 + $0x694] sm:$0xf]
    %v510 = vld [vmem:[#allocation5 + $0x698] sm:$0xf]
    %v511 = vld [vmem:[#allocation5 + $0x69c] sm:$0xf]
    %v512 = vld [vmem:[#allocation5 + $0x6a0] sm:$0xf]
    %v513 = vld [vmem:[#allocation5 + $0x6a4] sm:$0xf]
    %v514 = vld [vmem:[#allocation5 + $0x6a8] sm:$0xf]
    %v515 = vld [vmem:[#allocation5 + $0x6ac] sm:$0xf]
    %v516 = vld [vmem:[#allocation5 + $0x6b0] sm:$0xf]
    %v517 = vld [vmem:[#allocation5 + $0x6b4] sm:$0xf]
    %v518 = vld [vmem:[#allocation5 + $0x6b8] sm:$0xf]
    %v519 = vld [vmem:[#allocation5 + $0x6bc] sm:$0xf]
    %v520 = vld [vmem:[#allocation5 + $0x6c0] sm:$0xf]
    %v521 = vld [vmem:[#allocation5 + $0x6c4] sm:$0xf]
    %v522 = vld [vmem:[#allocation5 + $0x6c8] sm:$0xf]
    %v523 = vld [vmem:[#allocation5 + $0x6cc] sm:$0xf]
    %v524 = vld [vmem:[#allocation5 + $0x6d0] sm:$0xf]
    %v525 = vld [vmem:[#allocation5 + $0x6d4] sm:$0xf]
    %v526 = vld [vmem:[#allocation5 + $0x6d8] sm:$0xf]
    %v527 = vld [vmem:[#allocation5 + $0x6dc] sm:$0xf]
    %v528 = vld [vmem:[#allocation5 + $0x6e0] sm:$0xf]
    %v529 = vld [vmem:[#allocation5 + $0x6e4] sm:$0xf]
    %v530 = vld [vmem:[#allocation5 + $0x6e8] sm:$0xf]
    %v531 = vld [vmem:[#allocation5 + $0x6ec] sm:$0xf]
    %v532 = vld [vmem:[#allocation5 + $0x6f0] sm:$0xf]
    %v533 = vld [vmem:[#allocation5 + $0x6f4] sm:$0xf]
    %v534 = vld [vmem:[#allocation5 + $0x6f8] sm:$0xf]
    %v535 = vld [vmem:[#allocation5 + $0x6fc] sm:$0xf]
    %v536 = vld [vmem:[#allocation5 + $0x700] sm:$0xf]
    %v537 = vld [vmem:[#allocation5 + $0x704] sm:$0xf]
    %v538 = vld [vmem:[#allocation5 + $0x708] sm:$0xf]
    %v539 = vld [vmem:[#allocation5 + $0x70c] sm:$0xf]
    %v540 = vld [vmem:[#allocation5 + $0x710] sm:$0xf]
    %v541 = vld [vmem:[#allocation5 + $0x714] sm:$0xf]
    %v542 = vld [vmem:[#allocation5 + $0x718] sm:$0xf]
    %v543 = vld [vmem:[#allocation5 + $0x71c] sm:$0xf]
    %v544 = vld [vmem:[#allocation5 + $0x720] sm:$0xf]
    %v545 = vld [vmem:[#allocation5 + $0x724] sm:$0xf]
    %v546 = vld [vmem:[#allocation5 + $0x728] sm:$0xf]
    %v547 = vld [vmem:[#allocation5 + $0x72c] sm:$0xf]
    %v548 = vld [vmem:[#allocation5 + $0x730] sm:$0xf]
    %v549 = vld [vmem:[#allocation5 + $0x734] sm:$0xf]
    %v550 = vld [vmem:[#allocation5 + $0x738] sm:$0xf]
    %v551 = vld [vmem:[#allocation5 + $0x73c] sm:$0xf]
    %v552 = vld [vmem:[#allocation5 + $0x740] sm:$0xf]
    %v553 = vld [vmem:[#allocation5 + $0x744] sm:$0xf]
    %v554 = vld [vmem:[#allocation5 + $0x748] sm:$0xf]
    %v555 = vld [vmem:[#allocation5 + $0x74c] sm:$0xf]
    %v556 = vld [vmem:[#allocation5 + $0x750] sm:$0xf]
    %v557 = vld [vmem:[#allocation5 + $0x754] sm:$0xf]
    %v558 = vld [vmem:[#allocation5 + $0x758] sm:$0xf]
    %v559 = vld [vmem:[#allocation5 + $0x75c] sm:$0xf]
    %v560 = vld [vmem:[#allocation5 + $0x760] sm:$0xf]
    %v561 = vld [vmem:[#allocation5 + $0x764] sm:$0xf]
    %v562 = vld [vmem:[#allocation5 + $0x768] sm:$0xf]
    %v563 = vld [vmem:[#allocation5 + $0x76c] sm:$0xf]
    %v564 = vld [vmem:[#allocation5 + $0x770] sm:$0xf]
    %v565 = vld [vmem:[#allocation5 + $0x774] sm:$0xf]
    %v566 = vld [vmem:[#allocation5 + $0x778] sm:$0xf]
    %v567 = vld [vmem:[#allocation5 + $0x77c] sm:$0xf]
    %v568 = vld [vmem:[#allocation5 + $0x780] sm:$0xf]
    %v569 = vld [vmem:[#allocation5 + $0x784] sm:$0xf]
    %v570 = vld [vmem:[#allocation5 + $0x788] sm:$0xf]
    %v571 = vld [vmem:[#allocation5 + $0x78c] sm:$0xf]
    %v572 = vld [vmem:[#allocation5 + $0x790] sm:$0xf]
    %v573 = vld [vmem:[#allocation5 + $0x794] sm:$0xf]
    %v574 = vld [vmem:[#allocation5 + $0x798] sm:$0xf]
    %v575 = vld [vmem:[#allocation5 + $0x79c] sm:$0xf]
    %v576 = vld [vmem:[#allocation5 + $0x7a0] sm:$0xf]
    %v577 = vld [vmem:[#allocation5 + $0x7a4] sm:$0xf]
    %v578 = vld [vmem:[#allocation5 + $0x7a8] sm:$0xf]
    %v579 = vld [vmem:[#allocation5 + $0x7ac] sm:$0xf]
    %v580 = vld [vmem:[#allocation5 + $0x7b0] sm:$0xf]
    %v581 = vld [vmem:[#allocation5 + $0x7b4] sm:$0xf]
    %v582 = vld [vmem:[#allocation5 + $0x7b8] sm:$0xf]
    %v583 = vld [vmem:[#allocation5 + $0x7bc] sm:$0xf]
    %v584 = vld [vmem:[#allocation5 + $0x7c0] sm:$0xf]
    %v585 = vld [vmem:[#allocation5 + $0x7c4] sm:$0xf]
    %v586 = vld [vmem:[#allocation5 + $0x7c8] sm:$0xf]
    %v587 = vld [vmem:[#allocation5 + $0x7cc] sm:$0xf]
    %v588 = vld [vmem:[#allocation5 + $0x7d0] sm:$0xf]
    %v589 = vld [vmem:[#allocation5 + $0x7d4] sm:$0xf]
    %v590 = vld [vmem:[#allocation5 + $0x7d8] sm:$0xf]
    %v591 = vld [vmem:[#allocation5 + $0x7dc] sm:$0xf]
    %v592 = vld [vmem:[#allocation5 + $0x7e0] sm:$0xf]
    %v593 = vld [vmem:[#allocation5 + $0x7e4] sm:$0xf]
    %v594 = vld [vmem:[#allocation5 + $0x7e8] sm:$0xf]
    %v595 = vld [vmem:[#allocation5 + $0x7ec] sm:$0xf]
    %v596 = vld [vmem:[#allocation5 + $0x7f0] sm:$0xf]
    %v597 = vld [vmem:[#allocation5 + $0x7f4] sm:$0xf]
    %v598 = vld [vmem:[#allocation5 + $0x7f8] sm:$0xf]
    %v599 = vld [vmem:[#allocation5 + $0x7fc] sm:$0xf]
    %v600 = vld [vmem:[#allocation5 + $0x800] sm:$0xf]
    %v601 = vld [vmem:[#allocation5 + $0x804] sm:$0xf]
    %v602 = vld [vmem:[#allocation5 + $0x808] sm:$0xf]
    %v603 = vld [vmem:[#allocation5 + $0x80c] sm:$0xf]
    %v604 = vld [vmem:[#allocation5 + $0x810] sm:$0xf]
    %v605 = vld [vmem:[#allocation5 + $0x814] sm:$0xf]
    %v606 = vld [vmem:[#allocation5 + $0x818] sm:$0xf]
    %v607 = vld [vmem:[#allocation5 + $0x81c] sm:$0xf]
    %v608 = vld [vmem:[#allocation5 + $0x820] sm:$0xf]
    %v609 = vld [vmem:[#allocation5 + $0x824] sm:$0xf]
    %v610 = vld [vmem:[#allocation5 + $0x828] sm:$0xf]
    %v611 = vld [vmem:[#allocation5 + $0x82c] sm:$0xf]
    %v612 = vld [vmem:[#allocation5 + $0x830] sm:$0xf]
    %v613 = vld [vmem:[#allocation5 + $0x834] sm:$0xf]
    %v614 = vld [vmem:[#allocation5 + $0x838] sm:$0xf]
    %v615 = vld [vmem:[#allocation5 + $0x83c] sm:$0xf]
    %v616 = vld [vmem:[#allocation5 + $0x840] sm:$0xf]
    %v617 = vld [vmem:[#allocation5 + $0x844] sm:$0xf]
    %v618 = vld [vmem:[#allocation5 + $0x848] sm:$0xf]
    %v619 = vld [vmem:[#allocation5 + $0x84c] sm:$0xf]
    %v620 = vld [vmem:[#allocation5 + $0x850] sm:$0xf]
    %v621 = vld [vmem:[#allocation5 + $0x854] sm:$0xf]
    %v622 = vld [vmem:[#allocation5 + $0x858] sm:$0xf]
    %v623 = vld [vmem:[#allocation5 + $0x85c] sm:$0xf]
    %v624 = vld [vmem:[#allocation5 + $0x860] sm:$0xf]
    %v625 = vld [vmem:[#allocation5 + $0x864] sm:$0xf]
    %v626 = vld [vmem:[#allocation5 + $0x868] sm:$0xf]
    %v627 = vld [vmem:[#allocation5 + $0x86c] sm:$0xf]
    %v628 = vld [vmem:[#allocation5 + $0x870] sm:$0xf]
    %v629 = vld [vmem:[#allocation5 + $0x874] sm:$0xf]
    %v630 = vld [vmem:[#allocation5 + $0x878] sm:$0xf]
    %v631 = vld [vmem:[#allocation5 + $0x87c] sm:$0xf]
    %v632 = vld [vmem:[#allocation5 + $0x880] sm:$0xf]
    %v633 = vld [vmem:[#allocation5 + $0x884] sm:$0xf]
    %v634 = vld [vmem:[#allocation5 + $0x888] sm:$0xf]
    %v635 = vld [vmem:[#allocation5 + $0x88c] sm:$0xf]
    %v636 = vld [vmem:[#allocation5 + $0x890] sm:$0xf]
    %v637 = vld [vmem:[#allocation5 + $0x894] sm:$0xf]
    %v638 = vld [vmem:[#allocation5 + $0x898] sm:$0xf]
    %v639 = vld [vmem:[#allocation5 + $0x89c] sm:$0xf]
    %v640 = vld [vmem:[#allocation5 + $0x8a0] sm:$0xf]
    %v641 = vld [vmem:[#allocation5 + $0x8a4] sm:$0xf]
    %v642 = vld [vmem:[#allocation5 + $0x8a8] sm:$0xf]
    %v643 = vld [vmem:[#allocation5 + $0x8ac] sm:$0xf]
    %v644 = vld [vmem:[#allocation5 + $0x8b0] sm:$0xf]
    %v645 = vld [vmem:[#allocation5 + $0x8b4] sm:$0xf]
    %v646 = vld [vmem:[#allocation5 + $0x8b8] sm:$0xf]
    %v647 = vld [vmem:[#allocation5 + $0x8bc] sm:$0xf]
    %v648 = vld [vmem:[#allocation5 + $0x8c0] sm:$0xf]
    %v649 = vld [vmem:[#allocation5 + $0x8c4] sm:$0xf]
    %v650 = vld [vmem:[#allocation5 + $0x8c8] sm:$0xf]
    %v651 = vld [vmem:[#allocation5 + $0x8cc] sm:$0xf]
    %v652 = vld [vmem:[#allocation5 + $0x8d0] sm:$0xf]
    %v653 = vld [vmem:[#allocation5 + $0x8d4] sm:$0xf]
    %v654 = vld [vmem:[#allocation5 + $0x8d8] sm:$0xf]
    %v655 = vld [vmem:[#allocation5 + $0x8dc] sm:$0xf]
    %v656 = vld [vmem:[#allocation5 + $0x8e0] sm:$0xf]
    %v657 = vld [vmem:[#allocation5 + $0x8e4] sm:$0xf]
    %v658 = vld [vmem:[#allocation5 + $0x8e8] sm:$0xf]
    %v659 = vld [vmem:[#allocation5 + $0x8ec] sm:$0xf]
    %v660 = vld [vmem:[#allocation5 + $0x8f0] sm:$0xf]
    %v661 = vld [vmem:[#allocation5 + $0x8f4] sm:$0xf]
    %v662 = vld [vmem:[#allocation5 + $0x8f8] sm:$0xf]
    %v663 = vld [vmem:[#allocation5 + $0x8fc] sm:$0xf]
    %v664 = vld [vmem:[#allocation5 + $0x900] sm:$0xf]
    %v665 = vld [vmem:[#allocation5 + $0x904] sm:$0xf]
    %v666 = vld [vmem:[#allocation5 + $0x908] sm:$0xf]
    %v667 = vld [vmem:[#allocation5 + $0x90c] sm:$0xf]
    %v668 = vld [vmem:[#allocation5 + $0x910] sm:$0xf]
    %v669 = vld [vmem:[#allocation5 + $0x914] sm:$0xf]
    %v670 = vld [vmem:[#allocation5 + $0x918] sm:$0xf]
    %v671 = vld [vmem:[#allocation5 + $0x91c] sm:$0xf]
    %v672 = vld [vmem:[#allocation5 + $0x920] sm:$0xf]
    %v673 = vld [vmem:[#allocation5 + $0x924] sm:$0xf]
    %v674 = vld [vmem:[#allocation5 + $0x928] sm:$0xf]
    %v675 = vld [vmem:[#allocation5 + $0x92c] sm:$0xf]
    %v676 = vld [vmem:[#allocation5 + $0x930] sm:$0xf]
    %v677 = vld [vmem:[#allocation5 + $0x934] sm:$0xf]
    %v678 = vld [vmem:[#allocation5 + $0x938] sm:$0xf]
    %v679 = vld [vmem:[#allocation5 + $0x93c] sm:$0xf]
    %v680 = vld [vmem:[#allocation5 + $0x940] sm:$0xf]
    %v681 = vld [vmem:[#allocation5 + $0x944] sm:$0xf]
    %v682 = vld [vmem:[#allocation5 + $0x948] sm:$0xf]
    %v683 = vld [vmem:[#allocation5 + $0x94c] sm:$0xf]
    %v684 = vld [vmem:[#allocation5 + $0x950] sm:$0xf]
    %v685 = vld [vmem:[#allocation5 + $0x954] sm:$0xf]
    %v686 = vld [vmem:[#allocation5 + $0x958] sm:$0xf]
    %v687 = vld [vmem:[#allocation5 + $0x95c] sm:$0xf]
    %v688 = vld [vmem:[#allocation5 + $0x960] sm:$0xf]
    %v689 = vld [vmem:[#allocation5 + $0x964] sm:$0xf]
    %v690 = vld [vmem:[#allocation5 + $0x968] sm:$0xf]
    %v691 = vld [vmem:[#allocation5 + $0x96c] sm:$0xf]
    %v692 = vld [vmem:[#allocation5 + $0x970] sm:$0xf]
    %v693 = vld [vmem:[#allocation5 + $0x974] sm:$0xf]
    %v694 = vld [vmem:[#allocation5 + $0x978] sm:$0xf]
    %v695 = vld [vmem:[#allocation5 + $0x97c] sm:$0xf]
    %v696 = vld [vmem:[#allocation5 + $0x980] sm:$0xf]
    %v697 = vld [vmem:[#allocation5 + $0x984] sm:$0xf]
    %v698 = vld [vmem:[#allocation5 + $0x988] sm:$0xf]
    %v699 = vld [vmem:[#allocation5 + $0x98c] sm:$0xf]
    %v700 = vld [vmem:[#allocation5 + $0x990] sm:$0xf]
    %v701 = vld [vmem:[#allocation5 + $0x994] sm:$0xf]
    %v702 = vld [vmem:[#allocation5 + $0x998] sm:$0xf]
    %v703 = vld [vmem:[#allocation5 + $0x99c] sm:$0xf]
    %v704 = vld [vmem:[#allocation5 + $0x9a0] sm:$0xf]
    %v705 = vld [vmem:[#allocation5 + $0x9a4] sm:$0xf]
    %v706 = vld [vmem:[#allocation5 + $0x9a8] sm:$0xf]
    %v707 = vld [vmem:[#allocation5 + $0x9ac] sm:$0xf]
    %v708 = vld [vmem:[#allocation5 + $0x9b0] sm:$0xf]
    %v709 = vld [vmem:[#allocation5 + $0x9b4] sm:$0xf]
    %v710 = vld [vmem:[#allocation5 + $0x9b8] sm:$0xf]
    %v711 = vld [vmem:[#allocation5 + $0x9bc] sm:$0xf]
    %v712 = vld [vmem:[#allocation5 + $0x9c0] sm:$0xf]
    %v713 = vld [vmem:[#allocation5 + $0x9c4] sm:$0xf]
    %v714 = vld [vmem:[#allocation5 + $0x9c8] sm:$0xf]
    %v715 = vld [vmem:[#allocation5 + $0x9cc] sm:$0xf]
    %v716 = vld [vmem:[#allocation5 + $0x9d0] sm:$0xf]
    %v717 = vld [vmem:[#allocation5 + $0x9d4] sm:$0xf]
    %v718 = vld [vmem:[#allocation5 + $0x9d8] sm:$0xf]
    %v719 = vld [vmem:[#allocation5 + $0x9dc] sm:$0xf]
    %v720 = vld [vmem:[#allocation5 + $0x9e0] sm:$0xf]
    %v721 = vld [vmem:[#allocation5 + $0x9e4] sm:$0xf]
    %v722 = vld [vmem:[#allocation5 + $0x9e8] sm:$0xf]
    %v723 = vld [vmem:[#allocation5 + $0x9ec] sm:$0xf]
    %v724 = vld [vmem:[#allocation5 + $0x9f0] sm:$0xf]
    %v725 = vld [vmem:[#allocation5 + $0x9f4] sm:$0xf]
    %v726 = vld [vmem:[#allocation5 + $0x9f8] sm:$0xf]
    %v727 = vld [vmem:[#allocation5 + $0x9fc] sm:$0xf]
    %v728 = vld [vmem:[#allocation5 + $0xa00] sm:$0xf]
    %v729 = vld [vmem:[#allocation5 + $0xa04] sm:$0xf]
    %v730 = vld [vmem:[#allocation5 + $0xa08] sm:$0xf]
    %v731 = vld [vmem:[#allocation5 + $0xa0c] sm:$0xf]
    %v732 = vld [vmem:[#allocation5 + $0xa10] sm:$0xf]
    %v733 = vld [vmem:[#allocation5 + $0xa14] sm:$0xf]
    %v734 = vld [vmem:[#allocation5 + $0xa18] sm:$0xf]
    %v735 = vld [vmem:[#allocation5 + $0xa1c] sm:$0xf]
    %v736 = vld [vmem:[#allocation5 + $0xa20] sm:$0xf]
    %v737 = vld [vmem:[#allocation5 + $0xa24] sm:$0xf]
    %v738 = vld [vmem:[#allocation5 + $0xa28] sm:$0xf]
    %v739 = vld [vmem:[#allocation5 + $0xa2c] sm:$0xf]
    %v740 = vld [vmem:[#allocation5 + $0xa30] sm:$0xf]
    %v741 = vld [vmem:[#allocation5 + $0xa34] sm:$0xf]
    %v742 = vld [vmem:[#allocation5 + $0xa38] sm:$0xf]
    %v743 = vld [vmem:[#allocation5 + $0xa3c] sm:$0xf]
    %v744 = vld [vmem:[#allocation5 + $0xa40] sm:$0xf]
    %v745 = vld [vmem:[#allocation5 + $0xa44] sm:$0xf]
    %v746 = vld [vmem:[#allocation5 + $0xa48] sm:$0xf]
    %v747 = vld [vmem:[#allocation5 + $0xa4c] sm:$0xf]
    %v748 = vld [vmem:[#allocation5 + $0xa50] sm:$0xf]
    %v749 = vld [vmem:[#allocation5 + $0xa54] sm:$0xf]
    %v750 = vld [vmem:[#allocation5 + $0xa58] sm:$0xf]
    %v751 = vld [vmem:[#allocation5 + $0xa5c] sm:$0xf]
    %v752 = vld [vmem:[#allocation5 + $0xa60] sm:$0xf]
    %v753 = vld [vmem:[#allocation5 + $0xa64] sm:$0xf]
    %v754 = vld [vmem:[#allocation5 + $0xa68] sm:$0xf]
    %v755 = vld [vmem:[#allocation5 + $0xa6c] sm:$0xf]
    %v756 = vld [vmem:[#allocation5 + $0xa70] sm:$0xf]
    %v757 = vld [vmem:[#allocation5 + $0xa74] sm:$0xf]
    %v758 = vld [vmem:[#allocation5 + $0xa78] sm:$0xf]
    %v759 = vld [vmem:[#allocation5 + $0xa7c] sm:$0xf]
    %v760 = vld [vmem:[#allocation5 + $0xa80] sm:$0xf]
    %v761 = vld [vmem:[#allocation5 + $0xa84] sm:$0xf]
    %v762 = vld [vmem:[#allocation5 + $0xa88] sm:$0xf]
    %v763 = vld [vmem:[#allocation5 + $0xa8c] sm:$0xf]
    %v764 = vld [vmem:[#allocation5 + $0xa90] sm:$0xf]
    %v765 = vld [vmem:[#allocation5 + $0xa94] sm:$0xf]
    %v766 = vld [vmem:[#allocation5 + $0xa98] sm:$0xf]
    %v767 = vld [vmem:[#allocation5 + $0xa9c] sm:$0xf]
    %v768 = vld [vmem:[#allocation5 + $0xaa0] sm:$0xf]
    %v769 = vld [vmem:[#allocation5 + $0xaa4] sm:$0xf]
    %v770 = vld [vmem:[#allocation5 + $0xaa8] sm:$0xf]
    %v771 = vld [vmem:[#allocation5 + $0xaac] sm:$0xf]
    %v772 = vld [vmem:[#allocation5 + $0xab0] sm:$0xf]
    %v773 = vld [vmem:[#allocation5 + $0xab4] sm:$0xf]
    %v774 = vld [vmem:[#allocation5 + $0xab8] sm:$0xf]
    %v775 = vld [vmem:[#allocation5 + $0xabc] sm:$0xf]
    %v776 = vld [vmem:[#allocation5 + $0xac0] sm:$0xf]
    %v777 = vld [vmem:[#allocation5 + $0xac4] sm:$0xf]
    %v778 = vld [vmem:[#allocation5 + $0xac8] sm:$0xf]
    %v779 = vld [vmem:[#allocation5 + $0xacc] sm:$0xf]
    %v780 = vld [vmem:[#allocation5 + $0xad0] sm:$0xf]
    %v781 = vld [vmem:[#allocation5 + $0xad4] sm:$0xf]
    %v782 = vld [vmem:[#allocation5 + $0xad8] sm:$0xf]
    %v783 = vld [vmem:[#allocation5 + $0xadc] sm:$0xf]
    %v784 = vld [vmem:[#allocation5 + $0xae0] sm:$0xf]
    %v785 = vld [vmem:[#allocation5 + $0xae4] sm:$0xf]
    %v786 = vld [vmem:[#allocation5 + $0xae8] sm:$0xf]
    %v787 = vld [vmem:[#allocation5 + $0xaec] sm:$0xf]
    %v788 = vld [vmem:[#allocation5 + $0xaf0] sm:$0xf]
    %v789 = vld [vmem:[#allocation5 + $0xaf4] sm:$0xf]
    %v790 = vld [vmem:[#allocation5 + $0xaf8] sm:$0xf]
    %v791 = vld [vmem:[#allocation5 + $0xafc] sm:$0xf]
    %v792 = vld [vmem:[#allocation5 + $0xb00] sm:$0xf]
    %v793 = vld [vmem:[#allocation5 + $0xb04] sm:$0xf]
    %v794 = vld [vmem:[#allocation5 + $0xb08] sm:$0xf]
    %v795 = vld [vmem:[#allocation5 + $0xb0c] sm:$0xf]
    %v796 = vld [vmem:[#allocation5 + $0xb10] sm:$0xf]
    %v797 = vld [vmem:[#allocation5 + $0xb14] sm:$0xf]
    %v798 = vld [vmem:[#allocation5 + $0xb18] sm:$0xf]
    %v799 = vld [vmem:[#allocation5 + $0xb1c] sm:$0xf]
    %v800 = vld [vmem:[#allocation5 + $0xb20] sm:$0xf]
    %v801 = vld [vmem:[#allocation5 + $0xb24] sm:$0xf]
    %v802 = vld [vmem:[#allocation5 + $0xb28] sm:$0xf]
    %v803 = vld [vmem:[#allocation5 + $0xb2c] sm:$0xf]
    %v804 = vld [vmem:[#allocation5 + $0xb30] sm:$0xf]
    %v805 = vld [vmem:[#allocation5 + $0xb34] sm:$0xf]
    %v806 = vld [vmem:[#allocation5 + $0xb38] sm:$0xf]
    %v807 = vld [vmem:[#allocation5 + $0xb3c] sm:$0xf]
    %v808 = vld [vmem:[#allocation5 + $0xb40] sm:$0xf]
    %v809 = vld [vmem:[#allocation5 + $0xb44] sm:$0xf]
    %v810 = vld [vmem:[#allocation5 + $0xb48] sm:$0xf]
    %v811 = vld [vmem:[#allocation5 + $0xb4c] sm:$0xf]
    %v812 = vld [vmem:[#allocation5 + $0xb50] sm:$0xf]
    %v813 = vld [vmem:[#allocation5 + $0xb54] sm:$0xf]
    %v814 = vld [vmem:[#allocation5 + $0xb58] sm:$0xf]
    %v815 = vld [vmem:[#allocation5 + $0xb5c] sm:$0xf]
    %v816 = vld [vmem:[#allocation5 + $0xb60] sm:$0xf]
    %v817 = vld [vmem:[#allocation5 + $0xb64] sm:$0xf]
    %v818 = vld [vmem:[#allocation5 + $0xb68] sm:$0xf]
    %v819 = vld [vmem:[#allocation5 + $0xb6c] sm:$0xf]
    %v820 = vld [vmem:[#allocation5 + $0xb70] sm:$0xf]
    %v821 = vld [vmem:[#allocation5 + $0xb74] sm:$0xf]
    %v822 = vld [vmem:[#allocation5 + $0xb78] sm:$0xf]
    %v823 = vld [vmem:[#allocation5 + $0xb7c] sm:$0xf]
    %v824 = vld [vmem:[#allocation5 + $0xb80] sm:$0xf]
    %v825 = vld [vmem:[#allocation5 + $0xb84] sm:$0xf]
    %v826 = vld [vmem:[#allocation5 + $0xb88] sm:$0xf]
    %v827 = vld [vmem:[#allocation5 + $0xb8c] sm:$0xf]
    %v828 = vld [vmem:[#allocation5 + $0xb90] sm:$0xf]
    %v829 = vld [vmem:[#allocation5 + $0xb94] sm:$0xf]
    %v830 = vld [vmem:[#allocation5 + $0xb98] sm:$0xf]
    %v831 = vld [vmem:[#allocation5 + $0xb9c] sm:$0xf]
    %v832 = vld [vmem:[#allocation5 + $0xba0] sm:$0xf]
    %v833 = vld [vmem:[#allocation5 + $0xba4] sm:$0xf]
    %v834 = vld [vmem:[#allocation5 + $0xba8] sm:$0xf]
    %v835 = vld [vmem:[#allocation5 + $0xbac] sm:$0xf]
    %v836 = vld [vmem:[#allocation5 + $0xbb0] sm:$0xf]
    %v837 = vld [vmem:[#allocation5 + $0xbb4] sm:$0xf]
    %v838 = vld [vmem:[#allocation5 + $0xbb8] sm:$0xf]
    %v839 = vld [vmem:[#allocation5 + $0xbbc] sm:$0xf]
    %v840 = vld [vmem:[#allocation5 + $0xbc0] sm:$0xf]
    %v841 = vld [vmem:[#allocation5 + $0xbc4] sm:$0xf]
    %v842 = vld [vmem:[#allocation5 + $0xbc8] sm:$0xf]
    %v843 = vld [vmem:[#allocation5 + $0xbcc] sm:$0xf]
    %v844 = vld [vmem:[#allocation5 + $0xbd0] sm:$0xf]
    %v845 = vld [vmem:[#allocation5 + $0xbd4] sm:$0xf]
    %v846 = vld [vmem:[#allocation5 + $0xbd8] sm:$0xf]
    %v847 = vld [vmem:[#allocation5 + $0xbdc] sm:$0xf]
    %v848 = vld [vmem:[#allocation5 + $0xbe0] sm:$0xf]
    %v849 = vld [vmem:[#allocation5 + $0xbe4] sm:$0xf]
    %v850 = vld [vmem:[#allocation5 + $0xbe8] sm:$0xf]
    %v851 = vld [vmem:[#allocation5 + $0xbec] sm:$0xf]
    %v852 = vld [vmem:[#allocation5 + $0xbf0] sm:$0xf]
    %v853 = vld [vmem:[#allocation5 + $0xbf4] sm:$0xf]
    %v854 = vld [vmem:[#allocation5 + $0xbf8] sm:$0xf]
    %v855 = vld [vmem:[#allocation5 + $0xbfc] sm:$0xf]
    %v856 = vld [vmem:[#allocation5 + $0xc00] sm:$0xf]
    %v857 = vld [vmem:[#allocation5 + $0xc04] sm:$0xf]
    %v858 = vld [vmem:[#allocation5 + $0xc08] sm:$0xf]
    %v859 = vld [vmem:[#allocation5 + $0xc0c] sm:$0xf]
    %v860 = vld [vmem:[#allocation5 + $0xc10] sm:$0xf]
    %v861 = vld [vmem:[#allocation5 + $0xc14] sm:$0xf]
    %v862 = vld [vmem:[#allocation5 + $0xc18] sm:$0xf]
    %v863 = vld [vmem:[#allocation5 + $0xc1c] sm:$0xf]
    %v864 = vld [vmem:[#allocation5 + $0xc20] sm:$0xf]
    %v865 = vld [vmem:[#allocation5 + $0xc24] sm:$0xf]
    %v866 = vld [vmem:[#allocation5 + $0xc28] sm:$0xf]
    %v867 = vld [vmem:[#allocation5 + $0xc2c] sm:$0xf]
    %v868 = vld [vmem:[#allocation5 + $0xc30] sm:$0xf]
    %v869 = vld [vmem:[#allocation5 + $0xc34] sm:$0xf]
    %v870 = vld [vmem:[#allocation5 + $0xc38] sm:$0xf]
    %v871 = vld [vmem:[#allocation5 + $0xc3c] sm:$0xf]
    %v872 = vpack.c.bf16 %v39, %v39
    %v873 = vpack.c.bf16 %v40, %v40
    %v874 = vpack.c.bf16 %v41, %v41
    %v875 = vpack.c.bf16 %v42, %v42
    %v876 = vpack.c.bf16 %v43, %v43
    %v877 = vpack.c.bf16 %v44, %v44
    %v878 = vpack.c.bf16 %v45, %v45
    %v879 = vpack.c.bf16 %v46, %v46
    %v880 = vpack.c.bf16 %v47, %v47
    %v881 = vpack.c.bf16 %v48, %v48
    %v882 = vpack.c.bf16 %v49, %v49
    %v883 = vpack.c.bf16 %v50, %v50
    %v884 = vpack.c.bf16 %v51, %v51
    %v885 = vpack.c.bf16 %v52, %v52
    %v886 = vpack.c.bf16 %v53, %v53
    %v887 = vpack.c.bf16 %v54, %v54
    %v888 = vpack.c.bf16 %v55, %v55
    %v889 = vpack.c.bf16 %v56, %v56
    %v890 = vpack.c.bf16 %v57, %v57
    %v891 = vpack.c.bf16 %v58, %v58
    %v892 = vpack.c.bf16 %v59, %v59
    %v893 = vpack.c.bf16 %v60, %v60
    %v894 = vpack.c.bf16 %v61, %v61
    %v895 = vpack.c.bf16 %v62, %v62
    %v896 = vpack.c.bf16 %v63, %v63
    %v897 = vpack.c.bf16 %v64, %v64
    %v898 = vpack.c.bf16 %v65, %v65
    %v899 = vpack.c.bf16 %v66, %v66
    %v900 = vpack.c.bf16 %v67, %v67
    %v901 = vpack.c.bf16 %v68, %v68
    %v902 = vpack.c.bf16 %v69, %v69
    %v903 = vpack.c.bf16 %v70, %v70
    %v904 = vpack.c.bf16 %v71, %v71
    %v905 = vpack.c.bf16 %v72, %v72
    %v906 = vpack.c.bf16 %v73, %v73
    %v907 = vpack.c.bf16 %v74, %v74
    %v908 = vpack.c.bf16 %v75, %v75
    %v909 = vpack.c.bf16 %v76, %v76
    %v910 = vpack.c.bf16 %v77, %v77
    %v911 = vpack.c.bf16 %v78, %v78
    %v912 = vpack.c.bf16 %v79, %v79
    %v913 = vpack.c.bf16 %v80, %v80
    %v914 = vpack.c.bf16 %v81, %v81
    %v915 = vpack.c.bf16 %v82, %v82
    %v916 = vpack.c.bf16 %v83, %v83
    %v917 = vpack.c.bf16 %v84, %v84
    %v918 = vpack.c.bf16 %v85, %v85
    %v919 = vpack.c.bf16 %v86, %v86
    %v920 = vpack.c.bf16 %v87, %v87
    %v921 = vunpack.c.l.bf16 %v872
    %v922 = vunpack.c.l.bf16 %v873
    %v923 = vunpack.c.l.bf16 %v874
    %v924 = vunpack.c.l.bf16 %v875
    %v925 = vunpack.c.l.bf16 %v876
    %v926 = vunpack.c.l.bf16 %v877
    %v927 = vunpack.c.l.bf16 %v878
    %v928 = vunpack.c.l.bf16 %v879
    %v929 = vunpack.c.l.bf16 %v880
    %v930 = vunpack.c.l.bf16 %v881
    %v931 = vunpack.c.l.bf16 %v882
    %v932 = vunpack.c.l.bf16 %v883
    %v933 = vunpack.c.l.bf16 %v884
    %v934 = vunpack.c.l.bf16 %v885
    %v935 = vunpack.c.l.bf16 %v886
    %v936 = vunpack.c.l.bf16 %v887
    %v937 = vunpack.c.l.bf16 %v888
    %v938 = vunpack.c.l.bf16 %v889
    %v939 = vunpack.c.l.bf16 %v890
    %v940 = vunpack.c.l.bf16 %v891
    %v941 = vunpack.c.l.bf16 %v892
    %v942 = vunpack.c.l.bf16 %v893
    %v943 = vunpack.c.l.bf16 %v894
    %v944 = vunpack.c.l.bf16 %v895
    %v945 = vunpack.c.l.bf16 %v896
    %v946 = vunpack.c.l.bf16 %v897
    %v947 = vunpack.c.l.bf16 %v898
    %v948 = vunpack.c.l.bf16 %v899
    %v949 = vunpack.c.l.bf16 %v900
    %v950 = vunpack.c.l.bf16 %v901
    %v951 = vunpack.c.l.bf16 %v902
    %v952 = vunpack.c.l.bf16 %v903
    %v953 = vunpack.c.l.bf16 %v904
    %v954 = vunpack.c.l.bf16 %v905
    %v955 = vunpack.c.l.bf16 %v906
    %v956 = vunpack.c.l.bf16 %v907
    %v957 = vunpack.c.l.bf16 %v908
    %v958 = vunpack.c.l.bf16 %v909
    %v959 = vunpack.c.l.bf16 %v910
    %v960 = vunpack.c.l.bf16 %v911
    %v961 = vunpack.c.l.bf16 %v912
    %v962 = vunpack.c.l.bf16 %v913
    %v963 = vunpack.c.l.bf16 %v914
    %v964 = vunpack.c.l.bf16 %v915
    %v965 = vunpack.c.l.bf16 %v916
    %v966 = vunpack.c.l.bf16 %v917
    %v967 = vunpack.c.l.bf16 %v918
    %v968 = vunpack.c.l.bf16 %v919
    %v969 = vunpack.c.l.bf16 %v920
    %v970 = vsub.f32 %v39, %v921
    %v971 = vsub.f32 %v40, %v922
    %v972 = vsub.f32 %v41, %v923
    %v973 = vsub.f32 %v42, %v924
    %v974 = vsub.f32 %v43, %v925
    %v975 = vsub.f32 %v44, %v926
    %v976 = vsub.f32 %v45, %v927
    %v977 = vsub.f32 %v46, %v928
    %v978 = vsub.f32 %v47, %v929
    %v979 = vsub.f32 %v48, %v930
    %v980 = vsub.f32 %v49, %v931
    %v981 = vsub.f32 %v50, %v932
    %v982 = vsub.f32 %v51, %v933
    %v983 = vsub.f32 %v52, %v934
    %v984 = vsub.f32 %v53, %v935
    %v985 = vsub.f32 %v54, %v936
    %v986 = vsub.f32 %v55, %v937
    %v987 = vsub.f32 %v56, %v938
    %v988 = vsub.f32 %v57, %v939
    %v989 = vsub.f32 %v58, %v940
    %v990 = vsub.f32 %v59, %v941
    %v991 = vsub.f32 %v60, %v942
    %v992 = vsub.f32 %v61, %v943
    %v993 = vsub.f32 %v62, %v944
    %v994 = vsub.f32 %v63, %v945
    %v995 = vsub.f32 %v64, %v946
    %v996 = vsub.f32 %v65, %v947
    %v997 = vsub.f32 %v66, %v948
    %v998 = vsub.f32 %v67, %v949
    %v999 = vsub.f32 %v68, %v950
    %v1000 = vsub.f32 %v69, %v951
    %v1001 = vsub.f32 %v70, %v952
    %v1002 = vsub.f32 %v71, %v953
    %v1003 = vsub.f32 %v72, %v954
    %v1004 = vsub.f32 %v73, %v955
    %v1005 = vsub.f32 %v74, %v956
    %v1006 = vsub.f32 %v75, %v957
    %v1007 = vsub.f32 %v76, %v958
    %v1008 = vsub.f32 %v77, %v959
    %v1009 = vsub.f32 %v78, %v960
    %v1010 = vsub.f32 %v79, %v961
    %v1011 = vsub.f32 %v80, %v962
    %v1012 = vsub.f32 %v81, %v963
    %v1013 = vsub.f32 %v82, %v964
    %v1014 = vsub.f32 %v83, %v965
    %v1015 = vsub.f32 %v84, %v966
    %v1016 = vsub.f32 %v85, %v967
    %v1017 = vsub.f32 %v86, %v968
    %v1018 = vsub.f32 %v87, %v969
    %v1019 = vpack.c.bf16 %v970, %v970
    %v1020 = vpack.c.bf16 %v971, %v971
    %v1021 = vpack.c.bf16 %v972, %v972
    %v1022 = vpack.c.bf16 %v973, %v973
    %v1023 = vpack.c.bf16 %v974, %v974
    %v1024 = vpack.c.bf16 %v975, %v975
    %v1025 = vpack.c.bf16 %v976, %v976
    %v1026 = vpack.c.bf16 %v977, %v977
    %v1027 = vpack.c.bf16 %v978, %v978
    %v1028 = vpack.c.bf16 %v979, %v979
    %v1029 = vpack.c.bf16 %v980, %v980
    %v1030 = vpack.c.bf16 %v981, %v981
    %v1031 = vpack.c.bf16 %v982, %v982
    %v1032 = vpack.c.bf16 %v983, %v983
    %v1033 = vpack.c.bf16 %v984, %v984
    %v1034 = vpack.c.bf16 %v985, %v985
    %v1035 = vpack.c.bf16 %v986, %v986
    %v1036 = vpack.c.bf16 %v987, %v987
    %v1037 = vpack.c.bf16 %v988, %v988
    %v1038 = vpack.c.bf16 %v989, %v989
    %v1039 = vpack.c.bf16 %v990, %v990
    %v1040 = vpack.c.bf16 %v991, %v991
    %v1041 = vpack.c.bf16 %v992, %v992
    %v1042 = vpack.c.bf16 %v993, %v993
    %v1043 = vpack.c.bf16 %v994, %v994
    %v1044 = vpack.c.bf16 %v995, %v995
    %v1045 = vpack.c.bf16 %v996, %v996
    %v1046 = vpack.c.bf16 %v997, %v997
    %v1047 = vpack.c.bf16 %v998, %v998
    %v1048 = vpack.c.bf16 %v999, %v999
    %v1049 = vpack.c.bf16 %v1000, %v1000
    %v1050 = vpack.c.bf16 %v1001, %v1001
    %v1051 = vpack.c.bf16 %v1002, %v1002
    %v1052 = vpack.c.bf16 %v1003, %v1003
    %v1053 = vpack.c.bf16 %v1004, %v1004
    %v1054 = vpack.c.bf16 %v1005, %v1005
    %v1055 = vpack.c.bf16 %v1006, %v1006
    %v1056 = vpack.c.bf16 %v1007, %v1007
    %v1057 = vpack.c.bf16 %v1008, %v1008
    %v1058 = vpack.c.bf16 %v1009, %v1009
    %v1059 = vpack.c.bf16 %v1010, %v1010
    %v1060 = vpack.c.bf16 %v1011, %v1011
    %v1061 = vpack.c.bf16 %v1012, %v1012
    %v1062 = vpack.c.bf16 %v1013, %v1013
    %v1063 = vpack.c.bf16 %v1014, %v1014
    %v1064 = vpack.c.bf16 %v1015, %v1015
    %v1065 = vpack.c.bf16 %v1016, %v1016
    %v1066 = vpack.c.bf16 %v1017, %v1017
    %v1067 = vpack.c.bf16 %v1018, %v1018
    %v1852 = vunpack.c.l.b16 %v88
    %v1853 = vunpack.c.l.b16 %v89
    %v1854 = vunpack.c.l.b16 %v90
    %v1855 = vunpack.c.l.b16 %v91
    %v1856 = vunpack.c.l.b16 %v92
    %v1857 = vunpack.c.l.b16 %v93
    %v1858 = vunpack.c.l.b16 %v94
    %v1859 = vunpack.c.l.b16 %v95
    %v1860 = vunpack.c.l.b16 %v96
    %v1861 = vunpack.c.l.b16 %v97
    %v1862 = vunpack.c.l.b16 %v98
    %v1863 = vunpack.c.l.b16 %v99
    %v1864 = vunpack.c.l.b16 %v100
    %v1865 = vunpack.c.l.b16 %v101
    %v1866 = vunpack.c.l.b16 %v102
    %v1867 = vunpack.c.l.b16 %v103
    %v1868 = vunpack.c.l.b16 %v104
    %v1869 = vunpack.c.l.b16 %v105
    %v1870 = vunpack.c.l.b16 %v106
    %v1871 = vunpack.c.l.b16 %v107
    %v1872 = vunpack.c.l.b16 %v108
    %v1873 = vunpack.c.l.b16 %v109
    %v1874 = vunpack.c.l.b16 %v110
    %v1875 = vunpack.c.l.b16 %v111
    %v1876 = vunpack.c.l.b16 %v112
    %v1877 = vunpack.c.l.b16 %v113
    %v1878 = vunpack.c.l.b16 %v114
    %v1879 = vunpack.c.l.b16 %v115
    %v1880 = vunpack.c.l.b16 %v116
    %v1881 = vunpack.c.l.b16 %v117
    %v1882 = vunpack.c.l.b16 %v118
    %v1883 = vunpack.c.l.b16 %v119
    %v1884 = vunpack.c.l.b16 %v120
    %v1885 = vunpack.c.l.b16 %v121
    %v1886 = vunpack.c.l.b16 %v122
    %v1887 = vunpack.c.l.b16 %v123
    %v1888 = vunpack.c.l.b16 %v124
    %v1889 = vunpack.c.l.b16 %v125
    %v1890 = vunpack.c.l.b16 %v126
    %v1891 = vunpack.c.l.b16 %v127
    %v1892 = vunpack.c.l.b16 %v128
    %v1893 = vunpack.c.l.b16 %v129
    %v1894 = vunpack.c.l.b16 %v130
    %v1895 = vunpack.c.l.b16 %v131
    %v1896 = vunpack.c.l.b16 %v132
    %v1897 = vunpack.c.l.b16 %v133
    %v1898 = vunpack.c.l.b16 %v134
    %v1899 = vunpack.c.l.b16 %v135
    %v1900 = vunpack.c.l.b16 %v136
    %v1901 = vunpack.c.l.b16 %v137
    %v1902 = vunpack.c.l.b16 %v138
    %v1903 = vunpack.c.l.b16 %v139
    %v1904 = vunpack.c.l.b16 %v140
    %v1905 = vunpack.c.l.b16 %v141
    %v1906 = vunpack.c.l.b16 %v142
    %v1907 = vunpack.c.l.b16 %v143
    %v1908 = vunpack.c.l.b16 %v144
    %v1909 = vunpack.c.l.b16 %v145
    %v1910 = vunpack.c.l.b16 %v146
    %v1911 = vunpack.c.l.b16 %v147
    %v1912 = vunpack.c.l.b16 %v148
    %v1913 = vunpack.c.l.b16 %v149
    %v1914 = vunpack.c.l.b16 %v150
    %v1915 = vunpack.c.l.b16 %v151
    %v1916 = vunpack.c.l.b16 %v152
    %v1917 = vunpack.c.l.b16 %v153
    %v1918 = vunpack.c.l.b16 %v154
    %v1919 = vunpack.c.l.b16 %v155
    %v1920 = vunpack.c.l.b16 %v156
    %v1921 = vunpack.c.l.b16 %v157
    %v1922 = vunpack.c.l.b16 %v158
    %v1923 = vunpack.c.l.b16 %v159
    %v1924 = vunpack.c.l.b16 %v160
    %v1925 = vunpack.c.l.b16 %v161
    %v1926 = vunpack.c.l.b16 %v162
    %v1927 = vunpack.c.l.b16 %v163
    %v1928 = vunpack.c.l.b16 %v164
    %v1929 = vunpack.c.l.b16 %v165
    %v1930 = vunpack.c.l.b16 %v166
    %v1931 = vunpack.c.l.b16 %v167
    %v1932 = vunpack.c.l.b16 %v168
    %v1933 = vunpack.c.l.b16 %v169
    %v1934 = vunpack.c.l.b16 %v170
    %v1935 = vunpack.c.l.b16 %v171
    %v1936 = vunpack.c.l.b16 %v172
    %v1937 = vunpack.c.l.b16 %v173
    %v1938 = vunpack.c.l.b16 %v174
    %v1939 = vunpack.c.l.b16 %v175
    %v1940 = vunpack.c.l.b16 %v176
    %v1941 = vunpack.c.l.b16 %v177
    %v1942 = vunpack.c.l.b16 %v178
    %v1943 = vunpack.c.l.b16 %v179
    %v1944 = vunpack.c.l.b16 %v180
    %v1945 = vunpack.c.l.b16 %v181
    %v1946 = vunpack.c.l.b16 %v182
    %v1947 = vunpack.c.l.b16 %v183
    %v1948 = vunpack.c.l.b16 %v184
    %v1949 = vunpack.c.l.b16 %v185
    %v1950 = vunpack.c.l.b16 %v186
    %v1951 = vunpack.c.l.b16 %v187
    %v1952 = vunpack.c.l.b16 %v188
    %v1953 = vunpack.c.l.b16 %v189
    %v1954 = vunpack.c.l.b16 %v190
    %v1955 = vunpack.c.l.b16 %v191
    %v1956 = vunpack.c.l.b16 %v192
    %v1957 = vunpack.c.l.b16 %v193
    %v1958 = vunpack.c.l.b16 %v194
    %v1959 = vunpack.c.l.b16 %v195
    %v1960 = vunpack.c.l.b16 %v196
    %v1961 = vunpack.c.l.b16 %v197
    %v1962 = vunpack.c.l.b16 %v198
    %v1963 = vunpack.c.l.b16 %v199
    %v1964 = vunpack.c.l.b16 %v200
    %v1965 = vunpack.c.l.b16 %v201
    %v1966 = vunpack.c.l.b16 %v202
    %v1967 = vunpack.c.l.b16 %v203
    %v1968 = vunpack.c.l.b16 %v204
    %v1969 = vunpack.c.l.b16 %v205
    %v1970 = vunpack.c.l.b16 %v206
    %v1971 = vunpack.c.l.b16 %v207
    %v1972 = vunpack.c.l.b16 %v208
    %v1973 = vunpack.c.l.b16 %v209
    %v1974 = vunpack.c.l.b16 %v210
    %v1975 = vunpack.c.l.b16 %v211
    %v1976 = vunpack.c.l.b16 %v212
    %v1977 = vunpack.c.l.b16 %v213
    %v1978 = vunpack.c.l.b16 %v214
    %v1979 = vunpack.c.l.b16 %v215
    %v1980 = vunpack.c.l.b16 %v216
    %v1981 = vunpack.c.l.b16 %v217
    %v1982 = vunpack.c.l.b16 %v218
    %v1983 = vunpack.c.l.b16 %v219
    %v1984 = vunpack.c.l.b16 %v220
    %v1985 = vunpack.c.l.b16 %v221
    %v1986 = vunpack.c.l.b16 %v222
    %v1987 = vunpack.c.l.b16 %v223
    %v1988 = vunpack.c.l.b16 %v224
    %v1989 = vunpack.c.l.b16 %v225
    %v1990 = vunpack.c.l.b16 %v226
    %v1991 = vunpack.c.l.b16 %v227
    %v1992 = vunpack.c.l.b16 %v228
    %v1993 = vunpack.c.l.b16 %v229
    %v1994 = vunpack.c.l.b16 %v230
    %v1995 = vunpack.c.l.b16 %v231
    %v1996 = vunpack.c.l.b16 %v232
    %v1997 = vunpack.c.l.b16 %v233
    %v1998 = vunpack.c.l.b16 %v234
    %v1999 = vunpack.c.l.b16 %v235
    %v2000 = vunpack.c.l.b16 %v236
    %v2001 = vunpack.c.l.b16 %v237
    %v2002 = vunpack.c.l.b16 %v238
    %v2003 = vunpack.c.l.b16 %v239
    %v2004 = vunpack.c.l.b16 %v240
    %v2005 = vunpack.c.l.b16 %v241
    %v2006 = vunpack.c.l.b16 %v242
    %v2007 = vunpack.c.l.b16 %v243
    %v2008 = vunpack.c.l.b16 %v244
    %v2009 = vunpack.c.l.b16 %v245
    %v2010 = vunpack.c.l.b16 %v246
    %v2011 = vunpack.c.l.b16 %v247
    %v2012 = vunpack.c.l.b16 %v248
    %v2013 = vunpack.c.l.b16 %v249
    %v2014 = vunpack.c.l.b16 %v250
    %v2015 = vunpack.c.l.b16 %v251
    %v2016 = vunpack.c.l.b16 %v252
    %v2017 = vunpack.c.l.b16 %v253
    %v2018 = vunpack.c.l.b16 %v254
    %v2019 = vunpack.c.l.b16 %v255
    %v2020 = vunpack.c.l.b16 %v256
    %v2021 = vunpack.c.l.b16 %v257
    %v2022 = vunpack.c.l.b16 %v258
    %v2023 = vunpack.c.l.b16 %v259
    %v2024 = vunpack.c.l.b16 %v260
    %v2025 = vunpack.c.l.b16 %v261
    %v2026 = vunpack.c.l.b16 %v262
    %v2027 = vunpack.c.l.b16 %v263
    %v2028 = vunpack.c.l.b16 %v264
    %v2029 = vunpack.c.l.b16 %v265
    %v2030 = vunpack.c.l.b16 %v266
    %v2031 = vunpack.c.l.b16 %v267
    %v2032 = vunpack.c.l.b16 %v268
    %v2033 = vunpack.c.l.b16 %v269
    %v2034 = vunpack.c.l.b16 %v270
    %v2035 = vunpack.c.l.b16 %v271
    %v2036 = vunpack.c.l.b16 %v272
    %v2037 = vunpack.c.l.b16 %v273
    %v2038 = vunpack.c.l.b16 %v274
    %v2039 = vunpack.c.l.b16 %v275
    %v2040 = vunpack.c.l.b16 %v276
    %v2041 = vunpack.c.l.b16 %v277
    %v2042 = vunpack.c.l.b16 %v278
    %v2043 = vunpack.c.l.b16 %v279
    %v2044 = vunpack.c.l.b16 %v280
    %v2045 = vunpack.c.l.b16 %v281
    %v2046 = vunpack.c.l.b16 %v282
    %v2047 = vunpack.c.l.b16 %v283
    %v2048 = vunpack.c.l.b16 %v284
    %v2049 = vunpack.c.l.b16 %v285
    %v2050 = vunpack.c.l.b16 %v286
    %v2051 = vunpack.c.l.b16 %v287
    %v2052 = vunpack.c.l.b16 %v288
    %v2053 = vunpack.c.l.b16 %v289
    %v2054 = vunpack.c.l.b16 %v290
    %v2055 = vunpack.c.l.b16 %v291
    %v2056 = vunpack.c.l.b16 %v292
    %v2057 = vunpack.c.l.b16 %v293
    %v2058 = vunpack.c.l.b16 %v294
    %v2059 = vunpack.c.l.b16 %v295
    %v2060 = vunpack.c.l.b16 %v296
    %v2061 = vunpack.c.l.b16 %v297
    %v2062 = vunpack.c.l.b16 %v298
    %v2063 = vunpack.c.l.b16 %v299
    %v2064 = vunpack.c.l.b16 %v300
    %v2065 = vunpack.c.l.b16 %v301
    %v2066 = vunpack.c.l.b16 %v302
    %v2067 = vunpack.c.l.b16 %v303
    %v2068 = vunpack.c.l.b16 %v304
    %v2069 = vunpack.c.l.b16 %v305
    %v2070 = vunpack.c.l.b16 %v306
    %v2071 = vunpack.c.l.b16 %v307
    %v2072 = vunpack.c.l.b16 %v308
    %v2073 = vunpack.c.l.b16 %v309
    %v2074 = vunpack.c.l.b16 %v310
    %v2075 = vunpack.c.l.b16 %v311
    %v2076 = vunpack.c.l.b16 %v312
    %v2077 = vunpack.c.l.b16 %v313
    %v2078 = vunpack.c.l.b16 %v314
    %v2079 = vunpack.c.l.b16 %v315
    %v2080 = vunpack.c.l.b16 %v316
    %v2081 = vunpack.c.l.b16 %v317
    %v2082 = vunpack.c.l.b16 %v318
    %v2083 = vunpack.c.l.b16 %v319
    %v2084 = vunpack.c.l.b16 %v320
    %v2085 = vunpack.c.l.b16 %v321
    %v2086 = vunpack.c.l.b16 %v322
    %v2087 = vunpack.c.l.b16 %v323
    %v2088 = vunpack.c.l.b16 %v324
    %v2089 = vunpack.c.l.b16 %v325
    %v2090 = vunpack.c.l.b16 %v326
    %v2091 = vunpack.c.l.b16 %v327
    %v2092 = vunpack.c.l.b16 %v328
    %v2093 = vunpack.c.l.b16 %v329
    %v2094 = vunpack.c.l.b16 %v330
    %v2095 = vunpack.c.l.b16 %v331
    %v2096 = vunpack.c.l.b16 %v332
    %v2097 = vunpack.c.l.b16 %v333
    %v2098 = vunpack.c.l.b16 %v334
    %v2099 = vunpack.c.l.b16 %v335
    %v2100 = vunpack.c.l.b16 %v336
    %v2101 = vunpack.c.l.b16 %v337
    %v2102 = vunpack.c.l.b16 %v338
    %v2103 = vunpack.c.l.b16 %v339
    %v2104 = vunpack.c.l.b16 %v340
    %v2105 = vunpack.c.l.b16 %v341
    %v2106 = vunpack.c.l.b16 %v342
    %v2107 = vunpack.c.l.b16 %v343
    %v2108 = vunpack.c.l.b16 %v344
    %v2109 = vunpack.c.l.b16 %v345
    %v2110 = vunpack.c.l.b16 %v346
    %v2111 = vunpack.c.l.b16 %v347
    %v2112 = vunpack.c.l.b16 %v348
    %v2113 = vunpack.c.l.b16 %v349
    %v2114 = vunpack.c.l.b16 %v350
    %v2115 = vunpack.c.l.b16 %v351
    %v2116 = vunpack.c.l.b16 %v352
    %v2117 = vunpack.c.l.b16 %v353
    %v2118 = vunpack.c.l.b16 %v354
    %v2119 = vunpack.c.l.b16 %v355
    %v2120 = vunpack.c.l.b16 %v356
    %v2121 = vunpack.c.l.b16 %v357
    %v2122 = vunpack.c.l.b16 %v358
    %v2123 = vunpack.c.l.b16 %v359
    %v2124 = vunpack.c.l.b16 %v360
    %v2125 = vunpack.c.l.b16 %v361
    %v2126 = vunpack.c.l.b16 %v362
    %v2127 = vunpack.c.l.b16 %v363
    %v2128 = vunpack.c.l.b16 %v364
    %v2129 = vunpack.c.l.b16 %v365
    %v2130 = vunpack.c.l.b16 %v366
    %v2131 = vunpack.c.l.b16 %v367
    %v2132 = vunpack.c.l.b16 %v368
    %v2133 = vunpack.c.l.b16 %v369
    %v2134 = vunpack.c.l.b16 %v370
    %v2135 = vunpack.c.l.b16 %v371
    %v2136 = vunpack.c.l.b16 %v372
    %v2137 = vunpack.c.l.b16 %v373
    %v2138 = vunpack.c.l.b16 %v374
    %v2139 = vunpack.c.l.b16 %v375
    %v2140 = vunpack.c.l.b16 %v376
    %v2141 = vunpack.c.l.b16 %v377
    %v2142 = vunpack.c.l.b16 %v378
    %v2143 = vunpack.c.l.b16 %v379
    %v2144 = vunpack.c.l.b16 %v380
    %v2145 = vunpack.c.l.b16 %v381
    %v2146 = vunpack.c.l.b16 %v382
    %v2147 = vunpack.c.l.b16 %v383
    %v2148 = vunpack.c.l.b16 %v384
    %v2149 = vunpack.c.l.b16 %v385
    %v2150 = vunpack.c.l.b16 %v386
    %v2151 = vunpack.c.l.b16 %v387
    %v2152 = vunpack.c.l.b16 %v388
    %v2153 = vunpack.c.l.b16 %v389
    %v2154 = vunpack.c.l.b16 %v390
    %v2155 = vunpack.c.l.b16 %v391
    %v2156 = vunpack.c.l.b16 %v392
    %v2157 = vunpack.c.l.b16 %v393
    %v2158 = vunpack.c.l.b16 %v394
    %v2159 = vunpack.c.l.b16 %v395
    %v2160 = vunpack.c.l.b16 %v396
    %v2161 = vunpack.c.l.b16 %v397
    %v2162 = vunpack.c.l.b16 %v398
    %v2163 = vunpack.c.l.b16 %v399
    %v2164 = vunpack.c.l.b16 %v400
    %v2165 = vunpack.c.l.b16 %v401
    %v2166 = vunpack.c.l.b16 %v402
    %v2167 = vunpack.c.l.b16 %v403
    %v2168 = vunpack.c.l.b16 %v404
    %v2169 = vunpack.c.l.b16 %v405
    %v2170 = vunpack.c.l.b16 %v406
    %v2171 = vunpack.c.l.b16 %v407
    %v2172 = vunpack.c.l.b16 %v408
    %v2173 = vunpack.c.l.b16 %v409
    %v2174 = vunpack.c.l.b16 %v410
    %v2175 = vunpack.c.l.b16 %v411
    %v2176 = vunpack.c.l.b16 %v412
    %v2177 = vunpack.c.l.b16 %v413
    %v2178 = vunpack.c.l.b16 %v414
    %v2179 = vunpack.c.l.b16 %v415
    %v2180 = vunpack.c.l.b16 %v416
    %v2181 = vunpack.c.l.b16 %v417
    %v2182 = vunpack.c.l.b16 %v418
    %v2183 = vunpack.c.l.b16 %v419
    %v2184 = vunpack.c.l.b16 %v420
    %v2185 = vunpack.c.l.b16 %v421
    %v2186 = vunpack.c.l.b16 %v422
    %v2187 = vunpack.c.l.b16 %v423
    %v2188 = vunpack.c.l.b16 %v424
    %v2189 = vunpack.c.l.b16 %v425
    %v2190 = vunpack.c.l.b16 %v426
    %v2191 = vunpack.c.l.b16 %v427
    %v2192 = vunpack.c.l.b16 %v428
    %v2193 = vunpack.c.l.b16 %v429
    %v2194 = vunpack.c.l.b16 %v430
    %v2195 = vunpack.c.l.b16 %v431
    %v2196 = vunpack.c.l.b16 %v432
    %v2197 = vunpack.c.l.b16 %v433
    %v2198 = vunpack.c.l.b16 %v434
    %v2199 = vunpack.c.l.b16 %v435
    %v2200 = vunpack.c.l.b16 %v436
    %v2201 = vunpack.c.l.b16 %v437
    %v2202 = vunpack.c.l.b16 %v438
    %v2203 = vunpack.c.l.b16 %v439
    %v2204 = vunpack.c.l.b16 %v440
    %v2205 = vunpack.c.l.b16 %v441
    %v2206 = vunpack.c.l.b16 %v442
    %v2207 = vunpack.c.l.b16 %v443
    %v2208 = vunpack.c.l.b16 %v444
    %v2209 = vunpack.c.l.b16 %v445
    %v2210 = vunpack.c.l.b16 %v446
    %v2211 = vunpack.c.l.b16 %v447
    %v2212 = vunpack.c.l.b16 %v448
    %v2213 = vunpack.c.l.b16 %v449
    %v2214 = vunpack.c.l.b16 %v450
    %v2215 = vunpack.c.l.b16 %v451
    %v2216 = vunpack.c.l.b16 %v452
    %v2217 = vunpack.c.l.b16 %v453
    %v2218 = vunpack.c.l.b16 %v454
    %v2219 = vunpack.c.l.b16 %v455
    %v2220 = vunpack.c.l.b16 %v456
    %v2221 = vunpack.c.l.b16 %v457
    %v2222 = vunpack.c.l.b16 %v458
    %v2223 = vunpack.c.l.b16 %v459
    %v2224 = vunpack.c.l.b16 %v460
    %v2225 = vunpack.c.l.b16 %v461
    %v2226 = vunpack.c.l.b16 %v462
    %v2227 = vunpack.c.l.b16 %v463
    %v2228 = vunpack.c.l.b16 %v464
    %v2229 = vunpack.c.l.b16 %v465
    %v2230 = vunpack.c.l.b16 %v466
    %v2231 = vunpack.c.l.b16 %v467
    %v2232 = vunpack.c.l.b16 %v468
    %v2233 = vunpack.c.l.b16 %v469
    %v2234 = vunpack.c.l.b16 %v470
    %v2235 = vunpack.c.l.b16 %v471
    %v2236 = vunpack.c.l.b16 %v472
    %v2237 = vunpack.c.l.b16 %v473
    %v2238 = vunpack.c.l.b16 %v474
    %v2239 = vunpack.c.l.b16 %v475
    %v2240 = vunpack.c.l.b16 %v476
    %v2241 = vunpack.c.l.b16 %v477
    %v2242 = vunpack.c.l.b16 %v478
    %v2243 = vunpack.c.l.b16 %v479
    %v2244 = vunpack.c.l.b16 %v480
    %v2245 = vunpack.c.l.b16 %v481
    %v2246 = vunpack.c.l.b16 %v482
    %v2247 = vunpack.c.l.b16 %v483
    %v2248 = vunpack.c.l.b16 %v484
    %v2249 = vunpack.c.l.b16 %v485
    %v2250 = vunpack.c.l.b16 %v486
    %v2251 = vunpack.c.l.b16 %v487
    %v2252 = vunpack.c.l.b16 %v488
    %v2253 = vunpack.c.l.b16 %v489
    %v2254 = vunpack.c.l.b16 %v490
    %v2255 = vunpack.c.l.b16 %v491
    %v2256 = vunpack.c.l.b16 %v492
    %v2257 = vunpack.c.l.b16 %v493
    %v2258 = vunpack.c.l.b16 %v494
    %v2259 = vunpack.c.l.b16 %v495
    %v2260 = vunpack.c.l.b16 %v496
    %v2261 = vunpack.c.l.b16 %v497
    %v2262 = vunpack.c.l.b16 %v498
    %v2263 = vunpack.c.l.b16 %v499
    %v2264 = vunpack.c.l.b16 %v500
    %v2265 = vunpack.c.l.b16 %v501
    %v2266 = vunpack.c.l.b16 %v502
    %v2267 = vunpack.c.l.b16 %v503
    %v2268 = vunpack.c.l.b16 %v504
    %v2269 = vunpack.c.l.b16 %v505
    %v2270 = vunpack.c.l.b16 %v506
    %v2271 = vunpack.c.l.b16 %v507
    %v2272 = vunpack.c.l.b16 %v508
    %v2273 = vunpack.c.l.b16 %v509
    %v2274 = vunpack.c.l.b16 %v510
    %v2275 = vunpack.c.l.b16 %v511
    %v2276 = vunpack.c.l.b16 %v512
    %v2277 = vunpack.c.l.b16 %v513
    %v2278 = vunpack.c.l.b16 %v514
    %v2279 = vunpack.c.l.b16 %v515
    %v2280 = vunpack.c.l.b16 %v516
    %v2281 = vunpack.c.l.b16 %v517
    %v2282 = vunpack.c.l.b16 %v518
    %v2283 = vunpack.c.l.b16 %v519
    %v2284 = vunpack.c.l.b16 %v520
    %v2285 = vunpack.c.l.b16 %v521
    %v2286 = vunpack.c.l.b16 %v522
    %v2287 = vunpack.c.l.b16 %v523
    %v2288 = vunpack.c.l.b16 %v524
    %v2289 = vunpack.c.l.b16 %v525
    %v2290 = vunpack.c.l.b16 %v526
    %v2291 = vunpack.c.l.b16 %v527
    %v2292 = vunpack.c.l.b16 %v528
    %v2293 = vunpack.c.l.b16 %v529
    %v2294 = vunpack.c.l.b16 %v530
    %v2295 = vunpack.c.l.b16 %v531
    %v2296 = vunpack.c.l.b16 %v532
    %v2297 = vunpack.c.l.b16 %v533
    %v2298 = vunpack.c.l.b16 %v534
    %v2299 = vunpack.c.l.b16 %v535
    %v2300 = vunpack.c.l.b16 %v536
    %v2301 = vunpack.c.l.b16 %v537
    %v2302 = vunpack.c.l.b16 %v538
    %v2303 = vunpack.c.l.b16 %v539
    %v2304 = vunpack.c.l.b16 %v540
    %v2305 = vunpack.c.l.b16 %v541
    %v2306 = vunpack.c.l.b16 %v542
    %v2307 = vunpack.c.l.b16 %v543
    %v2308 = vunpack.c.l.b16 %v544
    %v2309 = vunpack.c.l.b16 %v545
    %v2310 = vunpack.c.l.b16 %v546
    %v2311 = vunpack.c.l.b16 %v547
    %v2312 = vunpack.c.l.b16 %v548
    %v2313 = vunpack.c.l.b16 %v549
    %v2314 = vunpack.c.l.b16 %v550
    %v2315 = vunpack.c.l.b16 %v551
    %v2316 = vunpack.c.l.b16 %v552
    %v2317 = vunpack.c.l.b16 %v553
    %v2318 = vunpack.c.l.b16 %v554
    %v2319 = vunpack.c.l.b16 %v555
    %v2320 = vunpack.c.l.b16 %v556
    %v2321 = vunpack.c.l.b16 %v557
    %v2322 = vunpack.c.l.b16 %v558
    %v2323 = vunpack.c.l.b16 %v559
    %v2324 = vunpack.c.l.b16 %v560
    %v2325 = vunpack.c.l.b16 %v561
    %v2326 = vunpack.c.l.b16 %v562
    %v2327 = vunpack.c.l.b16 %v563
    %v2328 = vunpack.c.l.b16 %v564
    %v2329 = vunpack.c.l.b16 %v565
    %v2330 = vunpack.c.l.b16 %v566
    %v2331 = vunpack.c.l.b16 %v567
    %v2332 = vunpack.c.l.b16 %v568
    %v2333 = vunpack.c.l.b16 %v569
    %v2334 = vunpack.c.l.b16 %v570
    %v2335 = vunpack.c.l.b16 %v571
    %v2336 = vunpack.c.l.b16 %v572
    %v2337 = vunpack.c.l.b16 %v573
    %v2338 = vunpack.c.l.b16 %v574
    %v2339 = vunpack.c.l.b16 %v575
    %v2340 = vunpack.c.l.b16 %v576
    %v2341 = vunpack.c.l.b16 %v577
    %v2342 = vunpack.c.l.b16 %v578
    %v2343 = vunpack.c.l.b16 %v579
    %v2344 = vunpack.c.l.b16 %v580
    %v2345 = vunpack.c.l.b16 %v581
    %v2346 = vunpack.c.l.b16 %v582
    %v2347 = vunpack.c.l.b16 %v583
    %v2348 = vunpack.c.l.b16 %v584
    %v2349 = vunpack.c.l.b16 %v585
    %v2350 = vunpack.c.l.b16 %v586
    %v2351 = vunpack.c.l.b16 %v587
    %v2352 = vunpack.c.l.b16 %v588
    %v2353 = vunpack.c.l.b16 %v589
    %v2354 = vunpack.c.l.b16 %v590
    %v2355 = vunpack.c.l.b16 %v591
    %v2356 = vunpack.c.l.b16 %v592
    %v2357 = vunpack.c.l.b16 %v593
    %v2358 = vunpack.c.l.b16 %v594
    %v2359 = vunpack.c.l.b16 %v595
    %v2360 = vunpack.c.l.b16 %v596
    %v2361 = vunpack.c.l.b16 %v597
    %v2362 = vunpack.c.l.b16 %v598
    %v2363 = vunpack.c.l.b16 %v599
    %v2364 = vunpack.c.l.b16 %v600
    %v2365 = vunpack.c.l.b16 %v601
    %v2366 = vunpack.c.l.b16 %v602
    %v2367 = vunpack.c.l.b16 %v603
    %v2368 = vunpack.c.l.b16 %v604
    %v2369 = vunpack.c.l.b16 %v605
    %v2370 = vunpack.c.l.b16 %v606
    %v2371 = vunpack.c.l.b16 %v607
    %v2372 = vunpack.c.l.b16 %v608
    %v2373 = vunpack.c.l.b16 %v609
    %v2374 = vunpack.c.l.b16 %v610
    %v2375 = vunpack.c.l.b16 %v611
    %v2376 = vunpack.c.l.b16 %v612
    %v2377 = vunpack.c.l.b16 %v613
    %v2378 = vunpack.c.l.b16 %v614
    %v2379 = vunpack.c.l.b16 %v615
    %v2380 = vunpack.c.l.b16 %v616
    %v2381 = vunpack.c.l.b16 %v617
    %v2382 = vunpack.c.l.b16 %v618
    %v2383 = vunpack.c.l.b16 %v619
    %v2384 = vunpack.c.l.b16 %v620
    %v2385 = vunpack.c.l.b16 %v621
    %v2386 = vunpack.c.l.b16 %v622
    %v2387 = vunpack.c.l.b16 %v623
    %v2388 = vunpack.c.l.b16 %v624
    %v2389 = vunpack.c.l.b16 %v625
    %v2390 = vunpack.c.l.b16 %v626
    %v2391 = vunpack.c.l.b16 %v627
    %v2392 = vunpack.c.l.b16 %v628
    %v2393 = vunpack.c.l.b16 %v629
    %v2394 = vunpack.c.l.b16 %v630
    %v2395 = vunpack.c.l.b16 %v631
    %v2396 = vunpack.c.l.b16 %v632
    %v2397 = vunpack.c.l.b16 %v633
    %v2398 = vunpack.c.l.b16 %v634
    %v2399 = vunpack.c.l.b16 %v635
    %v2400 = vunpack.c.l.b16 %v636
    %v2401 = vunpack.c.l.b16 %v637
    %v2402 = vunpack.c.l.b16 %v638
    %v2403 = vunpack.c.l.b16 %v639
    %v2404 = vunpack.c.l.b16 %v640
    %v2405 = vunpack.c.l.b16 %v641
    %v2406 = vunpack.c.l.b16 %v642
    %v2407 = vunpack.c.l.b16 %v643
    %v2408 = vunpack.c.l.b16 %v644
    %v2409 = vunpack.c.l.b16 %v645
    %v2410 = vunpack.c.l.b16 %v646
    %v2411 = vunpack.c.l.b16 %v647
    %v2412 = vunpack.c.l.b16 %v648
    %v2413 = vunpack.c.l.b16 %v649
    %v2414 = vunpack.c.l.b16 %v650
    %v2415 = vunpack.c.l.b16 %v651
    %v2416 = vunpack.c.l.b16 %v652
    %v2417 = vunpack.c.l.b16 %v653
    %v2418 = vunpack.c.l.b16 %v654
    %v2419 = vunpack.c.l.b16 %v655
    %v2420 = vunpack.c.l.b16 %v656
    %v2421 = vunpack.c.l.b16 %v657
    %v2422 = vunpack.c.l.b16 %v658
    %v2423 = vunpack.c.l.b16 %v659
    %v2424 = vunpack.c.l.b16 %v660
    %v2425 = vunpack.c.l.b16 %v661
    %v2426 = vunpack.c.l.b16 %v662
    %v2427 = vunpack.c.l.b16 %v663
    %v2428 = vunpack.c.l.b16 %v664
    %v2429 = vunpack.c.l.b16 %v665
    %v2430 = vunpack.c.l.b16 %v666
    %v2431 = vunpack.c.l.b16 %v667
    %v2432 = vunpack.c.l.b16 %v668
    %v2433 = vunpack.c.l.b16 %v669
    %v2434 = vunpack.c.l.b16 %v670
    %v2435 = vunpack.c.l.b16 %v671
    %v2436 = vunpack.c.l.b16 %v672
    %v2437 = vunpack.c.l.b16 %v673
    %v2438 = vunpack.c.l.b16 %v674
    %v2439 = vunpack.c.l.b16 %v675
    %v2440 = vunpack.c.l.b16 %v676
    %v2441 = vunpack.c.l.b16 %v677
    %v2442 = vunpack.c.l.b16 %v678
    %v2443 = vunpack.c.l.b16 %v679
    %v2444 = vunpack.c.l.b16 %v680
    %v2445 = vunpack.c.l.b16 %v681
    %v2446 = vunpack.c.l.b16 %v682
    %v2447 = vunpack.c.l.b16 %v683
    %v2448 = vunpack.c.l.b16 %v684
    %v2449 = vunpack.c.l.b16 %v685
    %v2450 = vunpack.c.l.b16 %v686
    %v2451 = vunpack.c.l.b16 %v687
    %v2452 = vunpack.c.l.b16 %v688
    %v2453 = vunpack.c.l.b16 %v689
    %v2454 = vunpack.c.l.b16 %v690
    %v2455 = vunpack.c.l.b16 %v691
    %v2456 = vunpack.c.l.b16 %v692
    %v2457 = vunpack.c.l.b16 %v693
    %v2458 = vunpack.c.l.b16 %v694
    %v2459 = vunpack.c.l.b16 %v695
    %v2460 = vunpack.c.l.b16 %v696
    %v2461 = vunpack.c.l.b16 %v697
    %v2462 = vunpack.c.l.b16 %v698
    %v2463 = vunpack.c.l.b16 %v699
    %v2464 = vunpack.c.l.b16 %v700
    %v2465 = vunpack.c.l.b16 %v701
    %v2466 = vunpack.c.l.b16 %v702
    %v2467 = vunpack.c.l.b16 %v703
    %v2468 = vunpack.c.l.b16 %v704
    %v2469 = vunpack.c.l.b16 %v705
    %v2470 = vunpack.c.l.b16 %v706
    %v2471 = vunpack.c.l.b16 %v707
    %v2472 = vunpack.c.l.b16 %v708
    %v2473 = vunpack.c.l.b16 %v709
    %v2474 = vunpack.c.l.b16 %v710
    %v2475 = vunpack.c.l.b16 %v711
    %v2476 = vunpack.c.l.b16 %v712
    %v2477 = vunpack.c.l.b16 %v713
    %v2478 = vunpack.c.l.b16 %v714
    %v2479 = vunpack.c.l.b16 %v715
    %v2480 = vunpack.c.l.b16 %v716
    %v2481 = vunpack.c.l.b16 %v717
    %v2482 = vunpack.c.l.b16 %v718
    %v2483 = vunpack.c.l.b16 %v719
    %v2484 = vunpack.c.l.b16 %v720
    %v2485 = vunpack.c.l.b16 %v721
    %v2486 = vunpack.c.l.b16 %v722
    %v2487 = vunpack.c.l.b16 %v723
    %v2488 = vunpack.c.l.b16 %v724
    %v2489 = vunpack.c.l.b16 %v725
    %v2490 = vunpack.c.l.b16 %v726
    %v2491 = vunpack.c.l.b16 %v727
    %v2492 = vunpack.c.l.b16 %v728
    %v2493 = vunpack.c.l.b16 %v729
    %v2494 = vunpack.c.l.b16 %v730
    %v2495 = vunpack.c.l.b16 %v731
    %v2496 = vunpack.c.l.b16 %v732
    %v2497 = vunpack.c.l.b16 %v733
    %v2498 = vunpack.c.l.b16 %v734
    %v2499 = vunpack.c.l.b16 %v735
    %v2500 = vunpack.c.l.b16 %v736
    %v2501 = vunpack.c.l.b16 %v737
    %v2502 = vunpack.c.l.b16 %v738
    %v2503 = vunpack.c.l.b16 %v739
    %v2504 = vunpack.c.l.b16 %v740
    %v2505 = vunpack.c.l.b16 %v741
    %v2506 = vunpack.c.l.b16 %v742
    %v2507 = vunpack.c.l.b16 %v743
    %v2508 = vunpack.c.l.b16 %v744
    %v2509 = vunpack.c.l.b16 %v745
    %v2510 = vunpack.c.l.b16 %v746
    %v2511 = vunpack.c.l.b16 %v747
    %v2512 = vunpack.c.l.b16 %v748
    %v2513 = vunpack.c.l.b16 %v749
    %v2514 = vunpack.c.l.b16 %v750
    %v2515 = vunpack.c.l.b16 %v751
    %v2516 = vunpack.c.l.b16 %v752
    %v2517 = vunpack.c.l.b16 %v753
    %v2518 = vunpack.c.l.b16 %v754
    %v2519 = vunpack.c.l.b16 %v755
    %v2520 = vunpack.c.l.b16 %v756
    %v2521 = vunpack.c.l.b16 %v757
    %v2522 = vunpack.c.l.b16 %v758
    %v2523 = vunpack.c.l.b16 %v759
    %v2524 = vunpack.c.l.b16 %v760
    %v2525 = vunpack.c.l.b16 %v761
    %v2526 = vunpack.c.l.b16 %v762
    %v2527 = vunpack.c.l.b16 %v763
    %v2528 = vunpack.c.l.b16 %v764
    %v2529 = vunpack.c.l.b16 %v765
    %v2530 = vunpack.c.l.b16 %v766
    %v2531 = vunpack.c.l.b16 %v767
    %v2532 = vunpack.c.l.b16 %v768
    %v2533 = vunpack.c.l.b16 %v769
    %v2534 = vunpack.c.l.b16 %v770
    %v2535 = vunpack.c.l.b16 %v771
    %v2536 = vunpack.c.l.b16 %v772
    %v2537 = vunpack.c.l.b16 %v773
    %v2538 = vunpack.c.l.b16 %v774
    %v2539 = vunpack.c.l.b16 %v775
    %v2540 = vunpack.c.l.b16 %v776
    %v2541 = vunpack.c.l.b16 %v777
    %v2542 = vunpack.c.l.b16 %v778
    %v2543 = vunpack.c.l.b16 %v779
    %v2544 = vunpack.c.l.b16 %v780
    %v2545 = vunpack.c.l.b16 %v781
    %v2546 = vunpack.c.l.b16 %v782
    %v2547 = vunpack.c.l.b16 %v783
    %v2548 = vunpack.c.l.b16 %v784
    %v2549 = vunpack.c.l.b16 %v785
    %v2550 = vunpack.c.l.b16 %v786
    %v2551 = vunpack.c.l.b16 %v787
    %v2552 = vunpack.c.l.b16 %v788
    %v2553 = vunpack.c.l.b16 %v789
    %v2554 = vunpack.c.l.b16 %v790
    %v2555 = vunpack.c.l.b16 %v791
    %v2556 = vunpack.c.l.b16 %v792
    %v2557 = vunpack.c.l.b16 %v793
    %v2558 = vunpack.c.l.b16 %v794
    %v2559 = vunpack.c.l.b16 %v795
    %v2560 = vunpack.c.l.b16 %v796
    %v2561 = vunpack.c.l.b16 %v797
    %v2562 = vunpack.c.l.b16 %v798
    %v2563 = vunpack.c.l.b16 %v799
    %v2564 = vunpack.c.l.b16 %v800
    %v2565 = vunpack.c.l.b16 %v801
    %v2566 = vunpack.c.l.b16 %v802
    %v2567 = vunpack.c.l.b16 %v803
    %v2568 = vunpack.c.l.b16 %v804
    %v2569 = vunpack.c.l.b16 %v805
    %v2570 = vunpack.c.l.b16 %v806
    %v2571 = vunpack.c.l.b16 %v807
    %v2572 = vunpack.c.l.b16 %v808
    %v2573 = vunpack.c.l.b16 %v809
    %v2574 = vunpack.c.l.b16 %v810
    %v2575 = vunpack.c.l.b16 %v811
    %v2576 = vunpack.c.l.b16 %v812
    %v2577 = vunpack.c.l.b16 %v813
    %v2578 = vunpack.c.l.b16 %v814
    %v2579 = vunpack.c.l.b16 %v815
    %v2580 = vunpack.c.l.b16 %v816
    %v2581 = vunpack.c.l.b16 %v817
    %v2582 = vunpack.c.l.b16 %v818
    %v2583 = vunpack.c.l.b16 %v819
    %v2584 = vunpack.c.l.b16 %v820
    %v2585 = vunpack.c.l.b16 %v821
    %v2586 = vunpack.c.l.b16 %v822
    %v2587 = vunpack.c.l.b16 %v823
    %v2588 = vunpack.c.l.b16 %v824
    %v2589 = vunpack.c.l.b16 %v825
    %v2590 = vunpack.c.l.b16 %v826
    %v2591 = vunpack.c.l.b16 %v827
    %v2592 = vunpack.c.l.b16 %v828
    %v2593 = vunpack.c.l.b16 %v829
    %v2594 = vunpack.c.l.b16 %v830
    %v2595 = vunpack.c.l.b16 %v831
    %v2596 = vunpack.c.l.b16 %v832
    %v2597 = vunpack.c.l.b16 %v833
    %v2598 = vunpack.c.l.b16 %v834
    %v2599 = vunpack.c.l.b16 %v835
    %v2600 = vunpack.c.l.b16 %v836
    %v2601 = vunpack.c.l.b16 %v837
    %v2602 = vunpack.c.l.b16 %v838
    %v2603 = vunpack.c.l.b16 %v839
    %v2604 = vunpack.c.l.b16 %v840
    %v2605 = vunpack.c.l.b16 %v841
    %v2606 = vunpack.c.l.b16 %v842
    %v2607 = vunpack.c.l.b16 %v843
    %v2608 = vunpack.c.l.b16 %v844
    %v2609 = vunpack.c.l.b16 %v845
    %v2610 = vunpack.c.l.b16 %v846
    %v2611 = vunpack.c.l.b16 %v847
    %v2612 = vunpack.c.l.b16 %v848
    %v2613 = vunpack.c.l.b16 %v849
    %v2614 = vunpack.c.l.b16 %v850
    %v2615 = vunpack.c.l.b16 %v851
    %v2616 = vunpack.c.l.b16 %v852
    %v2617 = vunpack.c.l.b16 %v853
    %v2618 = vunpack.c.l.b16 %v854
    %v2619 = vunpack.c.l.b16 %v855
    %v2620 = vunpack.c.l.b16 %v856
    %v2621 = vunpack.c.l.b16 %v857
    %v2622 = vunpack.c.l.b16 %v858
    %v2623 = vunpack.c.l.b16 %v859
    %v2624 = vunpack.c.l.b16 %v860
    %v2625 = vunpack.c.l.b16 %v861
    %v2626 = vunpack.c.l.b16 %v862
    %v2627 = vunpack.c.l.b16 %v863
    %v2628 = vunpack.c.l.b16 %v864
    %v2629 = vunpack.c.l.b16 %v865
    %v2630 = vunpack.c.l.b16 %v866
    %v2631 = vunpack.c.l.b16 %v867
    %v2632 = vunpack.c.l.b16 %v868
    %v2633 = vunpack.c.l.b16 %v869
    %v2634 = vunpack.c.l.b16 %v870
    %v2635 = vunpack.c.l.b16 %v871
    %v2636 = vpack.c.b16 %v1853, %v1852
    %v2637 = vpack.c.b16 %v1855, %v1854
    %v2638 = vpack.c.b16 %v1857, %v1856
    %v2639 = vpack.c.b16 %v1859, %v1858
    %v2640 = vpack.c.b16 %v1861, %v1860
    %v2641 = vpack.c.b16 %v1863, %v1862
    %v2642 = vpack.c.b16 %v1865, %v1864
    %v2643 = vpack.c.b16 %v1867, %v1866
    %v2644 = vpack.c.b16 %v1869, %v1868
    %v2645 = vpack.c.b16 %v1871, %v1870
    %v2646 = vpack.c.b16 %v1873, %v1872
    %v2647 = vpack.c.b16 %v1875, %v1874
    %v2648 = vpack.c.b16 %v1877, %v1876
    %v2649 = vpack.c.b16 %v1879, %v1878
    %v2650 = vpack.c.b16 %v1881, %v1880
    %v2651 = vpack.c.b16 %v1883, %v1882
    %v2652 = vpack.c.b16 %v1885, %v1884
    %v2653 = vpack.c.b16 %v1887, %v1886
    %v2654 = vpack.c.b16 %v1889, %v1888
    %v2655 = vpack.c.b16 %v1891, %v1890
    %v2656 = vpack.c.b16 %v1893, %v1892
    %v2657 = vpack.c.b16 %v1895, %v1894
    %v2658 = vpack.c.b16 %v1897, %v1896
    %v2659 = vpack.c.b16 %v1899, %v1898
    %v2660 = vpack.c.b16 %v1901, %v1900
    %v2661 = vpack.c.b16 %v1903, %v1902
    %v2662 = vpack.c.b16 %v1905, %v1904
    %v2663 = vpack.c.b16 %v1907, %v1906
    %v2664 = vpack.c.b16 %v1909, %v1908
    %v2665 = vpack.c.b16 %v1911, %v1910
    %v2666 = vpack.c.b16 %v1913, %v1912
    %v2667 = vpack.c.b16 %v1915, %v1914
    %v2668 = vpack.c.b16 %v1917, %v1916
    %v2669 = vpack.c.b16 %v1919, %v1918
    %v2670 = vpack.c.b16 %v1921, %v1920
    %v2671 = vpack.c.b16 %v1923, %v1922
    %v2672 = vpack.c.b16 %v1925, %v1924
    %v2673 = vpack.c.b16 %v1927, %v1926
    %v2674 = vpack.c.b16 %v1929, %v1928
    %v2675 = vpack.c.b16 %v1931, %v1930
    %v2676 = vpack.c.b16 %v1933, %v1932
    %v2677 = vpack.c.b16 %v1935, %v1934
    %v2678 = vpack.c.b16 %v1937, %v1936
    %v2679 = vpack.c.b16 %v1939, %v1938
    %v2680 = vpack.c.b16 %v1941, %v1940
    %v2681 = vpack.c.b16 %v1943, %v1942
    %v2682 = vpack.c.b16 %v1945, %v1944
    %v2683 = vpack.c.b16 %v1947, %v1946
    %v2684 = vpack.c.b16 %v1949, %v1948
    %v2685 = vpack.c.b16 %v1951, %v1950
    %v2686 = vpack.c.b16 %v1953, %v1952
    %v2687 = vpack.c.b16 %v1955, %v1954
    %v2688 = vpack.c.b16 %v1957, %v1956
    %v2689 = vpack.c.b16 %v1959, %v1958
    %v2690 = vpack.c.b16 %v1961, %v1960
    %v2691 = vpack.c.b16 %v1963, %v1962
    %v2692 = vpack.c.b16 %v1965, %v1964
    %v2693 = vpack.c.b16 %v1967, %v1966
    %v2694 = vpack.c.b16 %v1969, %v1968
    %v2695 = vpack.c.b16 %v1971, %v1970
    %v2696 = vpack.c.b16 %v1973, %v1972
    %v2697 = vpack.c.b16 %v1975, %v1974
    %v2698 = vpack.c.b16 %v1977, %v1976
    %v2699 = vpack.c.b16 %v1979, %v1978
    %v2700 = vpack.c.b16 %v1981, %v1980
    %v2701 = vpack.c.b16 %v1983, %v1982
    %v2702 = vpack.c.b16 %v1985, %v1984
    %v2703 = vpack.c.b16 %v1987, %v1986
    %v2704 = vpack.c.b16 %v1989, %v1988
    %v2705 = vpack.c.b16 %v1991, %v1990
    %v2706 = vpack.c.b16 %v1993, %v1992
    %v2707 = vpack.c.b16 %v1995, %v1994
    %v2708 = vpack.c.b16 %v1997, %v1996
    %v2709 = vpack.c.b16 %v1999, %v1998
    %v2710 = vpack.c.b16 %v2001, %v2000
    %v2711 = vpack.c.b16 %v2003, %v2002
    %v2712 = vpack.c.b16 %v2005, %v2004
    %v2713 = vpack.c.b16 %v2007, %v2006
    %v2714 = vpack.c.b16 %v2009, %v2008
    %v2715 = vpack.c.b16 %v2011, %v2010
    %v2716 = vpack.c.b16 %v2013, %v2012
    %v2717 = vpack.c.b16 %v2015, %v2014
    %v2718 = vpack.c.b16 %v2017, %v2016
    %v2719 = vpack.c.b16 %v2019, %v2018
    %v2720 = vpack.c.b16 %v2021, %v2020
    %v2721 = vpack.c.b16 %v2023, %v2022
    %v2722 = vpack.c.b16 %v2025, %v2024
    %v2723 = vpack.c.b16 %v2027, %v2026
    %v2724 = vpack.c.b16 %v2029, %v2028
    %v2725 = vpack.c.b16 %v2031, %v2030
    %v2726 = vpack.c.b16 %v2033, %v2032
    %v2727 = vpack.c.b16 %v2035, %v2034
    %v2728 = vpack.c.b16 %v2037, %v2036
    %v2729 = vpack.c.b16 %v2039, %v2038
    %v2730 = vpack.c.b16 %v2041, %v2040
    %v2731 = vpack.c.b16 %v2043, %v2042
    %v2732 = vpack.c.b16 %v2045, %v2044
    %v2733 = vpack.c.b16 %v2047, %v2046
    %v2734 = vpack.c.b16 %v2049, %v2048
    %v2735 = vpack.c.b16 %v2051, %v2050
    %v2736 = vpack.c.b16 %v2053, %v2052
    %v2737 = vpack.c.b16 %v2055, %v2054
    %v2738 = vpack.c.b16 %v2057, %v2056
    %v2739 = vpack.c.b16 %v2059, %v2058
    %v2740 = vpack.c.b16 %v2061, %v2060
    %v2741 = vpack.c.b16 %v2063, %v2062
    %v2742 = vpack.c.b16 %v2065, %v2064
    %v2743 = vpack.c.b16 %v2067, %v2066
    %v2744 = vpack.c.b16 %v2069, %v2068
    %v2745 = vpack.c.b16 %v2071, %v2070
    %v2746 = vpack.c.b16 %v2073, %v2072
    %v2747 = vpack.c.b16 %v2075, %v2074
    %v2748 = vpack.c.b16 %v2077, %v2076
    %v2749 = vpack.c.b16 %v2079, %v2078
    %v2750 = vpack.c.b16 %v2081, %v2080
    %v2751 = vpack.c.b16 %v2083, %v2082
    %v2752 = vpack.c.b16 %v2085, %v2084
    %v2753 = vpack.c.b16 %v2087, %v2086
    %v2754 = vpack.c.b16 %v2089, %v2088
    %v2755 = vpack.c.b16 %v2091, %v2090
    %v2756 = vpack.c.b16 %v2093, %v2092
    %v2757 = vpack.c.b16 %v2095, %v2094
    %v2758 = vpack.c.b16 %v2097, %v2096
    %v2759 = vpack.c.b16 %v2099, %v2098
    %v2760 = vpack.c.b16 %v2101, %v2100
    %v2761 = vpack.c.b16 %v2103, %v2102
    %v2762 = vpack.c.b16 %v2105, %v2104
    %v2763 = vpack.c.b16 %v2107, %v2106
    %v2764 = vpack.c.b16 %v2109, %v2108
    %v2765 = vpack.c.b16 %v2111, %v2110
    %v2766 = vpack.c.b16 %v2113, %v2112
    %v2767 = vpack.c.b16 %v2115, %v2114
    %v2768 = vpack.c.b16 %v2117, %v2116
    %v2769 = vpack.c.b16 %v2119, %v2118
    %v2770 = vpack.c.b16 %v2121, %v2120
    %v2771 = vpack.c.b16 %v2123, %v2122
    %v2772 = vpack.c.b16 %v2125, %v2124
    %v2773 = vpack.c.b16 %v2127, %v2126
    %v2774 = vpack.c.b16 %v2129, %v2128
    %v2775 = vpack.c.b16 %v2131, %v2130
    %v2776 = vpack.c.b16 %v2133, %v2132
    %v2777 = vpack.c.b16 %v2135, %v2134
    %v2778 = vpack.c.b16 %v2137, %v2136
    %v2779 = vpack.c.b16 %v2139, %v2138
    %v2780 = vpack.c.b16 %v2141, %v2140
    %v2781 = vpack.c.b16 %v2143, %v2142
    %v2782 = vpack.c.b16 %v2145, %v2144
    %v2783 = vpack.c.b16 %v2147, %v2146
    %v2784 = vpack.c.b16 %v2149, %v2148
    %v2785 = vpack.c.b16 %v2151, %v2150
    %v2786 = vpack.c.b16 %v2153, %v2152
    %v2787 = vpack.c.b16 %v2155, %v2154
    %v2788 = vpack.c.b16 %v2157, %v2156
    %v2789 = vpack.c.b16 %v2159, %v2158
    %v2790 = vpack.c.b16 %v2161, %v2160
    %v2791 = vpack.c.b16 %v2163, %v2162
    %v2792 = vpack.c.b16 %v2165, %v2164
    %v2793 = vpack.c.b16 %v2167, %v2166
    %v2794 = vpack.c.b16 %v2169, %v2168
    %v2795 = vpack.c.b16 %v2171, %v2170
    %v2796 = vpack.c.b16 %v2173, %v2172
    %v2797 = vpack.c.b16 %v2175, %v2174
    %v2798 = vpack.c.b16 %v2177, %v2176
    %v2799 = vpack.c.b16 %v2179, %v2178
    %v2800 = vpack.c.b16 %v2181, %v2180
    %v2801 = vpack.c.b16 %v2183, %v2182
    %v2802 = vpack.c.b16 %v2185, %v2184
    %v2803 = vpack.c.b16 %v2187, %v2186
    %v2804 = vpack.c.b16 %v2189, %v2188
    %v2805 = vpack.c.b16 %v2191, %v2190
    %v2806 = vpack.c.b16 %v2193, %v2192
    %v2807 = vpack.c.b16 %v2195, %v2194
    %v2808 = vpack.c.b16 %v2197, %v2196
    %v2809 = vpack.c.b16 %v2199, %v2198
    %v2810 = vpack.c.b16 %v2201, %v2200
    %v2811 = vpack.c.b16 %v2203, %v2202
    %v2812 = vpack.c.b16 %v2205, %v2204
    %v2813 = vpack.c.b16 %v2207, %v2206
    %v2814 = vpack.c.b16 %v2209, %v2208
    %v2815 = vpack.c.b16 %v2211, %v2210
    %v2816 = vpack.c.b16 %v2213, %v2212
    %v2817 = vpack.c.b16 %v2215, %v2214
    %v2818 = vpack.c.b16 %v2217, %v2216
    %v2819 = vpack.c.b16 %v2219, %v2218
    %v2820 = vpack.c.b16 %v2221, %v2220
    %v2821 = vpack.c.b16 %v2223, %v2222
    %v2822 = vpack.c.b16 %v2225, %v2224
    %v2823 = vpack.c.b16 %v2227, %v2226
    %v2824 = vpack.c.b16 %v2229, %v2228
    %v2825 = vpack.c.b16 %v2231, %v2230
    %v2826 = vpack.c.b16 %v2233, %v2232
    %v2827 = vpack.c.b16 %v2235, %v2234
    %v2828 = vpack.c.b16 %v2237, %v2236
    %v2829 = vpack.c.b16 %v2239, %v2238
    %v2830 = vpack.c.b16 %v2241, %v2240
    %v2831 = vpack.c.b16 %v2243, %v2242
    %v2832 = vpack.c.b16 %v2245, %v2244
    %v2833 = vpack.c.b16 %v2247, %v2246
    %v2834 = vpack.c.b16 %v2249, %v2248
    %v2835 = vpack.c.b16 %v2251, %v2250
    %v2836 = vpack.c.b16 %v2253, %v2252
    %v2837 = vpack.c.b16 %v2255, %v2254
    %v2838 = vpack.c.b16 %v2257, %v2256
    %v2839 = vpack.c.b16 %v2259, %v2258
    %v2840 = vpack.c.b16 %v2261, %v2260
    %v2841 = vpack.c.b16 %v2263, %v2262
    %v2842 = vpack.c.b16 %v2265, %v2264
    %v2843 = vpack.c.b16 %v2267, %v2266
    %v2844 = vpack.c.b16 %v2269, %v2268
    %v2845 = vpack.c.b16 %v2271, %v2270
    %v2846 = vpack.c.b16 %v2273, %v2272
    %v2847 = vpack.c.b16 %v2275, %v2274
    %v2848 = vpack.c.b16 %v2277, %v2276
    %v2849 = vpack.c.b16 %v2279, %v2278
    %v2850 = vpack.c.b16 %v2281, %v2280
    %v2851 = vpack.c.b16 %v2283, %v2282
    %v2852 = vpack.c.b16 %v2285, %v2284
    %v2853 = vpack.c.b16 %v2287, %v2286
    %v2854 = vpack.c.b16 %v2289, %v2288
    %v2855 = vpack.c.b16 %v2291, %v2290
    %v2856 = vpack.c.b16 %v2293, %v2292
    %v2857 = vpack.c.b16 %v2295, %v2294
    %v2858 = vpack.c.b16 %v2297, %v2296
    %v2859 = vpack.c.b16 %v2299, %v2298
    %v2860 = vpack.c.b16 %v2301, %v2300
    %v2861 = vpack.c.b16 %v2303, %v2302
    %v2862 = vpack.c.b16 %v2305, %v2304
    %v2863 = vpack.c.b16 %v2307, %v2306
    %v2864 = vpack.c.b16 %v2309, %v2308
    %v2865 = vpack.c.b16 %v2311, %v2310
    %v2866 = vpack.c.b16 %v2313, %v2312
    %v2867 = vpack.c.b16 %v2315, %v2314
    %v2868 = vpack.c.b16 %v2317, %v2316
    %v2869 = vpack.c.b16 %v2319, %v2318
    %v2870 = vpack.c.b16 %v2321, %v2320
    %v2871 = vpack.c.b16 %v2323, %v2322
    %v2872 = vpack.c.b16 %v2325, %v2324
    %v2873 = vpack.c.b16 %v2327, %v2326
    %v2874 = vpack.c.b16 %v2329, %v2328
    %v2875 = vpack.c.b16 %v2331, %v2330
    %v2876 = vpack.c.b16 %v2333, %v2332
    %v2877 = vpack.c.b16 %v2335, %v2334
    %v2878 = vpack.c.b16 %v2337, %v2336
    %v2879 = vpack.c.b16 %v2339, %v2338
    %v2880 = vpack.c.b16 %v2341, %v2340
    %v2881 = vpack.c.b16 %v2343, %v2342
    %v2882 = vpack.c.b16 %v2345, %v2344
    %v2883 = vpack.c.b16 %v2347, %v2346
    %v2884 = vpack.c.b16 %v2349, %v2348
    %v2885 = vpack.c.b16 %v2351, %v2350
    %v2886 = vpack.c.b16 %v2353, %v2352
    %v2887 = vpack.c.b16 %v2355, %v2354
    %v2888 = vpack.c.b16 %v2357, %v2356
    %v2889 = vpack.c.b16 %v2359, %v2358
    %v2890 = vpack.c.b16 %v2361, %v2360
    %v2891 = vpack.c.b16 %v2363, %v2362
    %v2892 = vpack.c.b16 %v2365, %v2364
    %v2893 = vpack.c.b16 %v2367, %v2366
    %v2894 = vpack.c.b16 %v2369, %v2368
    %v2895 = vpack.c.b16 %v2371, %v2370
    %v2896 = vpack.c.b16 %v2373, %v2372
    %v2897 = vpack.c.b16 %v2375, %v2374
    %v2898 = vpack.c.b16 %v2377, %v2376
    %v2899 = vpack.c.b16 %v2379, %v2378
    %v2900 = vpack.c.b16 %v2381, %v2380
    %v2901 = vpack.c.b16 %v2383, %v2382
    %v2902 = vpack.c.b16 %v2385, %v2384
    %v2903 = vpack.c.b16 %v2387, %v2386
    %v2904 = vpack.c.b16 %v2389, %v2388
    %v2905 = vpack.c.b16 %v2391, %v2390
    %v2906 = vpack.c.b16 %v2393, %v2392
    %v2907 = vpack.c.b16 %v2395, %v2394
    %v2908 = vpack.c.b16 %v2397, %v2396
    %v2909 = vpack.c.b16 %v2399, %v2398
    %v2910 = vpack.c.b16 %v2401, %v2400
    %v2911 = vpack.c.b16 %v2403, %v2402
    %v2912 = vpack.c.b16 %v2405, %v2404
    %v2913 = vpack.c.b16 %v2407, %v2406
    %v2914 = vpack.c.b16 %v2409, %v2408
    %v2915 = vpack.c.b16 %v2411, %v2410
    %v2916 = vpack.c.b16 %v2413, %v2412
    %v2917 = vpack.c.b16 %v2415, %v2414
    %v2918 = vpack.c.b16 %v2417, %v2416
    %v2919 = vpack.c.b16 %v2419, %v2418
    %v2920 = vpack.c.b16 %v2421, %v2420
    %v2921 = vpack.c.b16 %v2423, %v2422
    %v2922 = vpack.c.b16 %v2425, %v2424
    %v2923 = vpack.c.b16 %v2427, %v2426
    %v2924 = vpack.c.b16 %v2429, %v2428
    %v2925 = vpack.c.b16 %v2431, %v2430
    %v2926 = vpack.c.b16 %v2433, %v2432
    %v2927 = vpack.c.b16 %v2435, %v2434
    %v2928 = vpack.c.b16 %v2437, %v2436
    %v2929 = vpack.c.b16 %v2439, %v2438
    %v2930 = vpack.c.b16 %v2441, %v2440
    %v2931 = vpack.c.b16 %v2443, %v2442
    %v2932 = vpack.c.b16 %v2445, %v2444
    %v2933 = vpack.c.b16 %v2447, %v2446
    %v2934 = vpack.c.b16 %v2449, %v2448
    %v2935 = vpack.c.b16 %v2451, %v2450
    %v2936 = vpack.c.b16 %v2453, %v2452
    %v2937 = vpack.c.b16 %v2455, %v2454
    %v2938 = vpack.c.b16 %v2457, %v2456
    %v2939 = vpack.c.b16 %v2459, %v2458
    %v2940 = vpack.c.b16 %v2461, %v2460
    %v2941 = vpack.c.b16 %v2463, %v2462
    %v2942 = vpack.c.b16 %v2465, %v2464
    %v2943 = vpack.c.b16 %v2467, %v2466
    %v2944 = vpack.c.b16 %v2469, %v2468
    %v2945 = vpack.c.b16 %v2471, %v2470
    %v2946 = vpack.c.b16 %v2473, %v2472
    %v2947 = vpack.c.b16 %v2475, %v2474
    %v2948 = vpack.c.b16 %v2477, %v2476
    %v2949 = vpack.c.b16 %v2479, %v2478
    %v2950 = vpack.c.b16 %v2481, %v2480
    %v2951 = vpack.c.b16 %v2483, %v2482
    %v2952 = vpack.c.b16 %v2485, %v2484
    %v2953 = vpack.c.b16 %v2487, %v2486
    %v2954 = vpack.c.b16 %v2489, %v2488
    %v2955 = vpack.c.b16 %v2491, %v2490
    %v2956 = vpack.c.b16 %v2493, %v2492
    %v2957 = vpack.c.b16 %v2495, %v2494
    %v2958 = vpack.c.b16 %v2497, %v2496
    %v2959 = vpack.c.b16 %v2499, %v2498
    %v2960 = vpack.c.b16 %v2501, %v2500
    %v2961 = vpack.c.b16 %v2503, %v2502
    %v2962 = vpack.c.b16 %v2505, %v2504
    %v2963 = vpack.c.b16 %v2507, %v2506
    %v2964 = vpack.c.b16 %v2509, %v2508
    %v2965 = vpack.c.b16 %v2511, %v2510
    %v2966 = vpack.c.b16 %v2513, %v2512
    %v2967 = vpack.c.b16 %v2515, %v2514
    %v2968 = vpack.c.b16 %v2517, %v2516
    %v2969 = vpack.c.b16 %v2519, %v2518
    %v2970 = vpack.c.b16 %v2521, %v2520
    %v2971 = vpack.c.b16 %v2523, %v2522
    %v2972 = vpack.c.b16 %v2525, %v2524
    %v2973 = vpack.c.b16 %v2527, %v2526
    %v2974 = vpack.c.b16 %v2529, %v2528
    %v2975 = vpack.c.b16 %v2531, %v2530
    %v2976 = vpack.c.b16 %v2533, %v2532
    %v2977 = vpack.c.b16 %v2535, %v2534
    %v2978 = vpack.c.b16 %v2537, %v2536
    %v2979 = vpack.c.b16 %v2539, %v2538
    %v2980 = vpack.c.b16 %v2541, %v2540
    %v2981 = vpack.c.b16 %v2543, %v2542
    %v2982 = vpack.c.b16 %v2545, %v2544
    %v2983 = vpack.c.b16 %v2547, %v2546
    %v2984 = vpack.c.b16 %v2549, %v2548
    %v2985 = vpack.c.b16 %v2551, %v2550
    %v2986 = vpack.c.b16 %v2553, %v2552
    %v2987 = vpack.c.b16 %v2555, %v2554
    %v2988 = vpack.c.b16 %v2557, %v2556
    %v2989 = vpack.c.b16 %v2559, %v2558
    %v2990 = vpack.c.b16 %v2561, %v2560
    %v2991 = vpack.c.b16 %v2563, %v2562
    %v2992 = vpack.c.b16 %v2565, %v2564
    %v2993 = vpack.c.b16 %v2567, %v2566
    %v2994 = vpack.c.b16 %v2569, %v2568
    %v2995 = vpack.c.b16 %v2571, %v2570
    %v2996 = vpack.c.b16 %v2573, %v2572
    %v2997 = vpack.c.b16 %v2575, %v2574
    %v2998 = vpack.c.b16 %v2577, %v2576
    %v2999 = vpack.c.b16 %v2579, %v2578
    %v3000 = vpack.c.b16 %v2581, %v2580
    %v3001 = vpack.c.b16 %v2583, %v2582
    %v3002 = vpack.c.b16 %v2585, %v2584
    %v3003 = vpack.c.b16 %v2587, %v2586
    %v3004 = vpack.c.b16 %v2589, %v2588
    %v3005 = vpack.c.b16 %v2591, %v2590
    %v3006 = vpack.c.b16 %v2593, %v2592
    %v3007 = vpack.c.b16 %v2595, %v2594
    %v3008 = vpack.c.b16 %v2597, %v2596
    %v3009 = vpack.c.b16 %v2599, %v2598
    %v3010 = vpack.c.b16 %v2601, %v2600
    %v3011 = vpack.c.b16 %v2603, %v2602
    %v3012 = vpack.c.b16 %v2605, %v2604
    %v3013 = vpack.c.b16 %v2607, %v2606
    %v3014 = vpack.c.b16 %v2609, %v2608
    %v3015 = vpack.c.b16 %v2611, %v2610
    %v3016 = vpack.c.b16 %v2613, %v2612
    %v3017 = vpack.c.b16 %v2615, %v2614
    %v3018 = vpack.c.b16 %v2617, %v2616
    %v3019 = vpack.c.b16 %v2619, %v2618
    %v3020 = vpack.c.b16 %v2621, %v2620
    %v3021 = vpack.c.b16 %v2623, %v2622
    %v3022 = vpack.c.b16 %v2625, %v2624
    %v3023 = vpack.c.b16 %v2627, %v2626
    %v3024 = vpack.c.b16 %v2629, %v2628
    %v3025 = vpack.c.b16 %v2631, %v2630
    %v3026 = vpack.c.b16 %v2633, %v2632
    %v3027 = vpack.c.b16 %v2635, %v2634
    %3420 = vmatprep.subr.bf16.mxu0 0
    %3421 = vmatpush1.bf16.msra.mxu0 %v2636
    %3422 = vmatprep.subr.bf16.mxu0 0
    %3423 = vmatpush1.bf16.msra.mxu0 %v2637
    %3424 = vmatprep.subr.bf16.mxu0 0
    %3425 = vmatpush1.bf16.msra.mxu0 %v2638
    %3426 = vmatprep.subr.bf16.mxu0 0
    %3427 = vmatpush1.bf16.msra.mxu0 %v2639
    %3428 = vmatprep.subr.bf16.mxu0 0
    %3429 = vmatpush1.bf16.msra.mxu0 %v2640
    %3430 = vmatprep.subr.bf16.mxu0 0
    %3431 = vmatpush1.bf16.msra.mxu0 %v2641
    %3432 = vmatprep.subr.bf16.mxu0 0
    %3433 = vmatpush1.bf16.msra.mxu0 %v2642
    %3434 = vmatprep.subr.bf16.mxu0 0
    %3435 = vmatpush1.bf16.msra.mxu0 %v2643
    %3436 = vmatprep.subr.bf16.mxu0 0
    %3437 = vmatpush1.bf16.msra.mxu0 %v2644
    %3438 = vmatprep.subr.bf16.mxu0 0
    %3439 = vmatpush1.bf16.msra.mxu0 %v2645
    %3440 = vmatprep.subr.bf16.mxu0 0
    %3441 = vmatpush1.bf16.msra.mxu0 %v2646
    %3442 = vmatprep.subr.bf16.mxu0 0
    %3443 = vmatpush1.bf16.msra.mxu0 %v2647
    %3444 = vmatprep.subr.bf16.mxu0 0
    %3445 = vmatpush1.bf16.msra.mxu0 %v2648
    %3446 = vmatprep.subr.bf16.mxu0 0
    %3447 = vmatpush1.bf16.msra.mxu0 %v2649
    %3448 = vmatprep.subr.bf16.mxu0 0
    %3449 = vmatpush1.bf16.msra.mxu0 %v2650
    %3450 = vmatprep.subr.bf16.mxu0 0
    %3451 = vmatpush1.bf16.msra.mxu0 %v2651
    %3452 = vmatprep.mubr.bf16.mxu0 %v1020
    %3453 = vmatmul.mubr.bf16.gmra.mrb[0].mxu0 %v1019
    %v3454 = vpop.f32.mrb[0].mxu0
    %v3455 = vadd.f32 0.0, %v3454
    %v3456 = vpop.f32.mrb[0].mxu0
    %v3457 = vpop.f32.mrb[0].mxu0
    %v3458 = vpop.f32.mrb[0].mxu0
    %3459 = vdwg.mxu0
    %3460 = vmatprep.subr.bf16.mxu0 0
    %3461 = vmatpush1.bf16.msra.mxu0 %v2652
    %3462 = vmatprep.subr.bf16.mxu0 0
    %3463 = vmatpush1.bf16.msra.mxu0 %v2653
    %3464 = vmatprep.subr.bf16.mxu0 0
    %3465 = vmatpush1.bf16.msra.mxu0 %v2654
    %3466 = vmatprep.subr.bf16.mxu0 0
    %3467 = vmatpush1.bf16.msra.mxu0 %v2655
    %3468 = vmatprep.subr.bf16.mxu0 0
    %3469 = vmatpush1.bf16.msra.mxu0 %v2656
    %3470 = vmatprep.subr.bf16.mxu0 0
    %3471 = vmatpush1.bf16.msra.mxu0 %v2657
    %3472 = vmatprep.subr.bf16.mxu0 0
    %3473 = vmatpush1.bf16.msra.mxu0 %v2658
    %3474 = vmatprep.subr.bf16.mxu0 0
    %3475 = vmatpush1.bf16.msra.mxu0 %v2659
    %3476 = vmatprep.subr.bf16.mxu0 0
    %3477 = vmatpush1.bf16.msra.mxu0 %v2660
    %3478 = vmatprep.subr.bf16.mxu0 0
    %3479 = vmatpush1.bf16.msra.mxu0 %v2661
    %3480 = vmatprep.subr.bf16.mxu0 0
    %3481 = vmatpush1.bf16.msra.mxu0 %v2662
    %3482 = vmatprep.subr.bf16.mxu0 0
    %3483 = vmatpush1.bf16.msra.mxu0 %v2663
    %3484 = vmatprep.subr.bf16.mxu0 0
    %3485 = vmatpush1.bf16.msra.mxu0 %v2664
    %3486 = vmatprep.subr.bf16.mxu0 0
    %3487 = vmatpush1.bf16.msra.mxu0 %v2665
    %3488 = vmatprep.subr.bf16.mxu0 0
    %3489 = vmatpush1.bf16.msra.mxu0 %v2666
    %3490 = vmatprep.subr.bf16.mxu0 0
    %3491 = vmatpush1.bf16.msra.mxu0 %v2667
    %3492 = vmatprep.mubr.bf16.mxu0 %v1022
    %3493 = vmatmul.mubr.bf16.gmra.mrb[0].mxu0 %v1021
    %v3494 = vpop.f32.mrb[0].mxu0
    %v3495 = vadd.f32 %v3455, %v3494
    %v3496 = vpop.f32.mrb[0].mxu0
    %v3497 = vpop.f32.mrb[0].mxu0
    %v3498 = vpop.f32.mrb[0].mxu0
    %3499 = vdwg.mxu0
    %3500 = vmatprep.subr.bf16.mxu0 0
    %3501 = vmatpush1.bf16.msra.mxu0 %v2668
    %3502 = vmatprep.subr.bf16.mxu0 0
    %3503 = vmatpush1.bf16.msra.mxu0 %v2669
    %3504 = vmatprep.subr.bf16.mxu0 0
    %3505 = vmatpush1.bf16.msra.mxu0 %v2670
    %3506 = vmatprep.subr.bf16.mxu0 0
    %3507 = vmatpush1.bf16.msra.mxu0 %v2671
    %3508 = vmatprep.subr.bf16.mxu0 0
    %3509 = vmatpush1.bf16.msra.mxu0 %v2672
    %3510 = vmatprep.subr.bf16.mxu0 0
    %3511 = vmatpush1.bf16.msra.mxu0 %v2673
    %3512 = vmatprep.subr.bf16.mxu0 0
    %3513 = vmatpush1.bf16.msra.mxu0 %v2674
    %3514 = vmatprep.subr.bf16.mxu0 0
    %3515 = vmatpush1.bf16.msra.mxu0 %v2675
    %3516 = vmatprep.subr.bf16.mxu0 0
    %3517 = vmatpush1.bf16.msra.mxu0 %v2676
    %3518 = vmatprep.subr.bf16.mxu0 0
    %3519 = vmatpush1.bf16.msra.mxu0 %v2677
    %3520 = vmatprep.subr.bf16.mxu0 0
    %3521 = vmatpush1.bf16.msra.mxu0 %v2678
    %3522 = vmatprep.subr.bf16.mxu0 0
    %3523 = vmatpush1.bf16.msra.mxu0 %v2679
    %3524 = vmatprep.subr.bf16.mxu0 0
    %3525 = vmatpush1.bf16.msra.mxu0 %v2680
    %3526 = vmatprep.subr.bf16.mxu0 0
    %3527 = vmatpush1.bf16.msra.mxu0 %v2681
    %3528 = vmatprep.subr.bf16.mxu0 0
    %3529 = vmatpush1.bf16.msra.mxu0 %v2682
    %3530 = vmatprep.subr.bf16.mxu0 0
    %3531 = vmatpush1.bf16.msra.mxu0 %v2683
    %3532 = vmatprep.mubr.bf16.mxu0 %v1024
    %3533 = vmatmul.mubr.bf16.gmra.mrb[0].mxu0 %v1023
    %v3534 = vpop.f32.mrb[0].mxu0
    %v3535 = vadd.f32 %v3495, %v3534
    %v3536 = vpop.f32.mrb[0].mxu0
    %v3537 = vpop.f32.mrb[0].mxu0
    %v3538 = vpop.f32.mrb[0].mxu0
    %3539 = vdwg.mxu0
    %3540 = vmatprep.subr.bf16.mxu0 0
    %3541 = vmatpush1.bf16.msra.mxu0 %v2684
    %3542 = vmatprep.subr.bf16.mxu0 0
    %3543 = vmatpush1.bf16.msra.mxu0 %v2685
    %3544 = vmatprep.subr.bf16.mxu0 0
    %3545 = vmatpush1.bf16.msra.mxu0 %v2686
    %3546 = vmatprep.subr.bf16.mxu0 0
    %3547 = vmatpush1.bf16.msra.mxu0 %v2687
    %3548 = vmatprep.subr.bf16.mxu0 0
    %3549 = vmatpush1.bf16.msra.mxu0 %v2688
    %3550 = vmatprep.subr.bf16.mxu0 0
    %3551 = vmatpush1.bf16.msra.mxu0 %v2689
    %3552 = vmatprep.subr.bf16.mxu0 0
    %3553 = vmatpush1.bf16.msra.mxu0 %v2690
    %3554 = vmatprep.subr.bf16.mxu0 0
    %3555 = vmatpush1.bf16.msra.mxu0 %v2691
    %3556 = vmatprep.subr.bf16.mxu0 0
    %3557 = vmatpush1.bf16.msra.mxu0 %v2692
    %3558 = vmatprep.subr.bf16.mxu0 0
    %3559 = vmatpush1.bf16.msra.mxu0 %v2693
    %3560 = vmatprep.subr.bf16.mxu0 0
    %3561 = vmatpush1.bf16.msra.mxu0 %v2694
    %3562 = vmatprep.subr.bf16.mxu0 0
    %3563 = vmatpush1.bf16.msra.mxu0 %v2695
    %3564 = vmatprep.subr.bf16.mxu0 0
    %3565 = vmatpush1.bf16.msra.mxu0 %v2696
    %3566 = vmatprep.subr.bf16.mxu0 0
    %3567 = vmatpush1.bf16.msra.mxu0 %v2697
    %3568 = vmatprep.subr.bf16.mxu0 0
    %3569 = vmatpush1.bf16.msra.mxu0 %v2698
    %3570 = vmatprep.subr.bf16.mxu0 0
    %3571 = vmatpush1.bf16.msra.mxu0 %v2699
    %3572 = vmatprep.mubr.bf16.mxu0 %v1026
    %3573 = vmatmul.mubr.bf16.gmra.mrb[0].mxu0 %v1025
    %v3574 = vpop.f32.mrb[0].mxu0
    %v3575 = vadd.f32 %v3535, %v3574
    %v3576 = vpop.f32.mrb[0].mxu0
    %v3577 = vpop.f32.mrb[0].mxu0
    %v3578 = vpop.f32.mrb[0].mxu0
    %3579 = vdwg.mxu0
    %3580 = vmatprep.subr.bf16.mxu0 0
    %3581 = vmatpush1.bf16.msra.mxu0 %v2700
    %3582 = vmatprep.subr.bf16.mxu0 0
    %3583 = vmatpush1.bf16.msra.mxu0 %v2701
    %3584 = vmatprep.subr.bf16.mxu0 0
    %3585 = vmatpush1.bf16.msra.mxu0 %v2702
    %3586 = vmatprep.subr.bf16.mxu0 0
    %3587 = vmatpush1.bf16.msra.mxu0 %v2703
    %3588 = vmatprep.subr.bf16.mxu0 0
    %3589 = vmatpush1.bf16.msra.mxu0 %v2704
    %3590 = vmatprep.subr.bf16.mxu0 0
    %3591 = vmatpush1.bf16.msra.mxu0 %v2705
    %3592 = vmatprep.subr.bf16.mxu0 0
    %3593 = vmatpush1.bf16.msra.mxu0 %v2706
    %3594 = vmatprep.subr.bf16.mxu0 0
    %3595 = vmatpush1.bf16.msra.mxu0 %v2707
    %3596 = vmatprep.subr.bf16.mxu0 0
    %3597 = vmatpush1.bf16.msra.mxu0 %v2708
    %3598 = vmatprep.subr.bf16.mxu0 0
    %3599 = vmatpush1.bf16.msra.mxu0 %v2709
    %3600 = vmatprep.subr.bf16.mxu0 0
    %3601 = vmatpush1.bf16.msra.mxu0 %v2710
    %3602 = vmatprep.subr.bf16.mxu0 0
    %3603 = vmatpush1.bf16.msra.mxu0 %v2711
    %3604 = vmatprep.subr.bf16.mxu0 0
    %3605 = vmatpush1.bf16.msra.mxu0 %v2712
    %3606 = vmatprep.subr.bf16.mxu0 0
    %3607 = vmatpush1.bf16.msra.mxu0 %v2713
    %3608 = vmatprep.subr.bf16.mxu0 0
    %3609 = vmatpush1.bf16.msra.mxu0 %v2714
    %3610 = vmatprep.subr.bf16.mxu0 0
    %3611 = vmatpush1.bf16.msra.mxu0 %v2715
    %3612 = vmatprep.mubr.bf16.mxu0 %v1028
    %3613 = vmatmul.mubr.bf16.gmra.mrb[0].mxu0 %v1027
    %v3614 = vpop.f32.mrb[0].mxu0
    %v3615 = vadd.f32 %v3575, %v3614
    %v3616 = vpop.f32.mrb[0].mxu0
    %v3617 = vpop.f32.mrb[0].mxu0
    %v3618 = vpop.f32.mrb[0].mxu0
    %3619 = vdwg.mxu0
    %3620 = vmatprep.subr.bf16.mxu0 0
    %3621 = vmatpush1.bf16.msra.mxu0 %v2716
    %3622 = vmatprep.subr.bf16.mxu0 0
    %3623 = vmatpush1.bf16.msra.mxu0 %v2717
    %3624 = vmatprep.subr.bf16.mxu0 0
    %3625 = vmatpush1.bf16.msra.mxu0 %v2718
    %3626 = vmatprep.subr.bf16.mxu0 0
    %3627 = vmatpush1.bf16.msra.mxu0 %v2719
    %3628 = vmatprep.subr.bf16.mxu0 0
    %3629 = vmatpush1.bf16.msra.mxu0 %v2720
    %3630 = vmatprep.subr.bf16.mxu0 0
    %3631 = vmatpush1.bf16.msra.mxu0 %v2721
    %3632 = vmatprep.subr.bf16.mxu0 0
    %3633 = vmatpush1.bf16.msra.mxu0 %v2722
    %3634 = vmatprep.subr.bf16.mxu0 0
    %3635 = vmatpush1.bf16.msra.mxu0 %v2723
    %3636 = vmatprep.subr.bf16.mxu0 0
    %3637 = vmatpush1.bf16.msra.mxu0 %v2724
    %3638 = vmatprep.subr.bf16.mxu0 0
    %3639 = vmatpush1.bf16.msra.mxu0 %v2725
    %3640 = vmatprep.subr.bf16.mxu0 0
    %3641 = vmatpush1.bf16.msra.mxu0 %v2726
    %3642 = vmatprep.subr.bf16.mxu0 0
    %3643 = vmatpush1.bf16.msra.mxu0 %v2727
    %3644 = vmatprep.subr.bf16.mxu0 0
    %3645 = vmatpush1.bf16.msra.mxu0 %v2728
    %3646 = vmatprep.subr.bf16.mxu0 0
    %3647 = vmatpush1.bf16.msra.mxu0 %v2729
    %3648 = vmatprep.subr.bf16.mxu0 0
    %3649 = vmatpush1.bf16.msra.mxu0 %v2730
    %3650 = vmatprep.subr.bf16.mxu0 0
    %3651 = vmatpush1.bf16.msra.mxu0 %v2731
    %3652 = vmatprep.mubr.bf16.mxu0 %v1030
    %3653 = vmatmul.mubr.bf16.gmra.mrb[0].mxu0 %v1029
    %v3654 = vpop.f32.mrb[0].mxu0
    %v3655 = vadd.f32 %v3615, %v3654
    %v3656 = vpop.f32.mrb[0].mxu0
    %v3657 = vpop.f32.mrb[0].mxu0
    %v3658 = vpop.f32.mrb[0].mxu0
    %3659 = vdwg.mxu0
    %3660 = vmatprep.subr.bf16.mxu0 0
    %3661 = vmatpush1.bf16.msra.mxu0 %v2732
    %3662 = vmatprep.subr.bf16.mxu0 0
    %3663 = vmatpush1.bf16.msra.mxu0 %v2733
    %3664 = vmatprep.subr.bf16.mxu0 0
    %3665 = vmatpush1.bf16.msra.mxu0 %v2734
    %3666 = vmatprep.subr.bf16.mxu0 0
    %3667 = vmatpush1.bf16.msra.mxu0 %v2735
    %3668 = vmatprep.subr.bf16.mxu0 0
    %3669 = vmatpush1.bf16.msra.mxu0 %v2736
    %3670 = vmatprep.subr.bf16.mxu0 0
    %3671 = vmatpush1.bf16.msra.mxu0 %v2737
    %3672 = vmatprep.subr.bf16.mxu0 0
    %3673 = vmatpush1.bf16.msra.mxu0 %v2738
    %3674 = vmatprep.subr.bf16.mxu0 0
    %3675 = vmatpush1.bf16.msra.mxu0 %v2739
    %3676 = vmatprep.subr.bf16.mxu0 0
    %3677 = vmatpush1.bf16.msra.mxu0 %v2740
    %3678 = vmatprep.subr.bf16.mxu0 0
    %3679 = vmatpush1.bf16.msra.mxu0 %v2741
    %3680 = vmatprep.subr.bf16.mxu0 0
    %3681 = vmatpush1.bf16.msra.mxu0 %v2742
    %3682 = vmatprep.subr.bf16.mxu0 0
    %3683 = vmatpush1.bf16.msra.mxu0 %v2743
    %3684 = vmatprep.subr.bf16.mxu0 0
    %3685 = vmatpush1.bf16.msra.mxu0 %v2744
    %3686 = vmatprep.subr.bf16.mxu0 0
    %3687 = vmatpush1.bf16.msra.mxu0 %v2745
    %3688 = vmatprep.subr.bf16.mxu0 0
    %3689 = vmatpush1.bf16.msra.mxu0 %v2746
    %3690 = vmatprep.subr.bf16.mxu0 0
    %3691 = vmatpush1.bf16.msra.mxu0 %v2747
    %3692 = vmatprep.mubr.bf16.mxu0 %v1032
    %3693 = vmatmul.mubr.bf16.gmra.mrb[0].mxu0 %v1031
    %v3694 = vpop.f32.mrb[0].mxu0
    %v3695 = vadd.f32 %v3655, %v3694
    %v3696 = vpop.f32.mrb[0].mxu0
    %v3697 = vpop.f32.mrb[0].mxu0
    %v3698 = vpop.f32.mrb[0].mxu0
    %3699 = vdwg.mxu0
    %3700 = vmatprep.subr.bf16.mxu0 0
    %3701 = vmatpush1.bf16.msra.mxu0 %v2748
    %3702 = vmatprep.subr.bf16.mxu0 0
    %3703 = vmatpush1.bf16.msra.mxu0 %v2749
    %3704 = vmatprep.subr.bf16.mxu0 0
    %3705 = vmatpush1.bf16.msra.mxu0 %v2750
    %3706 = vmatprep.subr.bf16.mxu0 0
    %3707 = vmatpush1.bf16.msra.mxu0 %v2751
    %3708 = vmatprep.subr.bf16.mxu0 0
    %3709 = vmatpush1.bf16.msra.mxu0 %v2752
    %3710 = vmatprep.subr.bf16.mxu0 0
    %3711 = vmatpush1.bf16.msra.mxu0 %v2753
    %3712 = vmatprep.subr.bf16.mxu0 0
    %3713 = vmatpush1.bf16.msra.mxu0 %v2754
    %3714 = vmatprep.subr.bf16.mxu0 0
    %3715 = vmatpush1.bf16.msra.mxu0 %v2755
    %3716 = vmatprep.subr.bf16.mxu0 0
    %3717 = vmatpush1.bf16.msra.mxu0 %v2756
    %3718 = vmatprep.subr.bf16.mxu0 0
    %3719 = vmatpush1.bf16.msra.mxu0 %v2757
    %3720 = vmatprep.subr.bf16.mxu0 0
    %3721 = vmatpush1.bf16.msra.mxu0 %v2758
    %3722 = vmatprep.subr.bf16.mxu0 0
    %3723 = vmatpush1.bf16.msra.mxu0 %v2759
    %3724 = vmatprep.subr.bf16.mxu0 0
    %3725 = vmatpush1.bf16.msra.mxu0 %v2760
    %3726 = vmatprep.subr.bf16.mxu0 0
    %3727 = vmatpush1.bf16.msra.mxu0 %v2761
    %3728 = vmatprep.subr.bf16.mxu0 0
    %3729 = vmatpush1.bf16.msra.mxu0 %v2762
    %3730 = vmatprep.subr.bf16.mxu0 0
    %3731 = vmatpush1.bf16.msra.mxu0 %v2763
    %3732 = vmatprep.mubr.bf16.mxu0 %v1034
    %3733 = vmatmul.mubr.bf16.gmra.mrb[0].mxu0 %v1033
    %v3734 = vpop.f32.mrb[0].mxu0
    %v3735 = vadd.f32 %v3695, %v3734
    %v3736 = vpop.f32.mrb[0].mxu0
    %v3737 = vpop.f32.mrb[0].mxu0
    %v3738 = vpop.f32.mrb[0].mxu0
    %3739 = vdwg.mxu0
    %3740 = vmatprep.subr.bf16.mxu0 0
    %3741 = vmatpush1.bf16.msra.mxu0 %v2764
    %3742 = vmatprep.subr.bf16.mxu0 0
    %3743 = vmatpush1.bf16.msra.mxu0 %v2765
    %3744 = vmatprep.subr.bf16.mxu0 0
    %3745 = vmatpush1.bf16.msra.mxu0 %v2766
    %3746 = vmatprep.subr.bf16.mxu0 0
    %3747 = vmatpush1.bf16.msra.mxu0 %v2767
    %3748 = vmatprep.subr.bf16.mxu0 0
    %3749 = vmatpush1.bf16.msra.mxu0 %v2768
    %3750 = vmatprep.subr.bf16.mxu0 0
    %3751 = vmatpush1.bf16.msra.mxu0 %v2769
    %3752 = vmatprep.subr.bf16.mxu0 0
    %3753 = vmatpush1.bf16.msra.mxu0 %v2770
    %3754 = vmatprep.subr.bf16.mxu0 0
    %3755 = vmatpush1.bf16.msra.mxu0 %v2771
    %3756 = vmatprep.subr.bf16.mxu0 0
    %3757 = vmatpush1.bf16.msra.mxu0 %v2772
    %3758 = vmatprep.subr.bf16.mxu0 0
    %3759 = vmatpush1.bf16.msra.mxu0 %v2773
    %3760 = vmatprep.subr.bf16.mxu0 0
    %3761 = vmatpush1.bf16.msra.mxu0 %v2774
    %3762 = vmatprep.subr.bf16.mxu0 0
    %3763 = vmatpush1.bf16.msra.mxu0 %v2775
    %3764 = vmatprep.subr.bf16.mxu0 0
    %3765 = vmatpush1.bf16.msra.mxu0 %v2776
    %3766 = vmatprep.subr.bf16.mxu0 0
    %3767 = vmatpush1.bf16.msra.mxu0 %v2777
    %3768 = vmatprep.subr.bf16.mxu0 0
    %3769 = vmatpush1.bf16.msra.mxu0 %v2778
    %3770 = vmatprep.subr.bf16.mxu0 0
    %3771 = vmatpush1.bf16.msra.mxu0 %v2779
    %3772 = vmatprep.mubr.bf16.mxu0 %v1036
    %3773 = vmatmul.mubr.bf16.gmra.mrb[0].mxu0 %v1035
    %v3774 = vpop.f32.mrb[0].mxu0
    %v3775 = vadd.f32 %v3735, %v3774
    %v3776 = vpop.f32.mrb[0].mxu0
    %v3777 = vpop.f32.mrb[0].mxu0
    %v3778 = vpop.f32.mrb[0].mxu0
    %3779 = vdwg.mxu0
    %3780 = vmatprep.subr.bf16.mxu0 0
    %3781 = vmatpush1.bf16.msra.mxu0 %v2780
    %3782 = vmatprep.subr.bf16.mxu0 0
    %3783 = vmatpush1.bf16.msra.mxu0 %v2781
    %3784 = vmatprep.subr.bf16.mxu0 0
    %3785 = vmatpush1.bf16.msra.mxu0 %v2782
    %3786 = vmatprep.subr.bf16.mxu0 0
    %3787 = vmatpush1.bf16.msra.mxu0 %v2783
    %3788 = vmatprep.subr.bf16.mxu0 0
    %3789 = vmatpush1.bf16.msra.mxu0 %v2784
    %3790 = vmatprep.subr.bf16.mxu0 0
    %3791 = vmatpush1.bf16.msra.mxu0 %v2785
    %3792 = vmatprep.subr.bf16.mxu0 0
    %3793 = vmatpush1.bf16.msra.mxu0 %v2786
    %3794 = vmatprep.subr.bf16.mxu0 0
    %3795 = vmatpush1.bf16.msra.mxu0 %v2787
    %3796 = vmatprep.subr.bf16.mxu0 0
    %3797 = vmatpush1.bf16.msra.mxu0 %v2788
    %3798 = vmatprep.subr.bf16.mxu0 0
    %3799 = vmatpush1.bf16.msra.mxu0 %v2789
    %3800 = vmatprep.subr.bf16.mxu0 0
    %3801 = vmatpush1.bf16.msra.mxu0 %v2790
    %3802 = vmatprep.subr.bf16.mxu0 0
    %3803 = vmatpush1.bf16.msra.mxu0 %v2791
    %3804 = vmatprep.subr.bf16.mxu0 0
    %3805 = vmatpush1.bf16.msra.mxu0 %v2792
    %3806 = vmatprep.subr.bf16.mxu0 0
    %3807 = vmatpush1.bf16.msra.mxu0 %v2793
    %3808 = vmatprep.subr.bf16.mxu0 0
    %3809 = vmatpush1.bf16.msra.mxu0 %v2794
    %3810 = vmatprep.subr.bf16.mxu0 0
    %3811 = vmatpush1.bf16.msra.mxu0 %v2795
    %3812 = vmatprep.mubr.bf16.mxu0 %v1038
    %3813 = vmatmul.mubr.bf16.gmra.mrb[0].mxu0 %v1037
    %v3814 = vpop.f32.mrb[0].mxu0
    %v3815 = vadd.f32 %v3775, %v3814
    %v3816 = vpop.f32.mrb[0].mxu0
    %v3817 = vpop.f32.mrb[0].mxu0
    %v3818 = vpop.f32.mrb[0].mxu0
    %3819 = vdwg.mxu0
    %3820 = vmatprep.subr.bf16.mxu0 0
    %3821 = vmatpush1.bf16.msra.mxu0 %v2796
    %3822 = vmatprep.subr.bf16.mxu0 0
    %3823 = vmatpush1.bf16.msra.mxu0 %v2797
    %3824 = vmatprep.subr.bf16.mxu0 0
    %3825 = vmatpush1.bf16.msra.mxu0 %v2798
    %3826 = vmatprep.subr.bf16.mxu0 0
    %3827 = vmatpush1.bf16.msra.mxu0 %v2799
    %3828 = vmatprep.subr.bf16.mxu0 0
    %3829 = vmatpush1.bf16.msra.mxu0 %v2800
    %3830 = vmatprep.subr.bf16.mxu0 0
    %3831 = vmatpush1.bf16.msra.mxu0 %v2801
    %3832 = vmatprep.subr.bf16.mxu0 0
    %3833 = vmatpush1.bf16.msra.mxu0 %v2802
    %3834 = vmatprep.subr.bf16.mxu0 0
    %3835 = vmatpush1.bf16.msra.mxu0 %v2803
    %3836 = vmatprep.subr.bf16.mxu0 0
    %3837 = vmatpush1.bf16.msra.mxu0 %v2804
    %3838 = vmatprep.subr.bf16.mxu0 0
    %3839 = vmatpush1.bf16.msra.mxu0 %v2805
    %3840 = vmatprep.subr.bf16.mxu0 0
    %3841 = vmatpush1.bf16.msra.mxu0 %v2806
    %3842 = vmatprep.subr.bf16.mxu0 0
    %3843 = vmatpush1.bf16.msra.mxu0 %v2807
    %3844 = vmatprep.subr.bf16.mxu0 0
    %3845 = vmatpush1.bf16.msra.mxu0 %v2808
    %3846 = vmatprep.subr.bf16.mxu0 0
    %3847 = vmatpush1.bf16.msra.mxu0 %v2809
    %3848 = vmatprep.subr.bf16.mxu0 0
    %3849 = vmatpush1.bf16.msra.mxu0 %v2810
    %3850 = vmatprep.subr.bf16.mxu0 0
    %3851 = vmatpush1.bf16.msra.mxu0 %v2811
    %3852 = vmatprep.mubr.bf16.mxu0 %v1040
    %3853 = vmatmul.mubr.bf16.gmra.mrb[0].mxu0 %v1039
    %v3854 = vpop.f32.mrb[0].mxu0
    %v3855 = vadd.f32 %v3815, %v3854
    %v3856 = vpop.f32.mrb[0].mxu0
    %v3857 = vpop.f32.mrb[0].mxu0
    %v3858 = vpop.f32.mrb[0].mxu0
    %3859 = vdwg.mxu0
    %3860 = vmatprep.subr.bf16.mxu0 0
    %3861 = vmatpush1.bf16.msra.mxu0 %v2812
    %3862 = vmatprep.subr.bf16.mxu0 0
    %3863 = vmatpush1.bf16.msra.mxu0 %v2813
    %3864 = vmatprep.subr.bf16.mxu0 0
    %3865 = vmatpush1.bf16.msra.mxu0 %v2814
    %3866 = vmatprep.subr.bf16.mxu0 0
    %3867 = vmatpush1.bf16.msra.mxu0 %v2815
    %3868 = vmatprep.subr.bf16.mxu0 0
    %3869 = vmatpush1.bf16.msra.mxu0 %v2816
    %3870 = vmatprep.subr.bf16.mxu0 0
    %3871 = vmatpush1.bf16.msra.mxu0 %v2817
    %3872 = vmatprep.subr.bf16.mxu0 0
    %3873 = vmatpush1.bf16.msra.mxu0 %v2818
    %3874 = vmatprep.subr.bf16.mxu0 0
    %3875 = vmatpush1.bf16.msra.mxu0 %v2819
    %3876 = vmatprep.subr.bf16.mxu0 0
    %3877 = vmatpush1.bf16.msra.mxu0 %v2820
    %3878 = vmatprep.subr.bf16.mxu0 0
    %3879 = vmatpush1.bf16.msra.mxu0 %v2821
    %3880 = vmatprep.subr.bf16.mxu0 0
    %3881 = vmatpush1.bf16.msra.mxu0 %v2822
    %3882 = vmatprep.subr.bf16.mxu0 0
    %3883 = vmatpush1.bf16.msra.mxu0 %v2823
    %3884 = vmatprep.subr.bf16.mxu0 0
    %3885 = vmatpush1.bf16.msra.mxu0 %v2824
    %3886 = vmatprep.subr.bf16.mxu0 0
    %3887 = vmatpush1.bf16.msra.mxu0 %v2825
    %3888 = vmatprep.subr.bf16.mxu0 0
    %3889 = vmatpush1.bf16.msra.mxu0 %v2826
    %3890 = vmatprep.subr.bf16.mxu0 0
    %3891 = vmatpush1.bf16.msra.mxu0 %v2827
    %3892 = vmatprep.mubr.bf16.mxu0 %v1042
    %3893 = vmatmul.mubr.bf16.gmra.mrb[0].mxu0 %v1041
    %v3894 = vpop.f32.mrb[0].mxu0
    %v3895 = vadd.f32 %v3855, %v3894
    %v3896 = vpop.f32.mrb[0].mxu0
    %v3897 = vpop.f32.mrb[0].mxu0
    %v3898 = vpop.f32.mrb[0].mxu0
    %3899 = vdwg.mxu0
    %3900 = vmatprep.subr.bf16.mxu0 0
    %3901 = vmatpush1.bf16.msra.mxu0 %v2828
    %3902 = vmatprep.subr.bf16.mxu0 0
    %3903 = vmatpush1.bf16.msra.mxu0 %v2829
    %3904 = vmatprep.subr.bf16.mxu0 0
    %3905 = vmatpush1.bf16.msra.mxu0 %v2830
    %3906 = vmatprep.subr.bf16.mxu0 0
    %3907 = vmatpush1.bf16.msra.mxu0 %v2831
    %3908 = vmatprep.subr.bf16.mxu0 0
    %3909 = vmatpush1.bf16.msra.mxu0 %v2832
    %3910 = vmatprep.subr.bf16.mxu0 0
    %3911 = vmatpush1.bf16.msra.mxu0 %v2833
    %3912 = vmatprep.subr.bf16.mxu0 0
    %3913 = vmatpush1.bf16.msra.mxu0 %v2834
    %3914 = vmatprep.subr.bf16.mxu0 0
    %3915 = vmatpush1.bf16.msra.mxu0 %v2835
    %3916 = vmatprep.subr.bf16.mxu0 0
    %3917 = vmatpush1.bf16.msra.mxu0 %v2836
    %3918 = vmatprep.subr.bf16.mxu0 0
    %3919 = vmatpush1.bf16.msra.mxu0 %v2837
    %3920 = vmatprep.subr.bf16.mxu0 0
    %3921 = vmatpush1.bf16.msra.mxu0 %v2838
    %3922 = vmatprep.subr.bf16.mxu0 0
    %3923 = vmatpush1.bf16.msra.mxu0 %v2839
    %3924 = vmatprep.subr.bf16.mxu0 0
    %3925 = vmatpush1.bf16.msra.mxu0 %v2840
    %3926 = vmatprep.subr.bf16.mxu0 0
    %3927 = vmatpush1.bf16.msra.mxu0 %v2841
    %3928 = vmatprep.subr.bf16.mxu0 0
    %3929 = vmatpush1.bf16.msra.mxu0 %v2842
    %3930 = vmatprep.subr.bf16.mxu0 0
    %3931 = vmatpush1.bf16.msra.mxu0 %v2843
    %3932 = vmatprep.mubr.bf16.mxu0 %v1044
    %3933 = vmatmul.mubr.bf16.gmra.mrb[0].mxu0 %v1043
    %v3934 = vpop.f32.mrb[0].mxu0
    %v3935 = vadd.f32 %v3895, %v3934
    %v3936 = vpop.f32.mrb[0].mxu0
    %v3937 = vpop.f32.mrb[0].mxu0
    %v3938 = vpop.f32.mrb[0].mxu0
    %3939 = vdwg.mxu0
    %3940 = vmatprep.subr.bf16.mxu0 0
    %3941 = vmatpush1.bf16.msra.mxu0 %v2844
    %3942 = vmatprep.subr.bf16.mxu0 0
    %3943 = vmatpush1.bf16.msra.mxu0 %v2845
    %3944 = vmatprep.subr.bf16.mxu0 0
    %3945 = vmatpush1.bf16.msra.mxu0 %v2846
    %3946 = vmatprep.subr.bf16.mxu0 0
    %3947 = vmatpush1.bf16.msra.mxu0 %v2847
    %3948 = vmatprep.subr.bf16.mxu0 0
    %3949 = vmatpush1.bf16.msra.mxu0 %v2848
    %3950 = vmatprep.subr.bf16.mxu0 0
    %3951 = vmatpush1.bf16.msra.mxu0 %v2849
    %3952 = vmatprep.subr.bf16.mxu0 0
    %3953 = vmatpush1.bf16.msra.mxu0 %v2850
    %3954 = vmatprep.subr.bf16.mxu0 0
    %3955 = vmatpush1.bf16.msra.mxu0 %v2851
    %3956 = vmatprep.subr.bf16.mxu0 0
    %3957 = vmatpush1.bf16.msra.mxu0 %v2852
    %3958 = vmatprep.subr.bf16.mxu0 0
    %3959 = vmatpush1.bf16.msra.mxu0 %v2853
    %3960 = vmatprep.subr.bf16.mxu0 0
    %3961 = vmatpush1.bf16.msra.mxu0 %v2854
    %3962 = vmatprep.subr.bf16.mxu0 0
    %3963 = vmatpush1.bf16.msra.mxu0 %v2855
    %3964 = vmatprep.subr.bf16.mxu0 0
    %3965 = vmatpush1.bf16.msra.mxu0 %v2856
    %3966 = vmatprep.subr.bf16.mxu0 0
    %3967 = vmatpush1.bf16.msra.mxu0 %v2857
    %3968 = vmatprep.subr.bf16.mxu0 0
    %3969 = vmatpush1.bf16.msra.mxu0 %v2858
    %3970 = vmatprep.subr.bf16.mxu0 0
    %3971 = vmatpush1.bf16.msra.mxu0 %v2859
    %3972 = vmatprep.mubr.bf16.mxu0 %v1046
    %3973 = vmatmul.mubr.bf16.gmra.mrb[0].mxu0 %v1045
    %v3974 = vpop.f32.mrb[0].mxu0
    %v3975 = vadd.f32 %v3935, %v3974
    %v3976 = vpop.f32.mrb[0].mxu0
    %v3977 = vpop.f32.mrb[0].mxu0
    %v3978 = vpop.f32.mrb[0].mxu0
    %3979 = vdwg.mxu0
    %3980 = vmatprep.subr.bf16.mxu0 0
    %3981 = vmatpush1.bf16.msra.mxu0 %v2860
    %3982 = vmatprep.subr.bf16.mxu0 0
    %3983 = vmatpush1.bf16.msra.mxu0 %v2861
    %3984 = vmatprep.subr.bf16.mxu0 0
    %3985 = vmatpush1.bf16.msra.mxu0 %v2862
    %3986 = vmatprep.subr.bf16.mxu0 0
    %3987 = vmatpush1.bf16.msra.mxu0 %v2863
    %3988 = vmatprep.subr.bf16.mxu0 0
    %3989 = vmatpush1.bf16.msra.mxu0 %v2864
    %3990 = vmatprep.subr.bf16.mxu0 0
    %3991 = vmatpush1.bf16.msra.mxu0 %v2865
    %3992 = vmatprep.subr.bf16.mxu0 0
    %3993 = vmatpush1.bf16.msra.mxu0 %v2866
    %3994 = vmatprep.subr.bf16.mxu0 0
    %3995 = vmatpush1.bf16.msra.mxu0 %v2867
    %3996 = vmatprep.subr.bf16.mxu0 0
    %3997 = vmatpush1.bf16.msra.mxu0 %v2868
    %3998 = vmatprep.subr.bf16.mxu0 0
    %3999 = vmatpush1.bf16.msra.mxu0 %v2869
    %4000 = vmatprep.subr.bf16.mxu0 0
    %4001 = vmatpush1.bf16.msra.mxu0 %v2870
    %4002 = vmatprep.subr.bf16.mxu0 0
    %4003 = vmatpush1.bf16.msra.mxu0 %v2871
    %4004 = vmatprep.subr.bf16.mxu0 0
    %4005 = vmatpush1.bf16.msra.mxu0 %v2872
    %4006 = vmatprep.subr.bf16.mxu0 0
    %4007 = vmatpush1.bf16.msra.mxu0 %v2873
    %4008 = vmatprep.subr.bf16.mxu0 0
    %4009 = vmatpush1.bf16.msra.mxu0 %v2874
    %4010 = vmatprep.subr.bf16.mxu0 0
    %4011 = vmatpush1.bf16.msra.mxu0 %v2875
    %4012 = vmatprep.mubr.bf16.mxu0 %v1048
    %4013 = vmatmul.mubr.bf16.gmra.mrb[0].mxu0 %v1047
    %v4014 = vpop.f32.mrb[0].mxu0
    %v4015 = vadd.f32 %v3975, %v4014
    %v4016 = vpop.f32.mrb[0].mxu0
    %v4017 = vpop.f32.mrb[0].mxu0
    %v4018 = vpop.f32.mrb[0].mxu0
    %4019 = vdwg.mxu0
    %4020 = vmatprep.subr.bf16.mxu0 0
    %4021 = vmatpush1.bf16.msra.mxu0 %v2876
    %4022 = vmatprep.subr.bf16.mxu0 0
    %4023 = vmatpush1.bf16.msra.mxu0 %v2877
    %4024 = vmatprep.subr.bf16.mxu0 0
    %4025 = vmatpush1.bf16.msra.mxu0 %v2878
    %4026 = vmatprep.subr.bf16.mxu0 0
    %4027 = vmatpush1.bf16.msra.mxu0 %v2879
    %4028 = vmatprep.subr.bf16.mxu0 0
    %4029 = vmatpush1.bf16.msra.mxu0 %v2880
    %4030 = vmatprep.subr.bf16.mxu0 0
    %4031 = vmatpush1.bf16.msra.mxu0 %v2881
    %4032 = vmatprep.subr.bf16.mxu0 0
    %4033 = vmatpush1.bf16.msra.mxu0 %v2882
    %4034 = vmatprep.subr.bf16.mxu0 0
    %4035 = vmatpush1.bf16.msra.mxu0 %v2883
    %4036 = vmatprep.subr.bf16.mxu0 0
    %4037 = vmatpush1.bf16.msra.mxu0 %v2884
    %4038 = vmatprep.subr.bf16.mxu0 0
    %4039 = vmatpush1.bf16.msra.mxu0 %v2885
    %4040 = vmatprep.subr.bf16.mxu0 0
    %4041 = vmatpush1.bf16.msra.mxu0 %v2886
    %4042 = vmatprep.subr.bf16.mxu0 0
    %4043 = vmatpush1.bf16.msra.mxu0 %v2887
    %4044 = vmatprep.subr.bf16.mxu0 0
    %4045 = vmatpush1.bf16.msra.mxu0 %v2888
    %4046 = vmatprep.subr.bf16.mxu0 0
    %4047 = vmatpush1.bf16.msra.mxu0 %v2889
    %4048 = vmatprep.subr.bf16.mxu0 0
    %4049 = vmatpush1.bf16.msra.mxu0 %v2890
    %4050 = vmatprep.subr.bf16.mxu0 0
    %4051 = vmatpush1.bf16.msra.mxu0 %v2891
    %4052 = vmatprep.mubr.bf16.mxu0 %v1050
    %4053 = vmatmul.mubr.bf16.gmra.mrb[0].mxu0 %v1049
    %v4054 = vpop.f32.mrb[0].mxu0
    %v4055 = vadd.f32 %v4015, %v4054
    %v4056 = vpop.f32.mrb[0].mxu0
    %v4057 = vpop.f32.mrb[0].mxu0
    %v4058 = vpop.f32.mrb[0].mxu0
    %4059 = vdwg.mxu0
    %4060 = vmatprep.subr.bf16.mxu0 0
    %4061 = vmatpush1.bf16.msra.mxu0 %v2892
    %4062 = vmatprep.subr.bf16.mxu0 0
    %4063 = vmatpush1.bf16.msra.mxu0 %v2893
    %4064 = vmatprep.subr.bf16.mxu0 0
    %4065 = vmatpush1.bf16.msra.mxu0 %v2894
    %4066 = vmatprep.subr.bf16.mxu0 0
    %4067 = vmatpush1.bf16.msra.mxu0 %v2895
    %4068 = vmatprep.subr.bf16.mxu0 0
    %4069 = vmatpush1.bf16.msra.mxu0 %v2896
    %4070 = vmatprep.subr.bf16.mxu0 0
    %4071 = vmatpush1.bf16.msra.mxu0 %v2897
    %4072 = vmatprep.subr.bf16.mxu0 0
    %4073 = vmatpush1.bf16.msra.mxu0 %v2898
    %4074 = vmatprep.subr.bf16.mxu0 0
    %4075 = vmatpush1.bf16.msra.mxu0 %v2899
    %4076 = vmatprep.subr.bf16.mxu0 0
    %4077 = vmatpush1.bf16.msra.mxu0 %v2900
    %4078 = vmatprep.subr.bf16.mxu0 0
    %4079 = vmatpush1.bf16.msra.mxu0 %v2901
    %4080 = vmatprep.subr.bf16.mxu0 0
    %4081 = vmatpush1.bf16.msra.mxu0 %v2902
    %4082 = vmatprep.subr.bf16.mxu0 0
    %4083 = vmatpush1.bf16.msra.mxu0 %v2903
    %4084 = vmatprep.subr.bf16.mxu0 0
    %4085 = vmatpush1.bf16.msra.mxu0 %v2904
    %4086 = vmatprep.subr.bf16.mxu0 0
    %4087 = vmatpush1.bf16.msra.mxu0 %v2905
    %4088 = vmatprep.subr.bf16.mxu0 0
    %4089 = vmatpush1.bf16.msra.mxu0 %v2906
    %4090 = vmatprep.subr.bf16.mxu0 0
    %4091 = vmatpush1.bf16.msra.mxu0 %v2907
    %4092 = vmatprep.mubr.bf16.mxu0 %v1052
    %4093 = vmatmul.mubr.bf16.gmra.mrb[0].mxu0 %v1051
    %v4094 = vpop.f32.mrb[0].mxu0
    %v4095 = vadd.f32 %v4055, %v4094
    %v4096 = vpop.f32.mrb[0].mxu0
    %v4097 = vpop.f32.mrb[0].mxu0
    %v4098 = vpop.f32.mrb[0].mxu0
    %4099 = vdwg.mxu0
    %4100 = vmatprep.subr.bf16.mxu0 0
    %4101 = vmatpush1.bf16.msra.mxu0 %v2908
    %4102 = vmatprep.subr.bf16.mxu0 0
    %4103 = vmatpush1.bf16.msra.mxu0 %v2909
    %4104 = vmatprep.subr.bf16.mxu0 0
    %4105 = vmatpush1.bf16.msra.mxu0 %v2910
    %4106 = vmatprep.subr.bf16.mxu0 0
    %4107 = vmatpush1.bf16.msra.mxu0 %v2911
    %4108 = vmatprep.subr.bf16.mxu0 0
    %4109 = vmatpush1.bf16.msra.mxu0 %v2912
    %4110 = vmatprep.subr.bf16.mxu0 0
    %4111 = vmatpush1.bf16.msra.mxu0 %v2913
    %4112 = vmatprep.subr.bf16.mxu0 0
    %4113 = vmatpush1.bf16.msra.mxu0 %v2914
    %4114 = vmatprep.subr.bf16.mxu0 0
    %4115 = vmatpush1.bf16.msra.mxu0 %v2915
    %4116 = vmatprep.subr.bf16.mxu0 0
    %4117 = vmatpush1.bf16.msra.mxu0 %v2916
    %4118 = vmatprep.subr.bf16.mxu0 0
    %4119 = vmatpush1.bf16.msra.mxu0 %v2917
    %4120 = vmatprep.subr.bf16.mxu0 0
    %4121 = vmatpush1.bf16.msra.mxu0 %v2918
    %4122 = vmatprep.subr.bf16.mxu0 0
    %4123 = vmatpush1.bf16.msra.mxu0 %v2919
    %4124 = vmatprep.subr.bf16.mxu0 0
    %4125 = vmatpush1.bf16.msra.mxu0 %v2920
    %4126 = vmatprep.subr.bf16.mxu0 0
    %4127 = vmatpush1.bf16.msra.mxu0 %v2921
    %4128 = vmatprep.subr.bf16.mxu0 0
    %4129 = vmatpush1.bf16.msra.mxu0 %v2922
    %4130 = vmatprep.subr.bf16.mxu0 0
    %4131 = vmatpush1.bf16.msra.mxu0 %v2923
    %4132 = vmatprep.mubr.bf16.mxu0 %v1054
    %4133 = vmatmul.mubr.bf16.gmra.mrb[0].mxu0 %v1053
    %v4134 = vpop.f32.mrb[0].mxu0
    %v4135 = vadd.f32 %v4095, %v4134
    %v4136 = vpop.f32.mrb[0].mxu0
    %v4137 = vpop.f32.mrb[0].mxu0
    %v4138 = vpop.f32.mrb[0].mxu0
    %4139 = vdwg.mxu0
    %4140 = vmatprep.subr.bf16.mxu0 0
    %4141 = vmatpush1.bf16.msra.mxu0 %v2924
    %4142 = vmatprep.subr.bf16.mxu0 0
    %4143 = vmatpush1.bf16.msra.mxu0 %v2925
    %4144 = vmatprep.subr.bf16.mxu0 0
    %4145 = vmatpush1.bf16.msra.mxu0 %v2926
    %4146 = vmatprep.subr.bf16.mxu0 0
    %4147 = vmatpush1.bf16.msra.mxu0 %v2927
    %4148 = vmatprep.subr.bf16.mxu0 0
    %4149 = vmatpush1.bf16.msra.mxu0 %v2928
    %4150 = vmatprep.subr.bf16.mxu0 0
    %4151 = vmatpush1.bf16.msra.mxu0 %v2929
    %4152 = vmatprep.subr.bf16.mxu0 0
    %4153 = vmatpush1.bf16.msra.mxu0 %v2930
    %4154 = vmatprep.subr.bf16.mxu0 0
    %4155 = vmatpush1.bf16.msra.mxu0 %v2931
    %4156 = vmatprep.subr.bf16.mxu0 0
    %4157 = vmatpush1.bf16.msra.mxu0 %v2932
    %4158 = vmatprep.subr.bf16.mxu0 0
    %4159 = vmatpush1.bf16.msra.mxu0 %v2933
    %4160 = vmatprep.subr.bf16.mxu0 0
    %4161 = vmatpush1.bf16.msra.mxu0 %v2934
    %4162 = vmatprep.subr.bf16.mxu0 0
    %4163 = vmatpush1.bf16.msra.mxu0 %v2935
    %4164 = vmatprep.subr.bf16.mxu0 0
    %4165 = vmatpush1.bf16.msra.mxu0 %v2936
    %4166 = vmatprep.subr.bf16.mxu0 0
    %4167 = vmatpush1.bf16.msra.mxu0 %v2937
    %4168 = vmatprep.subr.bf16.mxu0 0
    %4169 = vmatpush1.bf16.msra.mxu0 %v2938
    %4170 = vmatprep.subr.bf16.mxu0 0
    %4171 = vmatpush1.bf16.msra.mxu0 %v2939
    %4172 = vmatprep.mubr.bf16.mxu0 %v1056
    %4173 = vmatmul.mubr.bf16.gmra.mrb[0].mxu0 %v1055
    %v4174 = vpop.f32.mrb[0].mxu0
    %v4175 = vadd.f32 %v4135, %v4174
    %v4176 = vpop.f32.mrb[0].mxu0
    %v4177 = vpop.f32.mrb[0].mxu0
    %v4178 = vpop.f32.mrb[0].mxu0
    %4179 = vdwg.mxu0
    %4180 = vmatprep.subr.bf16.mxu0 0
    %4181 = vmatpush1.bf16.msra.mxu0 %v2940
    %4182 = vmatprep.subr.bf16.mxu0 0
    %4183 = vmatpush1.bf16.msra.mxu0 %v2941
    %4184 = vmatprep.subr.bf16.mxu0 0
    %4185 = vmatpush1.bf16.msra.mxu0 %v2942
    %4186 = vmatprep.subr.bf16.mxu0 0
    %4187 = vmatpush1.bf16.msra.mxu0 %v2943
    %4188 = vmatprep.subr.bf16.mxu0 0
    %4189 = vmatpush1.bf16.msra.mxu0 %v2944
    %4190 = vmatprep.subr.bf16.mxu0 0
    %4191 = vmatpush1.bf16.msra.mxu0 %v2945
    %4192 = vmatprep.subr.bf16.mxu0 0
    %4193 = vmatpush1.bf16.msra.mxu0 %v2946
    %4194 = vmatprep.subr.bf16.mxu0 0
    %4195 = vmatpush1.bf16.msra.mxu0 %v2947
    %4196 = vmatprep.subr.bf16.mxu0 0
    %4197 = vmatpush1.bf16.msra.mxu0 %v2948
    %4198 = vmatprep.subr.bf16.mxu0 0
    %4199 = vmatpush1.bf16.msra.mxu0 %v2949
    %4200 = vmatprep.subr.bf16.mxu0 0
    %4201 = vmatpush1.bf16.msra.mxu0 %v2950
    %4202 = vmatprep.subr.bf16.mxu0 0
    %4203 = vmatpush1.bf16.msra.mxu0 %v2951
    %4204 = vmatprep.subr.bf16.mxu0 0
    %4205 = vmatpush1.bf16.msra.mxu0 %v2952
    %4206 = vmatprep.subr.bf16.mxu0 0
    %4207 = vmatpush1.bf16.msra.mxu0 %v2953
    %4208 = vmatprep.subr.bf16.mxu0 0
    %4209 = vmatpush1.bf16.msra.mxu0 %v2954
    %4210 = vmatprep.subr.bf16.mxu0 0
    %4211 = vmatpush1.bf16.msra.mxu0 %v2955
    %4212 = vmatprep.mubr.bf16.mxu0 %v1058
    %4213 = vmatmul.mubr.bf16.gmra.mrb[0].mxu0 %v1057
    %v4214 = vpop.f32.mrb[0].mxu0
    %v4215 = vadd.f32 %v4175, %v4214
    %v4216 = vpop.f32.mrb[0].mxu0
    %v4217 = vpop.f32.mrb[0].mxu0
    %v4218 = vpop.f32.mrb[0].mxu0
    %4219 = vdwg.mxu0
    %4220 = vmatprep.subr.bf16.mxu0 0
    %4221 = vmatpush1.bf16.msra.mxu0 %v2956
    %4222 = vmatprep.subr.bf16.mxu0 0
    %4223 = vmatpush1.bf16.msra.mxu0 %v2957
    %4224 = vmatprep.subr.bf16.mxu0 0
    %4225 = vmatpush1.bf16.msra.mxu0 %v2958
    %4226 = vmatprep.subr.bf16.mxu0 0
    %4227 = vmatpush1.bf16.msra.mxu0 %v2959
    %4228 = vmatprep.subr.bf16.mxu0 0
    %4229 = vmatpush1.bf16.msra.mxu0 %v2960
    %4230 = vmatprep.subr.bf16.mxu0 0
    %4231 = vmatpush1.bf16.msra.mxu0 %v2961
    %4232 = vmatprep.subr.bf16.mxu0 0
    %4233 = vmatpush1.bf16.msra.mxu0 %v2962
    %4234 = vmatprep.subr.bf16.mxu0 0
    %4235 = vmatpush1.bf16.msra.mxu0 %v2963
    %4236 = vmatprep.subr.bf16.mxu0 0
    %4237 = vmatpush1.bf16.msra.mxu0 %v2964
    %4238 = vmatprep.subr.bf16.mxu0 0
    %4239 = vmatpush1.bf16.msra.mxu0 %v2965
    %4240 = vmatprep.subr.bf16.mxu0 0
    %4241 = vmatpush1.bf16.msra.mxu0 %v2966
    %4242 = vmatprep.subr.bf16.mxu0 0
    %4243 = vmatpush1.bf16.msra.mxu0 %v2967
    %4244 = vmatprep.subr.bf16.mxu0 0
    %4245 = vmatpush1.bf16.msra.mxu0 %v2968
    %4246 = vmatprep.subr.bf16.mxu0 0
    %4247 = vmatpush1.bf16.msra.mxu0 %v2969
    %4248 = vmatprep.subr.bf16.mxu0 0
    %4249 = vmatpush1.bf16.msra.mxu0 %v2970
    %4250 = vmatprep.subr.bf16.mxu0 0
    %4251 = vmatpush1.bf16.msra.mxu0 %v2971
    %4252 = vmatprep.mubr.bf16.mxu0 %v1060
    %4253 = vmatmul.mubr.bf16.gmra.mrb[0].mxu0 %v1059
    %v4254 = vpop.f32.mrb[0].mxu0
    %v4255 = vadd.f32 %v4215, %v4254
    %v4256 = vpop.f32.mrb[0].mxu0
    %v4257 = vpop.f32.mrb[0].mxu0
    %v4258 = vpop.f32.mrb[0].mxu0
    %4259 = vdwg.mxu0
    %4260 = vmatprep.subr.bf16.mxu0 0
    %4261 = vmatpush1.bf16.msra.mxu0 %v2972
    %4262 = vmatprep.subr.bf16.mxu0 0
    %4263 = vmatpush1.bf16.msra.mxu0 %v2973
    %4264 = vmatprep.subr.bf16.mxu0 0
    %4265 = vmatpush1.bf16.msra.mxu0 %v2974
    %4266 = vmatprep.subr.bf16.mxu0 0
    %4267 = vmatpush1.bf16.msra.mxu0 %v2975
    %4268 = vmatprep.subr.bf16.mxu0 0
    %4269 = vmatpush1.bf16.msra.mxu0 %v2976
    %4270 = vmatprep.subr.bf16.mxu0 0
    %4271 = vmatpush1.bf16.msra.mxu0 %v2977
    %4272 = vmatprep.subr.bf16.mxu0 0
    %4273 = vmatpush1.bf16.msra.mxu0 %v2978
    %4274 = vmatprep.subr.bf16.mxu0 0
    %4275 = vmatpush1.bf16.msra.mxu0 %v2979
    %4276 = vmatprep.subr.bf16.mxu0 0
    %4277 = vmatpush1.bf16.msra.mxu0 %v2980
    %4278 = vmatprep.subr.bf16.mxu0 0
    %4279 = vmatpush1.bf16.msra.mxu0 %v2981
    %4280 = vmatprep.subr.bf16.mxu0 0
    %4281 = vmatpush1.bf16.msra.mxu0 %v2982
    %4282 = vmatprep.subr.bf16.mxu0 0
    %4283 = vmatpush1.bf16.msra.mxu0 %v2983
    %4284 = vmatprep.subr.bf16.mxu0 0
    %4285 = vmatpush1.bf16.msra.mxu0 %v2984
    %4286 = vmatprep.subr.bf16.mxu0 0
    %4287 = vmatpush1.bf16.msra.mxu0 %v2985
    %4288 = vmatprep.subr.bf16.mxu0 0
    %4289 = vmatpush1.bf16.msra.mxu0 %v2986
    %4290 = vmatprep.subr.bf16.mxu0 0
    %4291 = vmatpush1.bf16.msra.mxu0 %v2987
    %4292 = vmatprep.mubr.bf16.mxu0 %v1062
    %4293 = vmatmul.mubr.bf16.gmra.mrb[0].mxu0 %v1061
    %v4294 = vpop.f32.mrb[0].mxu0
    %v4295 = vadd.f32 %v4255, %v4294
    %v4296 = vpop.f32.mrb[0].mxu0
    %v4297 = vpop.f32.mrb[0].mxu0
    %v4298 = vpop.f32.mrb[0].mxu0
    %4299 = vdwg.mxu0
    %4300 = vmatprep.subr.bf16.mxu0 0
    %4301 = vmatpush1.bf16.msra.mxu0 %v2988
    %4302 = vmatprep.subr.bf16.mxu0 0
    %4303 = vmatpush1.bf16.msra.mxu0 %v2989
    %4304 = vmatprep.subr.bf16.mxu0 0
    %4305 = vmatpush1.bf16.msra.mxu0 %v2990
    %4306 = vmatprep.subr.bf16.mxu0 0
    %4307 = vmatpush1.bf16.msra.mxu0 %v2991
    %4308 = vmatprep.subr.bf16.mxu0 0
    %4309 = vmatpush1.bf16.msra.mxu0 %v2992
    %4310 = vmatprep.subr.bf16.mxu0 0
    %4311 = vmatpush1.bf16.msra.mxu0 %v2993
    %4312 = vmatprep.subr.bf16.mxu0 0
    %4313 = vmatpush1.bf16.msra.mxu0 %v2994
    %4314 = vmatprep.subr.bf16.mxu0 0
    %4315 = vmatpush1.bf16.msra.mxu0 %v2995
    %4316 = vmatprep.subr.bf16.mxu0 0
    %4317 = vmatpush1.bf16.msra.mxu0 %v2996
    %4318 = vmatprep.subr.bf16.mxu0 0
    %4319 = vmatpush1.bf16.msra.mxu0 %v2997
    %4320 = vmatprep.subr.bf16.mxu0 0
    %4321 = vmatpush1.bf16.msra.mxu0 %v2998
    %4322 = vmatprep.subr.bf16.mxu0 0
    %4323 = vmatpush1.bf16.msra.mxu0 %v2999
    %4324 = vmatprep.subr.bf16.mxu0 0
    %4325 = vmatpush1.bf16.msra.mxu0 %v3000
    %4326 = vmatprep.subr.bf16.mxu0 0
    %4327 = vmatpush1.bf16.msra.mxu0 %v3001
    %4328 = vmatprep.subr.bf16.mxu0 0
    %4329 = vmatpush1.bf16.msra.mxu0 %v3002
    %4330 = vmatprep.subr.bf16.mxu0 0
    %4331 = vmatpush1.bf16.msra.mxu0 %v3003
    %4332 = vmatprep.mubr.bf16.mxu0 %v1064
    %4333 = vmatmul.mubr.bf16.gmra.mrb[0].mxu0 %v1063
    %v4334 = vpop.f32.mrb[0].mxu0
    %v4335 = vadd.f32 %v4295, %v4334
    %v4336 = vpop.f32.mrb[0].mxu0
    %v4337 = vpop.f32.mrb[0].mxu0
    %v4338 = vpop.f32.mrb[0].mxu0
    %4339 = vdwg.mxu0
    %4340 = vmatprep.subr.bf16.mxu0 0
    %4341 = vmatpush1.bf16.msra.mxu0 %v3004
    %4342 = vmatprep.subr.bf16.mxu0 0
    %4343 = vmatpush1.bf16.msra.mxu0 %v3005
    %4344 = vmatprep.subr.bf16.mxu0 0
    %4345 = vmatpush1.bf16.msra.mxu0 %v3006
    %4346 = vmatprep.subr.bf16.mxu0 0
    %4347 = vmatpush1.bf16.msra.mxu0 %v3007
    %4348 = vmatprep.subr.bf16.mxu0 0
    %4349 = vmatpush1.bf16.msra.mxu0 %v3008
    %4350 = vmatprep.subr.bf16.mxu0 0
    %4351 = vmatpush1.bf16.msra.mxu0 %v3009
    %4352 = vmatprep.subr.bf16.mxu0 0
    %4353 = vmatpush1.bf16.msra.mxu0 %v3010
    %4354 = vmatprep.subr.bf16.mxu0 0
    %4355 = vmatpush1.bf16.msra.mxu0 %v3011
    %4356 = vmatprep.subr.bf16.mxu0 0
    %4357 = vmatpush1.bf16.msra.mxu0 %v3012
    %4358 = vmatprep.subr.bf16.mxu0 0
    %4359 = vmatpush1.bf16.msra.mxu0 %v3013
    %4360 = vmatprep.subr.bf16.mxu0 0
    %4361 = vmatpush1.bf16.msra.mxu0 %v3014
    %4362 = vmatprep.subr.bf16.mxu0 0
    %4363 = vmatpush1.bf16.msra.mxu0 %v3015
    %4364 = vmatprep.subr.bf16.mxu0 0
    %4365 = vmatpush1.bf16.msra.mxu0 %v3016
    %4366 = vmatprep.subr.bf16.mxu0 0
    %4367 = vmatpush1.bf16.msra.mxu0 %v3017
    %4368 = vmatprep.subr.bf16.mxu0 0
    %4369 = vmatpush1.bf16.msra.mxu0 %v3018
    %4370 = vmatprep.subr.bf16.mxu0 0
    %4371 = vmatpush1.bf16.msra.mxu0 %v3019
    %4372 = vmatprep.mubr.bf16.mxu0 %v1066
    %4373 = vmatmul.mubr.bf16.gmra.mrb[0].mxu0 %v1065
    %v4374 = vpop.f32.mrb[0].mxu0
    %v4375 = vadd.f32 %v4335, %v4374
    %v4376 = vpop.f32.mrb[0].mxu0
    %v4377 = vpop.f32.mrb[0].mxu0
    %v4378 = vpop.f32.mrb[0].mxu0
    %4379 = vdwg.mxu0
    %4380 = vmatprep.subr.bf16.mxu0 0
    %4381 = vmatpush1.bf16.msra.mxu0 %v3020
    %4382 = vmatprep.subr.bf16.mxu0 0
    %4383 = vmatpush1.bf16.msra.mxu0 %v3021
    %4384 = vmatprep.subr.bf16.mxu0 0
    %4385 = vmatpush1.bf16.msra.mxu0 %v3022
    %4386 = vmatprep.subr.bf16.mxu0 0
    %4387 = vmatpush1.bf16.msra.mxu0 %v3023
    %4388 = vmatprep.subr.bf16.mxu0 0
    %4389 = vmatpush1.bf16.msra.mxu0 %v3024
    %4390 = vmatprep.subr.bf16.mxu0 0
    %4391 = vmatpush1.bf16.msra.mxu0 %v3025
    %4392 = vmatprep.subr.bf16.mxu0 0
    %4393 = vmatpush1.bf16.msra.mxu0 %v3026
    %4394 = vmatprep.subr.bf16.mxu0 0
    %4395 = vmatpush1.bf16.msra.mxu0 %v3027
    %4396 = vmatprep.subr.bf16.mxu0 0
    %4397 = vmatpush1.bf16.msra.mxu0 0
    %4398 = vmatprep.subr.bf16.mxu0 0
    %4399 = vmatpush1.bf16.msra.mxu0 0
    %4400 = vmatprep.subr.bf16.mxu0 0
    %4401 = vmatpush1.bf16.msra.mxu0 0
    %4402 = vmatprep.subr.bf16.mxu0 0
    %4403 = vmatpush1.bf16.msra.mxu0 0
    %4404 = vmatprep.subr.bf16.mxu0 0
    %4405 = vmatpush1.bf16.msra.mxu0 0
    %4406 = vmatprep.subr.bf16.mxu0 0
    %4407 = vmatpush1.bf16.msra.mxu0 0
    %4408 = vmatprep.subr.bf16.mxu0 0
    %4409 = vmatpush1.bf16.msra.mxu0 0
    %4410 = vmatprep.subr.bf16.mxu0 0
    %4411 = vmatpush1.bf16.msra.mxu0 0
    %4412 = vmatprep.mubr.bf16.mxu0 0
    %4413 = vmatmul.mubr.bf16.gmra.mrb[0].mxu0 %v1067
    %v4414 = vpop.f32.mrb[0].mxu0
    %v4415 = vadd.f32 %v4375, %v4414
    %v4416 = vpop.f32.mrb[0].mxu0
    %v4417 = vpop.f32.mrb[0].mxu0
    %v4418 = vpop.f32.mrb[0].mxu0
    %4419 = vdwg.mxu0
    %4420 = vmatprep.subr.bf16.mxu0 0
    %4421 = vmatpush1.bf16.msra.mxu0 %v2636
    %4422 = vmatprep.subr.bf16.mxu0 0
    %4423 = vmatpush1.bf16.msra.mxu0 %v2637
    %4424 = vmatprep.subr.bf16.mxu0 0
    %4425 = vmatpush1.bf16.msra.mxu0 %v2638
    %4426 = vmatprep.subr.bf16.mxu0 0
    %4427 = vmatpush1.bf16.msra.mxu0 %v2639
    %4428 = vmatprep.subr.bf16.mxu0 0
    %4429 = vmatpush1.bf16.msra.mxu0 %v2640
    %4430 = vmatprep.subr.bf16.mxu0 0
    %4431 = vmatpush1.bf16.msra.mxu0 %v2641
    %4432 = vmatprep.subr.bf16.mxu0 0
    %4433 = vmatpush1.bf16.msra.mxu0 %v2642
    %4434 = vmatprep.subr.bf16.mxu0 0
    %4435 = vmatpush1.bf16.msra.mxu0 %v2643
    %4436 = vmatprep.subr.bf16.mxu0 0
    %4437 = vmatpush1.bf16.msra.mxu0 %v2644
    %4438 = vmatprep.subr.bf16.mxu0 0
    %4439 = vmatpush1.bf16.msra.mxu0 %v2645
    %4440 = vmatprep.subr.bf16.mxu0 0
    %4441 = vmatpush1.bf16.msra.mxu0 %v2646
    %4442 = vmatprep.subr.bf16.mxu0 0
    %4443 = vmatpush1.bf16.msra.mxu0 %v2647
    %4444 = vmatprep.subr.bf16.mxu0 0
    %4445 = vmatpush1.bf16.msra.mxu0 %v2648
    %4446 = vmatprep.subr.bf16.mxu0 0
    %4447 = vmatpush1.bf16.msra.mxu0 %v2649
    %4448 = vmatprep.subr.bf16.mxu0 0
    %4449 = vmatpush1.bf16.msra.mxu0 %v2650
    %4450 = vmatprep.subr.bf16.mxu0 0
    %4451 = vmatpush1.bf16.msra.mxu0 %v2651
    %4452 = vmatprep.mubr.bf16.mxu0 %v873
    %4453 = vmatmul.mubr.bf16.gmra.mrb[0].mxu0 %v872
    %v4454 = vpop.f32.mrb[0].mxu0
    %v4455 = vadd.f32 %v4415, %v4454
    %v4456 = vpop.f32.mrb[0].mxu0
    %v4457 = vpop.f32.mrb[0].mxu0
    %v4458 = vpop.f32.mrb[0].mxu0
    %4459 = vdwg.mxu0
    %4460 = vmatprep.subr.bf16.mxu0 0
    %4461 = vmatpush1.bf16.msra.mxu0 %v2652
    %4462 = vmatprep.subr.bf16.mxu0 0
    %4463 = vmatpush1.bf16.msra.mxu0 %v2653
    %4464 = vmatprep.subr.bf16.mxu0 0
    %4465 = vmatpush1.bf16.msra.mxu0 %v2654
    %4466 = vmatprep.subr.bf16.mxu0 0
    %4467 = vmatpush1.bf16.msra.mxu0 %v2655
    %4468 = vmatprep.subr.bf16.mxu0 0
    %4469 = vmatpush1.bf16.msra.mxu0 %v2656
    %4470 = vmatprep.subr.bf16.mxu0 0
    %4471 = vmatpush1.bf16.msra.mxu0 %v2657
    %4472 = vmatprep.subr.bf16.mxu0 0
    %4473 = vmatpush1.bf16.msra.mxu0 %v2658
    %4474 = vmatprep.subr.bf16.mxu0 0
    %4475 = vmatpush1.bf16.msra.mxu0 %v2659
    %4476 = vmatprep.subr.bf16.mxu0 0
    %4477 = vmatpush1.bf16.msra.mxu0 %v2660
    %4478 = vmatprep.subr.bf16.mxu0 0
    %4479 = vmatpush1.bf16.msra.mxu0 %v2661
    %4480 = vmatprep.subr.bf16.mxu0 0
    %4481 = vmatpush1.bf16.msra.mxu0 %v2662
    %4482 = vmatprep.subr.bf16.mxu0 0
    %4483 = vmatpush1.bf16.msra.mxu0 %v2663
    %4484 = vmatprep.subr.bf16.mxu0 0
    %4485 = vmatpush1.bf16.msra.mxu0 %v2664
    %4486 = vmatprep.subr.bf16.mxu0 0
    %4487 = vmatpush1.bf16.msra.mxu0 %v2665
    %4488 = vmatprep.subr.bf16.mxu0 0
    %4489 = vmatpush1.bf16.msra.mxu0 %v2666
    %4490 = vmatprep.subr.bf16.mxu0 0
    %4491 = vmatpush1.bf16.msra.mxu0 %v2667
    %4492 = vmatprep.mubr.bf16.mxu0 %v875
    %4493 = vmatmul.mubr.bf16.gmra.mrb[0].mxu0 %v874
    %v4494 = vpop.f32.mrb[0].mxu0
    %v4495 = vadd.f32 %v4455, %v4494
    %v4496 = vpop.f32.mrb[0].mxu0
    %v4497 = vpop.f32.mrb[0].mxu0
    %v4498 = vpop.f32.mrb[0].mxu0
    %4499 = vdwg.mxu0
    %4500 = vmatprep.subr.bf16.mxu0 0
    %4501 = vmatpush1.bf16.msra.mxu0 %v2668
    %4502 = vmatprep.subr.bf16.mxu0 0
    %4503 = vmatpush1.bf16.msra.mxu0 %v2669
    %4504 = vmatprep.subr.bf16.mxu0 0
    %4505 = vmatpush1.bf16.msra.mxu0 %v2670
    %4506 = vmatprep.subr.bf16.mxu0 0
    %4507 = vmatpush1.bf16.msra.mxu0 %v2671
    %4508 = vmatprep.subr.bf16.mxu0 0
    %4509 = vmatpush1.bf16.msra.mxu0 %v2672
    %4510 = vmatprep.subr.bf16.mxu0 0
    %4511 = vmatpush1.bf16.msra.mxu0 %v2673
    %4512 = vmatprep.subr.bf16.mxu0 0
    %4513 = vmatpush1.bf16.msra.mxu0 %v2674
    %4514 = vmatprep.subr.bf16.mxu0 0
    %4515 = vmatpush1.bf16.msra.mxu0 %v2675
    %4516 = vmatprep.subr.bf16.mxu0 0
    %4517 = vmatpush1.bf16.msra.mxu0 %v2676
    %4518 = vmatprep.subr.bf16.mxu0 0
    %4519 = vmatpush1.bf16.msra.mxu0 %v2677
    %4520 = vmatprep.subr.bf16.mxu0 0
    %4521 = vmatpush1.bf16.msra.mxu0 %v2678
    %4522 = vmatprep.subr.bf16.mxu0 0
    %4523 = vmatpush1.bf16.msra.mxu0 %v2679
    %4524 = vmatprep.subr.bf16.mxu0 0
    %4525 = vmatpush1.bf16.msra.mxu0 %v2680
    %4526 = vmatprep.subr.bf16.mxu0 0
    %4527 = vmatpush1.bf16.msra.mxu0 %v2681
    %4528 = vmatprep.subr.bf16.mxu0 0
    %4529 = vmatpush1.bf16.msra.mxu0 %v2682
    %4530 = vmatprep.subr.bf16.mxu0 0
    %4531 = vmatpush1.bf16.msra.mxu0 %v2683
    %4532 = vmatprep.mubr.bf16.mxu0 %v877
    %4533 = vmatmul.mubr.bf16.gmra.mrb[0].mxu0 %v876
    %v4534 = vpop.f32.mrb[0].mxu0
    %v4535 = vadd.f32 %v4495, %v4534
    %v4536 = vpop.f32.mrb[0].mxu0
    %v4537 = vpop.f32.mrb[0].mxu0
    %v4538 = vpop.f32.mrb[0].mxu0
    %4539 = vdwg.mxu0
    %4540 = vmatprep.subr.bf16.mxu0 0
    %4541 = vmatpush1.bf16.msra.mxu0 %v2684
    %4542 = vmatprep.subr.bf16.mxu0 0
    %4543 = vmatpush1.bf16.msra.mxu0 %v2685
    %4544 = vmatprep.subr.bf16.mxu0 0
    %4545 = vmatpush1.bf16.msra.mxu0 %v2686
    %4546 = vmatprep.subr.bf16.mxu0 0
    %4547 = vmatpush1.bf16.msra.mxu0 %v2687
    %4548 = vmatprep.subr.bf16.mxu0 0
    %4549 = vmatpush1.bf16.msra.mxu0 %v2688
    %4550 = vmatprep.subr.bf16.mxu0 0
    %4551 = vmatpush1.bf16.msra.mxu0 %v2689
    %4552 = vmatprep.subr.bf16.mxu0 0
    %4553 = vmatpush1.bf16.msra.mxu0 %v2690
    %4554 = vmatprep.subr.bf16.mxu0 0
    %4555 = vmatpush1.bf16.msra.mxu0 %v2691
    %4556 = vmatprep.subr.bf16.mxu0 0
    %4557 = vmatpush1.bf16.msra.mxu0 %v2692
    %4558 = vmatprep.subr.bf16.mxu0 0
    %4559 = vmatpush1.bf16.msra.mxu0 %v2693
    %4560 = vmatprep.subr.bf16.mxu0 0
    %4561 = vmatpush1.bf16.msra.mxu0 %v2694
    %4562 = vmatprep.subr.bf16.mxu0 0
    %4563 = vmatpush1.bf16.msra.mxu0 %v2695
    %4564 = vmatprep.subr.bf16.mxu0 0
    %4565 = vmatpush1.bf16.msra.mxu0 %v2696
    %4566 = vmatprep.subr.bf16.mxu0 0
    %4567 = vmatpush1.bf16.msra.mxu0 %v2697
    %4568 = vmatprep.subr.bf16.mxu0 0
    %4569 = vmatpush1.bf16.msra.mxu0 %v2698
    %4570 = vmatprep.subr.bf16.mxu0 0
    %4571 = vmatpush1.bf16.msra.mxu0 %v2699
    %4572 = vmatprep.mubr.bf16.mxu0 %v879
    %4573 = vmatmul.mubr.bf16.gmra.mrb[0].mxu0 %v878
    %v4574 = vpop.f32.mrb[0].mxu0
    %v4575 = vadd.f32 %v4535, %v4574
    %v4576 = vpop.f32.mrb[0].mxu0
    %v4577 = vpop.f32.mrb[0].mxu0
    %v4578 = vpop.f32.mrb[0].mxu0
    %4579 = vdwg.mxu0
    %4580 = vmatprep.subr.bf16.mxu0 0
    %4581 = vmatpush1.bf16.msra.mxu0 %v2700
    %4582 = vmatprep.subr.bf16.mxu0 0
    %4583 = vmatpush1.bf16.msra.mxu0 %v2701
    %4584 = vmatprep.subr.bf16.mxu0 0
    %4585 = vmatpush1.bf16.msra.mxu0 %v2702
    %4586 = vmatprep.subr.bf16.mxu0 0
    %4587 = vmatpush1.bf16.msra.mxu0 %v2703
    %4588 = vmatprep.subr.bf16.mxu0 0
    %4589 = vmatpush1.bf16.msra.mxu0 %v2704
    %4590 = vmatprep.subr.bf16.mxu0 0
    %4591 = vmatpush1.bf16.msra.mxu0 %v2705
    %4592 = vmatprep.subr.bf16.mxu0 0
    %4593 = vmatpush1.bf16.msra.mxu0 %v2706
    %4594 = vmatprep.subr.bf16.mxu0 0
    %4595 = vmatpush1.bf16.msra.mxu0 %v2707
    %4596 = vmatprep.subr.bf16.mxu0 0
    %4597 = vmatpush1.bf16.msra.mxu0 %v2708
    %4598 = vmatprep.subr.bf16.mxu0 0
    %4599 = vmatpush1.bf16.msra.mxu0 %v2709
    %4600 = vmatprep.subr.bf16.mxu0 0
    %4601 = vmatpush1.bf16.msra.mxu0 %v2710
    %4602 = vmatprep.subr.bf16.mxu0 0
    %4603 = vmatpush1.bf16.msra.mxu0 %v2711
    %4604 = vmatprep.subr.bf16.mxu0 0
    %4605 = vmatpush1.bf16.msra.mxu0 %v2712
    %4606 = vmatprep.subr.bf16.mxu0 0
    %4607 = vmatpush1.bf16.msra.mxu0 %v2713
    %4608 = vmatprep.subr.bf16.mxu0 0
    %4609 = vmatpush1.bf16.msra.mxu0 %v2714
    %4610 = vmatprep.subr.bf16.mxu0 0
    %4611 = vmatpush1.bf16.msra.mxu0 %v2715
    %4612 = vmatprep.mubr.bf16.mxu0 %v881
    %4613 = vmatmul.mubr.bf16.gmra.mrb[0].mxu0 %v880
    %v4614 = vpop.f32.mrb[0].mxu0
    %v4615 = vadd.f32 %v4575, %v4614
    %v4616 = vpop.f32.mrb[0].mxu0
    %v4617 = vpop.f32.mrb[0].mxu0
    %v4618 = vpop.f32.mrb[0].mxu0
    %4619 = vdwg.mxu0
    %4620 = vmatprep.subr.bf16.mxu0 0
    %4621 = vmatpush1.bf16.msra.mxu0 %v2716
    %4622 = vmatprep.subr.bf16.mxu0 0
    %4623 = vmatpush1.bf16.msra.mxu0 %v2717
    %4624 = vmatprep.subr.bf16.mxu0 0
    %4625 = vmatpush1.bf16.msra.mxu0 %v2718
    %4626 = vmatprep.subr.bf16.mxu0 0
    %4627 = vmatpush1.bf16.msra.mxu0 %v2719
    %4628 = vmatprep.subr.bf16.mxu0 0
    %4629 = vmatpush1.bf16.msra.mxu0 %v2720
    %4630 = vmatprep.subr.bf16.mxu0 0
    %4631 = vmatpush1.bf16.msra.mxu0 %v2721
    %4632 = vmatprep.subr.bf16.mxu0 0
    %4633 = vmatpush1.bf16.msra.mxu0 %v2722
    %4634 = vmatprep.subr.bf16.mxu0 0
    %4635 = vmatpush1.bf16.msra.mxu0 %v2723
    %4636 = vmatprep.subr.bf16.mxu0 0
    %4637 = vmatpush1.bf16.msra.mxu0 %v2724
    %4638 = vmatprep.subr.bf16.mxu0 0
    %4639 = vmatpush1.bf16.msra.mxu0 %v2725
    %4640 = vmatprep.subr.bf16.mxu0 0
    %4641 = vmatpush1.bf16.msra.mxu0 %v2726
    %4642 = vmatprep.subr.bf16.mxu0 0
    %4643 = vmatpush1.bf16.msra.mxu0 %v2727
    %4644 = vmatprep.subr.bf16.mxu0 0
    %4645 = vmatpush1.bf16.msra.mxu0 %v2728
    %4646 = vmatprep.subr.bf16.mxu0 0
    %4647 = vmatpush1.bf16.msra.mxu0 %v2729
    %4648 = vmatprep.subr.bf16.mxu0 0
    %4649 = vmatpush1.bf16.msra.mxu0 %v2730
    %4650 = vmatprep.subr.bf16.mxu0 0
    %4651 = vmatpush1.bf16.msra.mxu0 %v2731
    %4652 = vmatprep.mubr.bf16.mxu0 %v883
    %4653 = vmatmul.mubr.bf16.gmra.mrb[0].mxu0 %v882
    %v4654 = vpop.f32.mrb[0].mxu0
    %v4655 = vadd.f32 %v4615, %v4654
    %v4656 = vpop.f32.mrb[0].mxu0
    %v4657 = vpop.f32.mrb[0].mxu0
    %v4658 = vpop.f32.mrb[0].mxu0
    %4659 = vdwg.mxu0
    %4660 = vmatprep.subr.bf16.mxu0 0
    %4661 = vmatpush1.bf16.msra.mxu0 %v2732
    %4662 = vmatprep.subr.bf16.mxu0 0
    %4663 = vmatpush1.bf16.msra.mxu0 %v2733
    %4664 = vmatprep.subr.bf16.mxu0 0
    %4665 = vmatpush1.bf16.msra.mxu0 %v2734
    %4666 = vmatprep.subr.bf16.mxu0 0
    %4667 = vmatpush1.bf16.msra.mxu0 %v2735
    %4668 = vmatprep.subr.bf16.mxu0 0
    %4669 = vmatpush1.bf16.msra.mxu0 %v2736
    %4670 = vmatprep.subr.bf16.mxu0 0
    %4671 = vmatpush1.bf16.msra.mxu0 %v2737
    %4672 = vmatprep.subr.bf16.mxu0 0
    %4673 = vmatpush1.bf16.msra.mxu0 %v2738
    %4674 = vmatprep.subr.bf16.mxu0 0
    %4675 = vmatpush1.bf16.msra.mxu0 %v2739
    %4676 = vmatprep.subr.bf16.mxu0 0
    %4677 = vmatpush1.bf16.msra.mxu0 %v2740
    %4678 = vmatprep.subr.bf16.mxu0 0
    %4679 = vmatpush1.bf16.msra.mxu0 %v2741
    %4680 = vmatprep.subr.bf16.mxu0 0
    %4681 = vmatpush1.bf16.msra.mxu0 %v2742
    %4682 = vmatprep.subr.bf16.mxu0 0
    %4683 = vmatpush1.bf16.msra.mxu0 %v2743
    %4684 = vmatprep.subr.bf16.mxu0 0
    %4685 = vmatpush1.bf16.msra.mxu0 %v2744
    %4686 = vmatprep.subr.bf16.mxu0 0
    %4687 = vmatpush1.bf16.msra.mxu0 %v2745
    %4688 = vmatprep.subr.bf16.mxu0 0
    %4689 = vmatpush1.bf16.msra.mxu0 %v2746
    %4690 = vmatprep.subr.bf16.mxu0 0
    %4691 = vmatpush1.bf16.msra.mxu0 %v2747
    %4692 = vmatprep.mubr.bf16.mxu0 %v885
    %4693 = vmatmul.mubr.bf16.gmra.mrb[0].mxu0 %v884
    %v4694 = vpop.f32.mrb[0].mxu0
    %v4695 = vadd.f32 %v4655, %v4694
    %v4696 = vpop.f32.mrb[0].mxu0
    %v4697 = vpop.f32.mrb[0].mxu0
    %v4698 = vpop.f32.mrb[0].mxu0
    %4699 = vdwg.mxu0
    %4700 = vmatprep.subr.bf16.mxu0 0
    %4701 = vmatpush1.bf16.msra.mxu0 %v2748
    %4702 = vmatprep.subr.bf16.mxu0 0
    %4703 = vmatpush1.bf16.msra.mxu0 %v2749
    %4704 = vmatprep.subr.bf16.mxu0 0
    %4705 = vmatpush1.bf16.msra.mxu0 %v2750
    %4706 = vmatprep.subr.bf16.mxu0 0
    %4707 = vmatpush1.bf16.msra.mxu0 %v2751
    %4708 = vmatprep.subr.bf16.mxu0 0
    %4709 = vmatpush1.bf16.msra.mxu0 %v2752
    %4710 = vmatprep.subr.bf16.mxu0 0
    %4711 = vmatpush1.bf16.msra.mxu0 %v2753
    %4712 = vmatprep.subr.bf16.mxu0 0
    %4713 = vmatpush1.bf16.msra.mxu0 %v2754
    %4714 = vmatprep.subr.bf16.mxu0 0
    %4715 = vmatpush1.bf16.msra.mxu0 %v2755
    %4716 = vmatprep.subr.bf16.mxu0 0
    %4717 = vmatpush1.bf16.msra.mxu0 %v2756
    %4718 = vmatprep.subr.bf16.mxu0 0
    %4719 = vmatpush1.bf16.msra.mxu0 %v2757
    %4720 = vmatprep.subr.bf16.mxu0 0
    %4721 = vmatpush1.bf16.msra.mxu0 %v2758
    %4722 = vmatprep.subr.bf16.mxu0 0
    %4723 = vmatpush1.bf16.msra.mxu0 %v2759
    %4724 = vmatprep.subr.bf16.mxu0 0
    %4725 = vmatpush1.bf16.msra.mxu0 %v2760
    %4726 = vmatprep.subr.bf16.mxu0 0
    %4727 = vmatpush1.bf16.msra.mxu0 %v2761
    %4728 = vmatprep.subr.bf16.mxu0 0
    %4729 = vmatpush1.bf16.msra.mxu0 %v2762
    %4730 = vmatprep.subr.bf16.mxu0 0
    %4731 = vmatpush1.bf16.msra.mxu0 %v2763
    %4732 = vmatprep.mubr.bf16.mxu0 %v887
    %4733 = vmatmul.mubr.bf16.gmra.mrb[0].mxu0 %v886
    %v4734 = vpop.f32.mrb[0].mxu0
    %v4735 = vadd.f32 %v4695, %v4734
    %v4736 = vpop.f32.mrb[0].mxu0
    %v4737 = vpop.f32.mrb[0].mxu0
    %v4738 = vpop.f32.mrb[0].mxu0
    %4739 = vdwg.mxu0
    %4740 = vmatprep.subr.bf16.mxu0 0
    %4741 = vmatpush1.bf16.msra.mxu0 %v2764
    %4742 = vmatprep.subr.bf16.mxu0 0
    %4743 = vmatpush1.bf16.msra.mxu0 %v2765
    %4744 = vmatprep.subr.bf16.mxu0 0
    %4745 = vmatpush1.bf16.msra.mxu0 %v2766
    %4746 = vmatprep.subr.bf16.mxu0 0
    %4747 = vmatpush1.bf16.msra.mxu0 %v2767
    %4748 = vmatprep.subr.bf16.mxu0 0
    %4749 = vmatpush1.bf16.msra.mxu0 %v2768
    %4750 = vmatprep.subr.bf16.mxu0 0
    %4751 = vmatpush1.bf16.msra.mxu0 %v2769
    %4752 = vmatprep.subr.bf16.mxu0 0
    %4753 = vmatpush1.bf16.msra.mxu0 %v2770
    %4754 = vmatprep.subr.bf16.mxu0 0
    %4755 = vmatpush1.bf16.msra.mxu0 %v2771
    %4756 = vmatprep.subr.bf16.mxu0 0
    %4757 = vmatpush1.bf16.msra.mxu0 %v2772
    %4758 = vmatprep.subr.bf16.mxu0 0
    %4759 = vmatpush1.bf16.msra.mxu0 %v2773
    %4760 = vmatprep.subr.bf16.mxu0 0
    %4761 = vmatpush1.bf16.msra.mxu0 %v2774
    %4762 = vmatprep.subr.bf16.mxu0 0
    %4763 = vmatpush1.bf16.msra.mxu0 %v2775
    %4764 = vmatprep.subr.bf16.mxu0 0
    %4765 = vmatpush1.bf16.msra.mxu0 %v2776
    %4766 = vmatprep.subr.bf16.mxu0 0
    %4767 = vmatpush1.bf16.msra.mxu0 %v2777
    %4768 = vmatprep.subr.bf16.mxu0 0
    %4769 = vmatpush1.bf16.msra.mxu0 %v2778
    %4770 = vmatprep.subr.bf16.mxu0 0
    %4771 = vmatpush1.bf16.msra.mxu0 %v2779
    %4772 = vmatprep.mubr.bf16.mxu0 %v889
    %4773 = vmatmul.mubr.bf16.gmra.mrb[0].mxu0 %v888
    %v4774 = vpop.f32.mrb[0].mxu0
    %v4775 = vadd.f32 %v4735, %v4774
    %v4776 = vpop.f32.mrb[0].mxu0
    %v4777 = vpop.f32.mrb[0].mxu0
    %v4778 = vpop.f32.mrb[0].mxu0
    %4779 = vdwg.mxu0
    %4780 = vmatprep.subr.bf16.mxu0 0
    %4781 = vmatpush1.bf16.msra.mxu0 %v2780
    %4782 = vmatprep.subr.bf16.mxu0 0
    %4783 = vmatpush1.bf16.msra.mxu0 %v2781
    %4784 = vmatprep.subr.bf16.mxu0 0
    %4785 = vmatpush1.bf16.msra.mxu0 %v2782
    %4786 = vmatprep.subr.bf16.mxu0 0
    %4787 = vmatpush1.bf16.msra.mxu0 %v2783
    %4788 = vmatprep.subr.bf16.mxu0 0
    %4789 = vmatpush1.bf16.msra.mxu0 %v2784
    %4790 = vmatprep.subr.bf16.mxu0 0
    %4791 = vmatpush1.bf16.msra.mxu0 %v2785
    %4792 = vmatprep.subr.bf16.mxu0 0
    %4793 = vmatpush1.bf16.msra.mxu0 %v2786
    %4794 = vmatprep.subr.bf16.mxu0 0
    %4795 = vmatpush1.bf16.msra.mxu0 %v2787
    %4796 = vmatprep.subr.bf16.mxu0 0
    %4797 = vmatpush1.bf16.msra.mxu0 %v2788
    %4798 = vmatprep.subr.bf16.mxu0 0
    %4799 = vmatpush1.bf16.msra.mxu0 %v2789
    %4800 = vmatprep.subr.bf16.mxu0 0
    %4801 = vmatpush1.bf16.msra.mxu0 %v2790
    %4802 = vmatprep.subr.bf16.mxu0 0
    %4803 = vmatpush1.bf16.msra.mxu0 %v2791
    %4804 = vmatprep.subr.bf16.mxu0 0
    %4805 = vmatpush1.bf16.msra.mxu0 %v2792
    %4806 = vmatprep.subr.bf16.mxu0 0
    %4807 = vmatpush1.bf16.msra.mxu0 %v2793
    %4808 = vmatprep.subr.bf16.mxu0 0
    %4809 = vmatpush1.bf16.msra.mxu0 %v2794
    %4810 = vmatprep.subr.bf16.mxu0 0
    %4811 = vmatpush1.bf16.msra.mxu0 %v2795
    %4812 = vmatprep.mubr.bf16.mxu0 %v891
    %4813 = vmatmul.mubr.bf16.gmra.mrb[0].mxu0 %v890
    %v4814 = vpop.f32.mrb[0].mxu0
    %v4815 = vadd.f32 %v4775, %v4814
    %v4816 = vpop.f32.mrb[0].mxu0
    %v4817 = vpop.f32.mrb[0].mxu0
    %v4818 = vpop.f32.mrb[0].mxu0
    %4819 = vdwg.mxu0
    %4820 = vmatprep.subr.bf16.mxu0 0
    %4821 = vmatpush1.bf16.msra.mxu0 %v2796
    %4822 = vmatprep.subr.bf16.mxu0 0
    %4823 = vmatpush1.bf16.msra.mxu0 %v2797
    %4824 = vmatprep.subr.bf16.mxu0 0
    %4825 = vmatpush1.bf16.msra.mxu0 %v2798
    %4826 = vmatprep.subr.bf16.mxu0 0
    %4827 = vmatpush1.bf16.msra.mxu0 %v2799
    %4828 = vmatprep.subr.bf16.mxu0 0
    %4829 = vmatpush1.bf16.msra.mxu0 %v2800
    %4830 = vmatprep.subr.bf16.mxu0 0
    %4831 = vmatpush1.bf16.msra.mxu0 %v2801
    %4832 = vmatprep.subr.bf16.mxu0 0
    %4833 = vmatpush1.bf16.msra.mxu0 %v2802
    %4834 = vmatprep.subr.bf16.mxu0 0
    %4835 = vmatpush1.bf16.msra.mxu0 %v2803
    %4836 = vmatprep.subr.bf16.mxu0 0
    %4837 = vmatpush1.bf16.msra.mxu0 %v2804
    %4838 = vmatprep.subr.bf16.mxu0 0
    %4839 = vmatpush1.bf16.msra.mxu0 %v2805
    %4840 = vmatprep.subr.bf16.mxu0 0
    %4841 = vmatpush1.bf16.msra.mxu0 %v2806
    %4842 = vmatprep.subr.bf16.mxu0 0
    %4843 = vmatpush1.bf16.msra.mxu0 %v2807
    %4844 = vmatprep.subr.bf16.mxu0 0
    %4845 = vmatpush1.bf16.msra.mxu0 %v2808
    %4846 = vmatprep.subr.bf16.mxu0 0
    %4847 = vmatpush1.bf16.msra.mxu0 %v2809
    %4848 = vmatprep.subr.bf16.mxu0 0
    %4849 = vmatpush1.bf16.msra.mxu0 %v2810
    %4850 = vmatprep.subr.bf16.mxu0 0
    %4851 = vmatpush1.bf16.msra.mxu0 %v2811
    %4852 = vmatprep.mubr.bf16.mxu0 %v893
    %4853 = vmatmul.mubr.bf16.gmra.mrb[0].mxu0 %v892
    %v4854 = vpop.f32.mrb[0].mxu0
    %v4855 = vadd.f32 %v4815, %v4854
    %v4856 = vpop.f32.mrb[0].mxu0
    %v4857 = vpop.f32.mrb[0].mxu0
    %v4858 = vpop.f32.mrb[0].mxu0
    %4859 = vdwg.mxu0
    %4860 = vmatprep.subr.bf16.mxu0 0
    %4861 = vmatpush1.bf16.msra.mxu0 %v2812
    %4862 = vmatprep.subr.bf16.mxu0 0
    %4863 = vmatpush1.bf16.msra.mxu0 %v2813
    %4864 = vmatprep.subr.bf16.mxu0 0
    %4865 = vmatpush1.bf16.msra.mxu0 %v2814
    %4866 = vmatprep.subr.bf16.mxu0 0
    %4867 = vmatpush1.bf16.msra.mxu0 %v2815
    %4868 = vmatprep.subr.bf16.mxu0 0
    %4869 = vmatpush1.bf16.msra.mxu0 %v2816
    %4870 = vmatprep.subr.bf16.mxu0 0
    %4871 = vmatpush1.bf16.msra.mxu0 %v2817
    %4872 = vmatprep.subr.bf16.mxu0 0
    %4873 = vmatpush1.bf16.msra.mxu0 %v2818
    %4874 = vmatprep.subr.bf16.mxu0 0
    %4875 = vmatpush1.bf16.msra.mxu0 %v2819
    %4876 = vmatprep.subr.bf16.mxu0 0
    %4877 = vmatpush1.bf16.msra.mxu0 %v2820
    %4878 = vmatprep.subr.bf16.mxu0 0
    %4879 = vmatpush1.bf16.msra.mxu0 %v2821
    %4880 = vmatprep.subr.bf16.mxu0 0
    %4881 = vmatpush1.bf16.msra.mxu0 %v2822
    %4882 = vmatprep.subr.bf16.mxu0 0
    %4883 = vmatpush1.bf16.msra.mxu0 %v2823
    %4884 = vmatprep.subr.bf16.mxu0 0
    %4885 = vmatpush1.bf16.msra.mxu0 %v2824
    %4886 = vmatprep.subr.bf16.mxu0 0
    %4887 = vmatpush1.bf16.msra.mxu0 %v2825
    %4888 = vmatprep.subr.bf16.mxu0 0
    %4889 = vmatpush1.bf16.msra.mxu0 %v2826
    %4890 = vmatprep.subr.bf16.mxu0 0
    %4891 = vmatpush1.bf16.msra.mxu0 %v2827
    %4892 = vmatprep.mubr.bf16.mxu0 %v895
    %4893 = vmatmul.mubr.bf16.gmra.mrb[0].mxu0 %v894
    %v4894 = vpop.f32.mrb[0].mxu0
    %v4895 = vadd.f32 %v4855, %v4894
    %v4896 = vpop.f32.mrb[0].mxu0
    %v4897 = vpop.f32.mrb[0].mxu0
    %v4898 = vpop.f32.mrb[0].mxu0
    %4899 = vdwg.mxu0
    %4900 = vmatprep.subr.bf16.mxu0 0
    %4901 = vmatpush1.bf16.msra.mxu0 %v2828
    %4902 = vmatprep.subr.bf16.mxu0 0
    %4903 = vmatpush1.bf16.msra.mxu0 %v2829
    %4904 = vmatprep.subr.bf16.mxu0 0
    %4905 = vmatpush1.bf16.msra.mxu0 %v2830
    %4906 = vmatprep.subr.bf16.mxu0 0
    %4907 = vmatpush1.bf16.msra.mxu0 %v2831
    %4908 = vmatprep.subr.bf16.mxu0 0
    %4909 = vmatpush1.bf16.msra.mxu0 %v2832
    %4910 = vmatprep.subr.bf16.mxu0 0
    %4911 = vmatpush1.bf16.msra.mxu0 %v2833
    %4912 = vmatprep.subr.bf16.mxu0 0
    %4913 = vmatpush1.bf16.msra.mxu0 %v2834
    %4914 = vmatprep.subr.bf16.mxu0 0
    %4915 = vmatpush1.bf16.msra.mxu0 %v2835
    %4916 = vmatprep.subr.bf16.mxu0 0
    %4917 = vmatpush1.bf16.msra.mxu0 %v2836
    %4918 = vmatprep.subr.bf16.mxu0 0
    %4919 = vmatpush1.bf16.msra.mxu0 %v2837
    %4920 = vmatprep.subr.bf16.mxu0 0
    %4921 = vmatpush1.bf16.msra.mxu0 %v2838
    %4922 = vmatprep.subr.bf16.mxu0 0
    %4923 = vmatpush1.bf16.msra.mxu0 %v2839
    %4924 = vmatprep.subr.bf16.mxu0 0
    %4925 = vmatpush1.bf16.msra.mxu0 %v2840
    %4926 = vmatprep.subr.bf16.mxu0 0
    %4927 = vmatpush1.bf16.msra.mxu0 %v2841
    %4928 = vmatprep.subr.bf16.mxu0 0
    %4929 = vmatpush1.bf16.msra.mxu0 %v2842
    %4930 = vmatprep.subr.bf16.mxu0 0
    %4931 = vmatpush1.bf16.msra.mxu0 %v2843
    %4932 = vmatprep.mubr.bf16.mxu0 %v897
    %4933 = vmatmul.mubr.bf16.gmra.mrb[0].mxu0 %v896
    %v4934 = vpop.f32.mrb[0].mxu0
    %v4935 = vadd.f32 %v4895, %v4934
    %v4936 = vpop.f32.mrb[0].mxu0
    %v4937 = vpop.f32.mrb[0].mxu0
    %v4938 = vpop.f32.mrb[0].mxu0
    %4939 = vdwg.mxu0
    %4940 = vmatprep.subr.bf16.mxu0 0
    %4941 = vmatpush1.bf16.msra.mxu0 %v2844
    %4942 = vmatprep.subr.bf16.mxu0 0
    %4943 = vmatpush1.bf16.msra.mxu0 %v2845
    %4944 = vmatprep.subr.bf16.mxu0 0
    %4945 = vmatpush1.bf16.msra.mxu0 %v2846
    %4946 = vmatprep.subr.bf16.mxu0 0
    %4947 = vmatpush1.bf16.msra.mxu0 %v2847
    %4948 = vmatprep.subr.bf16.mxu0 0
    %4949 = vmatpush1.bf16.msra.mxu0 %v2848
    %4950 = vmatprep.subr.bf16.mxu0 0
    %4951 = vmatpush1.bf16.msra.mxu0 %v2849
    %4952 = vmatprep.subr.bf16.mxu0 0
    %4953 = vmatpush1.bf16.msra.mxu0 %v2850
    %4954 = vmatprep.subr.bf16.mxu0 0
    %4955 = vmatpush1.bf16.msra.mxu0 %v2851
    %4956 = vmatprep.subr.bf16.mxu0 0
    %4957 = vmatpush1.bf16.msra.mxu0 %v2852
    %4958 = vmatprep.subr.bf16.mxu0 0
    %4959 = vmatpush1.bf16.msra.mxu0 %v2853
    %4960 = vmatprep.subr.bf16.mxu0 0
    %4961 = vmatpush1.bf16.msra.mxu0 %v2854
    %4962 = vmatprep.subr.bf16.mxu0 0
    %4963 = vmatpush1.bf16.msra.mxu0 %v2855
    %4964 = vmatprep.subr.bf16.mxu0 0
    %4965 = vmatpush1.bf16.msra.mxu0 %v2856
    %4966 = vmatprep.subr.bf16.mxu0 0
    %4967 = vmatpush1.bf16.msra.mxu0 %v2857
    %4968 = vmatprep.subr.bf16.mxu0 0
    %4969 = vmatpush1.bf16.msra.mxu0 %v2858
    %4970 = vmatprep.subr.bf16.mxu0 0
    %4971 = vmatpush1.bf16.msra.mxu0 %v2859
    %4972 = vmatprep.mubr.bf16.mxu0 %v899
    %4973 = vmatmul.mubr.bf16.gmra.mrb[0].mxu0 %v898
    %v4974 = vpop.f32.mrb[0].mxu0
    %v4975 = vadd.f32 %v4935, %v4974
    %v4976 = vpop.f32.mrb[0].mxu0
    %v4977 = vpop.f32.mrb[0].mxu0
    %v4978 = vpop.f32.mrb[0].mxu0
    %4979 = vdwg.mxu0
    %4980 = vmatprep.subr.bf16.mxu0 0
    %4981 = vmatpush1.bf16.msra.mxu0 %v2860
    %4982 = vmatprep.subr.bf16.mxu0 0
    %4983 = vmatpush1.bf16.msra.mxu0 %v2861
    %4984 = vmatprep.subr.bf16.mxu0 0
    %4985 = vmatpush1.bf16.msra.mxu0 %v2862
    %4986 = vmatprep.subr.bf16.mxu0 0
    %4987 = vmatpush1.bf16.msra.mxu0 %v2863
    %4988 = vmatprep.subr.bf16.mxu0 0
    %4989 = vmatpush1.bf16.msra.mxu0 %v2864
    %4990 = vmatprep.subr.bf16.mxu0 0
    %4991 = vmatpush1.bf16.msra.mxu0 %v2865
    %4992 = vmatprep.subr.bf16.mxu0 0
    %4993 = vmatpush1.bf16.msra.mxu0 %v2866
    %4994 = vmatprep.subr.bf16.mxu0 0
    %4995 = vmatpush1.bf16.msra.mxu0 %v2867
    %4996 = vmatprep.subr.bf16.mxu0 0
    %4997 = vmatpush1.bf16.msra.mxu0 %v2868
    %4998 = vmatprep.subr.bf16.mxu0 0
    %4999 = vmatpush1.bf16.msra.mxu0 %v2869
    %5000 = vmatprep.subr.bf16.mxu0 0
    %5001 = vmatpush1.bf16.msra.mxu0 %v2870
    %5002 = vmatprep.subr.bf16.mxu0 0
    %5003 = vmatpush1.bf16.msra.mxu0 %v2871
    %5004 = vmatprep.subr.bf16.mxu0 0
    %5005 = vmatpush1.bf16.msra.mxu0 %v2872
    %5006 = vmatprep.subr.bf16.mxu0 0
    %5007 = vmatpush1.bf16.msra.mxu0 %v2873
    %5008 = vmatprep.subr.bf16.mxu0 0
    %5009 = vmatpush1.bf16.msra.mxu0 %v2874
    %5010 = vmatprep.subr.bf16.mxu0 0
    %5011 = vmatpush1.bf16.msra.mxu0 %v2875
    %5012 = vmatprep.mubr.bf16.mxu0 %v901
    %5013 = vmatmul.mubr.bf16.gmra.mrb[0].mxu0 %v900
    %v5014 = vpop.f32.mrb[0].mxu0
    %v5015 = vadd.f32 %v4975, %v5014
    %v5016 = vpop.f32.mrb[0].mxu0
    %v5017 = vpop.f32.mrb[0].mxu0
    %v5018 = vpop.f32.mrb[0].mxu0
    %5019 = vdwg.mxu0
    %5020 = vmatprep.subr.bf16.mxu0 0
    %5021 = vmatpush1.bf16.msra.mxu0 %v2876
    %5022 = vmatprep.subr.bf16.mxu0 0
    %5023 = vmatpush1.bf16.msra.mxu0 %v2877
    %5024 = vmatprep.subr.bf16.mxu0 0
    %5025 = vmatpush1.bf16.msra.mxu0 %v2878
    %5026 = vmatprep.subr.bf16.mxu0 0
    %5027 = vmatpush1.bf16.msra.mxu0 %v2879
    %5028 = vmatprep.subr.bf16.mxu0 0
    %5029 = vmatpush1.bf16.msra.mxu0 %v2880
    %5030 = vmatprep.subr.bf16.mxu0 0
    %5031 = vmatpush1.bf16.msra.mxu0 %v2881
    %5032 = vmatprep.subr.bf16.mxu0 0
    %5033 = vmatpush1.bf16.msra.mxu0 %v2882
    %5034 = vmatprep.subr.bf16.mxu0 0
    %5035 = vmatpush1.bf16.msra.mxu0 %v2883
    %5036 = vmatprep.subr.bf16.mxu0 0
    %5037 = vmatpush1.bf16.msra.mxu0 %v2884
    %5038 = vmatprep.subr.bf16.mxu0 0
    %5039 = vmatpush1.bf16.msra.mxu0 %v2885
    %5040 = vmatprep.subr.bf16.mxu0 0
    %5041 = vmatpush1.bf16.msra.mxu0 %v2886
    %5042 = vmatprep.subr.bf16.mxu0 0
    %5043 = vmatpush1.bf16.msra.mxu0 %v2887
    %5044 = vmatprep.subr.bf16.mxu0 0
    %5045 = vmatpush1.bf16.msra.mxu0 %v2888
    %5046 = vmatprep.subr.bf16.mxu0 0
    %5047 = vmatpush1.bf16.msra.mxu0 %v2889
    %5048 = vmatprep.subr.bf16.mxu0 0
    %5049 = vmatpush1.bf16.msra.mxu0 %v2890
    %5050 = vmatprep.subr.bf16.mxu0 0
    %5051 = vmatpush1.bf16.msra.mxu0 %v2891
    %5052 = vmatprep.mubr.bf16.mxu0 %v903
    %5053 = vmatmul.mubr.bf16.gmra.mrb[0].mxu0 %v902
    %v5054 = vpop.f32.mrb[0].mxu0
    %v5055 = vadd.f32 %v5015, %v5054
    %v5056 = vpop.f32.mrb[0].mxu0
    %v5057 = vpop.f32.mrb[0].mxu0
    %v5058 = vpop.f32.mrb[0].mxu0
    %5059 = vdwg.mxu0
    %5060 = vmatprep.subr.bf16.mxu0 0
    %5061 = vmatpush1.bf16.msra.mxu0 %v2892
    %5062 = vmatprep.subr.bf16.mxu0 0
    %5063 = vmatpush1.bf16.msra.mxu0 %v2893
    %5064 = vmatprep.subr.bf16.mxu0 0
    %5065 = vmatpush1.bf16.msra.mxu0 %v2894
    %5066 = vmatprep.subr.bf16.mxu0 0
    %5067 = vmatpush1.bf16.msra.mxu0 %v2895
    %5068 = vmatprep.subr.bf16.mxu0 0
    %5069 = vmatpush1.bf16.msra.mxu0 %v2896
    %5070 = vmatprep.subr.bf16.mxu0 0
    %5071 = vmatpush1.bf16.msra.mxu0 %v2897
    %5072 = vmatprep.subr.bf16.mxu0 0
    %5073 = vmatpush1.bf16.msra.mxu0 %v2898
    %5074 = vmatprep.subr.bf16.mxu0 0
    %5075 = vmatpush1.bf16.msra.mxu0 %v2899
    %5076 = vmatprep.subr.bf16.mxu0 0
    %5077 = vmatpush1.bf16.msra.mxu0 %v2900
    %5078 = vmatprep.subr.bf16.mxu0 0
    %5079 = vmatpush1.bf16.msra.mxu0 %v2901
    %5080 = vmatprep.subr.bf16.mxu0 0
    %5081 = vmatpush1.bf16.msra.mxu0 %v2902
    %5082 = vmatprep.subr.bf16.mxu0 0
    %5083 = vmatpush1.bf16.msra.mxu0 %v2903
    %5084 = vmatprep.subr.bf16.mxu0 0
    %5085 = vmatpush1.bf16.msra.mxu0 %v2904
    %5086 = vmatprep.subr.bf16.mxu0 0
    %5087 = vmatpush1.bf16.msra.mxu0 %v2905
    %5088 = vmatprep.subr.bf16.mxu0 0
    %5089 = vmatpush1.bf16.msra.mxu0 %v2906
    %5090 = vmatprep.subr.bf16.mxu0 0
    %5091 = vmatpush1.bf16.msra.mxu0 %v2907
    %5092 = vmatprep.mubr.bf16.mxu0 %v905
    %5093 = vmatmul.mubr.bf16.gmra.mrb[0].mxu0 %v904
    %v5094 = vpop.f32.mrb[0].mxu0
    %v5095 = vadd.f32 %v5055, %v5094
    %v5096 = vpop.f32.mrb[0].mxu0
    %v5097 = vpop.f32.mrb[0].mxu0
    %v5098 = vpop.f32.mrb[0].mxu0
    %5099 = vdwg.mxu0
    %5100 = vmatprep.subr.bf16.mxu0 0
    %5101 = vmatpush1.bf16.msra.mxu0 %v2908
    %5102 = vmatprep.subr.bf16.mxu0 0
    %5103 = vmatpush1.bf16.msra.mxu0 %v2909
    %5104 = vmatprep.subr.bf16.mxu0 0
    %5105 = vmatpush1.bf16.msra.mxu0 %v2910
    %5106 = vmatprep.subr.bf16.mxu0 0
    %5107 = vmatpush1.bf16.msra.mxu0 %v2911
    %5108 = vmatprep.subr.bf16.mxu0 0
    %5109 = vmatpush1.bf16.msra.mxu0 %v2912
    %5110 = vmatprep.subr.bf16.mxu0 0
    %5111 = vmatpush1.bf16.msra.mxu0 %v2913
    %5112 = vmatprep.subr.bf16.mxu0 0
    %5113 = vmatpush1.bf16.msra.mxu0 %v2914
    %5114 = vmatprep.subr.bf16.mxu0 0
    %5115 = vmatpush1.bf16.msra.mxu0 %v2915
    %5116 = vmatprep.subr.bf16.mxu0 0
    %5117 = vmatpush1.bf16.msra.mxu0 %v2916
    %5118 = vmatprep.subr.bf16.mxu0 0
    %5119 = vmatpush1.bf16.msra.mxu0 %v2917
    %5120 = vmatprep.subr.bf16.mxu0 0
    %5121 = vmatpush1.bf16.msra.mxu0 %v2918
    %5122 = vmatprep.subr.bf16.mxu0 0
    %5123 = vmatpush1.bf16.msra.mxu0 %v2919
    %5124 = vmatprep.subr.bf16.mxu0 0
    %5125 = vmatpush1.bf16.msra.mxu0 %v2920
    %5126 = vmatprep.subr.bf16.mxu0 0
    %5127 = vmatpush1.bf16.msra.mxu0 %v2921
    %5128 = vmatprep.subr.bf16.mxu0 0
    %5129 = vmatpush1.bf16.msra.mxu0 %v2922
    %5130 = vmatprep.subr.bf16.mxu0 0
    %5131 = vmatpush1.bf16.msra.mxu0 %v2923
    %5132 = vmatprep.mubr.bf16.mxu0 %v907
    %5133 = vmatmul.mubr.bf16.gmra.mrb[0].mxu0 %v906
    %v5134 = vpop.f32.mrb[0].mxu0
    %v5135 = vadd.f32 %v5095, %v5134
    %v5136 = vpop.f32.mrb[0].mxu0
    %v5137 = vpop.f32.mrb[0].mxu0
    %v5138 = vpop.f32.mrb[0].mxu0
    %5139 = vdwg.mxu0
    %5140 = vmatprep.subr.bf16.mxu0 0
    %5141 = vmatpush1.bf16.msra.mxu0 %v2924
    %5142 = vmatprep.subr.bf16.mxu0 0
    %5143 = vmatpush1.bf16.msra.mxu0 %v2925
    %5144 = vmatprep.subr.bf16.mxu0 0
    %5145 = vmatpush1.bf16.msra.mxu0 %v2926
    %5146 = vmatprep.subr.bf16.mxu0 0
    %5147 = vmatpush1.bf16.msra.mxu0 %v2927
    %5148 = vmatprep.subr.bf16.mxu0 0
    %5149 = vmatpush1.bf16.msra.mxu0 %v2928
    %5150 = vmatprep.subr.bf16.mxu0 0
    %5151 = vmatpush1.bf16.msra.mxu0 %v2929
    %5152 = vmatprep.subr.bf16.mxu0 0
    %5153 = vmatpush1.bf16.msra.mxu0 %v2930
    %5154 = vmatprep.subr.bf16.mxu0 0
    %5155 = vmatpush1.bf16.msra.mxu0 %v2931
    %5156 = vmatprep.subr.bf16.mxu0 0
    %5157 = vmatpush1.bf16.msra.mxu0 %v2932
    %5158 = vmatprep.subr.bf16.mxu0 0
    %5159 = vmatpush1.bf16.msra.mxu0 %v2933
    %5160 = vmatprep.subr.bf16.mxu0 0
    %5161 = vmatpush1.bf16.msra.mxu0 %v2934
    %5162 = vmatprep.subr.bf16.mxu0 0
    %5163 = vmatpush1.bf16.msra.mxu0 %v2935
    %5164 = vmatprep.subr.bf16.mxu0 0
    %5165 = vmatpush1.bf16.msra.mxu0 %v2936
    %5166 = vmatprep.subr.bf16.mxu0 0
    %5167 = vmatpush1.bf16.msra.mxu0 %v2937
    %5168 = vmatprep.subr.bf16.mxu0 0
    %5169 = vmatpush1.bf16.msra.mxu0 %v2938
    %5170 = vmatprep.subr.bf16.mxu0 0
    %5171 = vmatpush1.bf16.msra.mxu0 %v2939
    %5172 = vmatprep.mubr.bf16.mxu0 %v909
    %5173 = vmatmul.mubr.bf16.gmra.mrb[0].mxu0 %v908
    %v5174 = vpop.f32.mrb[0].mxu0
    %v5175 = vadd.f32 %v5135, %v5174
    %v5176 = vpop.f32.mrb[0].mxu0
    %v5177 = vpop.f32.mrb[0].mxu0
    %v5178 = vpop.f32.mrb[0].mxu0
    %5179 = vdwg.mxu0
    %5180 = vmatprep.subr.bf16.mxu0 0
    %5181 = vmatpush1.bf16.msra.mxu0 %v2940
    %5182 = vmatprep.subr.bf16.mxu0 0
    %5183 = vmatpush1.bf16.msra.mxu0 %v2941
    %5184 = vmatprep.subr.bf16.mxu0 0
    %5185 = vmatpush1.bf16.msra.mxu0 %v2942
    %5186 = vmatprep.subr.bf16.mxu0 0
    %5187 = vmatpush1.bf16.msra.mxu0 %v2943
    %5188 = vmatprep.subr.bf16.mxu0 0
    %5189 = vmatpush1.bf16.msra.mxu0 %v2944
    %5190 = vmatprep.subr.bf16.mxu0 0
    %5191 = vmatpush1.bf16.msra.mxu0 %v2945
    %5192 = vmatprep.subr.bf16.mxu0 0
    %5193 = vmatpush1.bf16.msra.mxu0 %v2946
    %5194 = vmatprep.subr.bf16.mxu0 0
    %5195 = vmatpush1.bf16.msra.mxu0 %v2947
    %5196 = vmatprep.subr.bf16.mxu0 0
    %5197 = vmatpush1.bf16.msra.mxu0 %v2948
    %5198 = vmatprep.subr.bf16.mxu0 0
    %5199 = vmatpush1.bf16.msra.mxu0 %v2949
    %5200 = vmatprep.subr.bf16.mxu0 0
    %5201 = vmatpush1.bf16.msra.mxu0 %v2950
    %5202 = vmatprep.subr.bf16.mxu0 0
    %5203 = vmatpush1.bf16.msra.mxu0 %v2951
    %5204 = vmatprep.subr.bf16.mxu0 0
    %5205 = vmatpush1.bf16.msra.mxu0 %v2952
    %5206 = vmatprep.subr.bf16.mxu0 0
    %5207 = vmatpush1.bf16.msra.mxu0 %v2953
    %5208 = vmatprep.subr.bf16.mxu0 0
    %5209 = vmatpush1.bf16.msra.mxu0 %v2954
    %5210 = vmatprep.subr.bf16.mxu0 0
    %5211 = vmatpush1.bf16.msra.mxu0 %v2955
    %5212 = vmatprep.mubr.bf16.mxu0 %v911
    %5213 = vmatmul.mubr.bf16.gmra.mrb[0].mxu0 %v910
    %v5214 = vpop.f32.mrb[0].mxu0
    %v5215 = vadd.f32 %v5175, %v5214
    %v5216 = vpop.f32.mrb[0].mxu0
    %v5217 = vpop.f32.mrb[0].mxu0
    %v5218 = vpop.f32.mrb[0].mxu0
    %5219 = vdwg.mxu0
    %5220 = vmatprep.subr.bf16.mxu0 0
    %5221 = vmatpush1.bf16.msra.mxu0 %v2956
    %5222 = vmatprep.subr.bf16.mxu0 0
    %5223 = vmatpush1.bf16.msra.mxu0 %v2957
    %5224 = vmatprep.subr.bf16.mxu0 0
    %5225 = vmatpush1.bf16.msra.mxu0 %v2958
    %5226 = vmatprep.subr.bf16.mxu0 0
    %5227 = vmatpush1.bf16.msra.mxu0 %v2959
    %5228 = vmatprep.subr.bf16.mxu0 0
    %5229 = vmatpush1.bf16.msra.mxu0 %v2960
    %5230 = vmatprep.subr.bf16.mxu0 0
    %5231 = vmatpush1.bf16.msra.mxu0 %v2961
    %5232 = vmatprep.subr.bf16.mxu0 0
    %5233 = vmatpush1.bf16.msra.mxu0 %v2962
    %5234 = vmatprep.subr.bf16.mxu0 0
    %5235 = vmatpush1.bf16.msra.mxu0 %v2963
    %5236 = vmatprep.subr.bf16.mxu0 0
    %5237 = vmatpush1.bf16.msra.mxu0 %v2964
    %5238 = vmatprep.subr.bf16.mxu0 0
    %5239 = vmatpush1.bf16.msra.mxu0 %v2965
    %5240 = vmatprep.subr.bf16.mxu0 0
    %5241 = vmatpush1.bf16.msra.mxu0 %v2966
    %5242 = vmatprep.subr.bf16.mxu0 0
    %5243 = vmatpush1.bf16.msra.mxu0 %v2967
    %5244 = vmatprep.subr.bf16.mxu0 0
    %5245 = vmatpush1.bf16.msra.mxu0 %v2968
    %5246 = vmatprep.subr.bf16.mxu0 0
    %5247 = vmatpush1.bf16.msra.mxu0 %v2969
    %5248 = vmatprep.subr.bf16.mxu0 0
    %5249 = vmatpush1.bf16.msra.mxu0 %v2970
    %5250 = vmatprep.subr.bf16.mxu0 0
    %5251 = vmatpush1.bf16.msra.mxu0 %v2971
    %5252 = vmatprep.mubr.bf16.mxu0 %v913
    %5253 = vmatmul.mubr.bf16.gmra.mrb[0].mxu0 %v912
    %v5254 = vpop.f32.mrb[0].mxu0
    %v5255 = vadd.f32 %v5215, %v5254
    %v5256 = vpop.f32.mrb[0].mxu0
    %v5257 = vpop.f32.mrb[0].mxu0
    %v5258 = vpop.f32.mrb[0].mxu0
    %5259 = vdwg.mxu0
    %5260 = vmatprep.subr.bf16.mxu0 0
    %5261 = vmatpush1.bf16.msra.mxu0 %v2972
    %5262 = vmatprep.subr.bf16.mxu0 0
    %5263 = vmatpush1.bf16.msra.mxu0 %v2973
    %5264 = vmatprep.subr.bf16.mxu0 0
    %5265 = vmatpush1.bf16.msra.mxu0 %v2974
    %5266 = vmatprep.subr.bf16.mxu0 0
    %5267 = vmatpush1.bf16.msra.mxu0 %v2975
    %5268 = vmatprep.subr.bf16.mxu0 0
    %5269 = vmatpush1.bf16.msra.mxu0 %v2976
    %5270 = vmatprep.subr.bf16.mxu0 0
    %5271 = vmatpush1.bf16.msra.mxu0 %v2977
    %5272 = vmatprep.subr.bf16.mxu0 0
    %5273 = vmatpush1.bf16.msra.mxu0 %v2978
    %5274 = vmatprep.subr.bf16.mxu0 0
    %5275 = vmatpush1.bf16.msra.mxu0 %v2979
    %5276 = vmatprep.subr.bf16.mxu0 0
    %5277 = vmatpush1.bf16.msra.mxu0 %v2980
    %5278 = vmatprep.subr.bf16.mxu0 0
    %5279 = vmatpush1.bf16.msra.mxu0 %v2981
    %5280 = vmatprep.subr.bf16.mxu0 0
    %5281 = vmatpush1.bf16.msra.mxu0 %v2982
    %5282 = vmatprep.subr.bf16.mxu0 0
    %5283 = vmatpush1.bf16.msra.mxu0 %v2983
    %5284 = vmatprep.subr.bf16.mxu0 0
    %5285 = vmatpush1.bf16.msra.mxu0 %v2984
    %5286 = vmatprep.subr.bf16.mxu0 0
    %5287 = vmatpush1.bf16.msra.mxu0 %v2985
    %5288 = vmatprep.subr.bf16.mxu0 0
    %5289 = vmatpush1.bf16.msra.mxu0 %v2986
    %5290 = vmatprep.subr.bf16.mxu0 0
    %5291 = vmatpush1.bf16.msra.mxu0 %v2987
    %5292 = vmatprep.mubr.bf16.mxu0 %v915
    %5293 = vmatmul.mubr.bf16.gmra.mrb[0].mxu0 %v914
    %v5294 = vpop.f32.mrb[0].mxu0
    %v5295 = vadd.f32 %v5255, %v5294
    %v5296 = vpop.f32.mrb[0].mxu0
    %v5297 = vpop.f32.mrb[0].mxu0
    %v5298 = vpop.f32.mrb[0].mxu0
    %5299 = vdwg.mxu0
    %5300 = vmatprep.subr.bf16.mxu0 0
    %5301 = vmatpush1.bf16.msra.mxu0 %v2988
    %5302 = vmatprep.subr.bf16.mxu0 0
    %5303 = vmatpush1.bf16.msra.mxu0 %v2989
    %5304 = vmatprep.subr.bf16.mxu0 0
    %5305 = vmatpush1.bf16.msra.mxu0 %v2990
    %5306 = vmatprep.subr.bf16.mxu0 0
    %5307 = vmatpush1.bf16.msra.mxu0 %v2991
    %5308 = vmatprep.subr.bf16.mxu0 0
    %5309 = vmatpush1.bf16.msra.mxu0 %v2992
    %5310 = vmatprep.subr.bf16.mxu0 0
    %5311 = vmatpush1.bf16.msra.mxu0 %v2993
    %5312 = vmatprep.subr.bf16.mxu0 0
    %5313 = vmatpush1.bf16.msra.mxu0 %v2994
    %5314 = vmatprep.subr.bf16.mxu0 0
    %5315 = vmatpush1.bf16.msra.mxu0 %v2995
    %5316 = vmatprep.subr.bf16.mxu0 0
    %5317 = vmatpush1.bf16.msra.mxu0 %v2996
    %5318 = vmatprep.subr.bf16.mxu0 0
    %5319 = vmatpush1.bf16.msra.mxu0 %v2997
    %5320 = vmatprep.subr.bf16.mxu0 0
    %5321 = vmatpush1.bf16.msra.mxu0 %v2998
    %5322 = vmatprep.subr.bf16.mxu0 0
    %5323 = vmatpush1.bf16.msra.mxu0 %v2999
    %5324 = vmatprep.subr.bf16.mxu0 0
    %5325 = vmatpush1.bf16.msra.mxu0 %v3000
    %5326 = vmatprep.subr.bf16.mxu0 0
    %5327 = vmatpush1.bf16.msra.mxu0 %v3001
    %5328 = vmatprep.subr.bf16.mxu0 0
    %5329 = vmatpush1.bf16.msra.mxu0 %v3002
    %5330 = vmatprep.subr.bf16.mxu0 0
    %5331 = vmatpush1.bf16.msra.mxu0 %v3003
    %5332 = vmatprep.mubr.bf16.mxu0 %v917
    %5333 = vmatmul.mubr.bf16.gmra.mrb[0].mxu0 %v916
    %v5334 = vpop.f32.mrb[0].mxu0
    %v5335 = vadd.f32 %v5295, %v5334
    %v5336 = vpop.f32.mrb[0].mxu0
    %v5337 = vpop.f32.mrb[0].mxu0
    %v5338 = vpop.f32.mrb[0].mxu0
    %5339 = vdwg.mxu0
    %5340 = vmatprep.subr.bf16.mxu0 0
    %5341 = vmatpush1.bf16.msra.mxu0 %v3004
    %5342 = vmatprep.subr.bf16.mxu0 0
    %5343 = vmatpush1.bf16.msra.mxu0 %v3005
    %5344 = vmatprep.subr.bf16.mxu0 0
    %5345 = vmatpush1.bf16.msra.mxu0 %v3006
    %5346 = vmatprep.subr.bf16.mxu0 0
    %5347 = vmatpush1.bf16.msra.mxu0 %v3007
    %5348 = vmatprep.subr.bf16.mxu0 0
    %5349 = vmatpush1.bf16.msra.mxu0 %v3008
    %5350 = vmatprep.subr.bf16.mxu0 0
    %5351 = vmatpush1.bf16.msra.mxu0 %v3009
    %5352 = vmatprep.subr.bf16.mxu0 0
    %5353 = vmatpush1.bf16.msra.mxu0 %v3010
    %5354 = vmatprep.subr.bf16.mxu0 0
    %5355 = vmatpush1.bf16.msra.mxu0 %v3011
    %5356 = vmatprep.subr.bf16.mxu0 0
    %5357 = vmatpush1.bf16.msra.mxu0 %v3012
    %5358 = vmatprep.subr.bf16.mxu0 0
    %5359 = vmatpush1.bf16.msra.mxu0 %v3013
    %5360 = vmatprep.subr.bf16.mxu0 0
    %5361 = vmatpush1.bf16.msra.mxu0 %v3014
    %5362 = vmatprep.subr.bf16.mxu0 0
    %5363 = vmatpush1.bf16.msra.mxu0 %v3015
    %5364 = vmatprep.subr.bf16.mxu0 0
    %5365 = vmatpush1.bf16.msra.mxu0 %v3016
    %5366 = vmatprep.subr.bf16.mxu0 0
    %5367 = vmatpush1.bf16.msra.mxu0 %v3017
    %5368 = vmatprep.subr.bf16.mxu0 0
    %5369 = vmatpush1.bf16.msra.mxu0 %v3018
    %5370 = vmatprep.subr.bf16.mxu0 0
    %5371 = vmatpush1.bf16.msra.mxu0 %v3019
    %5372 = vmatprep.mubr.bf16.mxu0 %v919
    %5373 = vmatmul.mubr.bf16.gmra.mrb[0].mxu0 %v918
    %v5374 = vpop.f32.mrb[0].mxu0
    %v5375 = vadd.f32 %v5335, %v5374
    %v5376 = vpop.f32.mrb[0].mxu0
    %v5377 = vpop.f32.mrb[0].mxu0
    %v5378 = vpop.f32.mrb[0].mxu0
    %5379 = vdwg.mxu0
    %5380 = vmatprep.subr.bf16.mxu0 0
    %5381 = vmatpush1.bf16.msra.mxu0 %v3020
    %5382 = vmatprep.subr.bf16.mxu0 0
    %5383 = vmatpush1.bf16.msra.mxu0 %v3021
    %5384 = vmatprep.subr.bf16.mxu0 0
    %5385 = vmatpush1.bf16.msra.mxu0 %v3022
    %5386 = vmatprep.subr.bf16.mxu0 0
    %5387 = vmatpush1.bf16.msra.mxu0 %v3023
    %5388 = vmatprep.subr.bf16.mxu0 0
    %5389 = vmatpush1.bf16.msra.mxu0 %v3024
    %5390 = vmatprep.subr.bf16.mxu0 0
    %5391 = vmatpush1.bf16.msra.mxu0 %v3025
    %5392 = vmatprep.subr.bf16.mxu0 0
    %5393 = vmatpush1.bf16.msra.mxu0 %v3026
    %5394 = vmatprep.subr.bf16.mxu0 0
    %5395 = vmatpush1.bf16.msra.mxu0 %v3027
    %5396 = vmatprep.subr.bf16.mxu0 0
    %5397 = vmatpush1.bf16.msra.mxu0 0
    %5398 = vmatprep.subr.bf16.mxu0 0
    %5399 = vmatpush1.bf16.msra.mxu0 0
    %5400 = vmatprep.subr.bf16.mxu0 0
    %5401 = vmatpush1.bf16.msra.mxu0 0
    %5402 = vmatprep.subr.bf16.mxu0 0
    %5403 = vmatpush1.bf16.msra.mxu0 0
    %5404 = vmatprep.subr.bf16.mxu0 0
    %5405 = vmatpush1.bf16.msra.mxu0 0
    %5406 = vmatprep.subr.bf16.mxu0 0
    %5407 = vmatpush1.bf16.msra.mxu0 0
    %5408 = vmatprep.subr.bf16.mxu0 0
    %5409 = vmatpush1.bf16.msra.mxu0 0
    %5410 = vmatprep.subr.bf16.mxu0 0
    %5411 = vmatpush1.bf16.msra.mxu0 0
    %5412 = vmatprep.mubr.bf16.mxu0 0
    %5413 = vmatmul.mubr.bf16.gmra.mrb[0].mxu0 %v920
    %v5414 = vpop.f32.mrb[0].mxu0
    %v5415 = vadd.f32 %v5375, %v5414
    %v5416 = vpop.f32.mrb[0].mxu0
    %v5417 = vpop.f32.mrb[0].mxu0
    %v5418 = vpop.f32.mrb[0].mxu0
    %5419 = vdwg.mxu0
    %v5420 = vmul.f32 %v5415, 0.020408163
    %5421 = vst [vmem:[#allocation7] sm:$0xff] %v5420
    // Predicated region
    $region18: #{tpu_custom_call.1} parent=1 // pred_check
      _
    $region19: #{tpu_custom_call.1} parent=1 // pred_check_branch
      %5423 = sbr.rel (0) target = $region21
    $region20: #{tpu_custom_call.1} parent=1 // pred_region
      %s5425 = ssub.s32 128, 128
      %5426 = vsyncadd [#allocation4], %s5425
      %s5428 = sshll.u32 [#allocation7], 4
      %s5429 = int_to_ptr.vmem [resolvable:$true] %s5428
      %5431 = dma.vmem_to_hbm [thread:$0]  %s5429, 128, %s2, [#allocation4]
    $region21: #{tpu_custom_call.1} parent=1 // pred_fallthru
      _
    // Predicated region
    $region22: #{tpu_custom_call.1} parent=1 // pred_check
      _
    $region23: #{tpu_custom_call.1} parent=1 // pred_check_branch
      %5433 = sbr.rel (0) target = $region25
    $region24: #{tpu_custom_call.1} parent=1 // pred_region
      %5434 = dma.done [#allocation4], 128
    $region25: #{tpu_custom_call.1} parent=1 // pred_fallthru
      _
    %5435 = vsyncpa [#allocation3], 1
    %5436 = vsyncpa [#allocation6], 1
    %5437 = vsyncpa [#allocation4], 1

</llo_original>
